<compile_context>
chip_gen: v6e
topology: v6e:2x2x1
jax: 0.10.0
libtpu: 0.0.40
codegen_flags: <defaults>
</compile_context>

<pallas_src>
import functools

import jax
import jax.numpy as jnp
from jax.experimental import pallas as pl
from jax.experimental.pallas import tpu as pltpu


def bilstm_crf_kernel(embeds_ref,
                      wih_f_ref, whh_f_ref, b_f_ref,
                      wih_b_ref, whh_b_ref, b_b_ref,
                      h0_ref, c0_ref,
                      wtag_f_ref, wtag_b_ref, btag_ref,
                      trans_ref, init_vvars_ref, trans_stop_ref,
                      # outputs
                      score_ref, path_ref, start_ref,
                      # scratch
                      xf_s, xb_s, hs_f, hs_b, feats_s, bp_s):
    T = embeds_ref.shape[0]
    H = whh_f_ref.shape[0]
    K = trans_ref.shape[0]

    embeds = embeds_ref[...]                                            # (T, E)

    # ---- hoisted input projections: one big MXU matmul per direction ----
    xf_s[...] = (jnp.dot(embeds, wih_f_ref[...],
                         preferred_element_type=jnp.float32) + b_f_ref[...])
    xb_s[...] = (jnp.dot(embeds, wih_b_ref[...],
                         preferred_element_type=jnp.float32) + b_b_ref[...])

    whh_f = whh_f_ref[...]
    whh_b = whh_b_ref[...]

    def cell(x_gates, h, c, whh):
        # PyTorch LSTM gate order: i, f, g, o
        gates = x_gates + jnp.dot(h, whh, preferred_element_type=jnp.float32)
        i = jax.nn.sigmoid(gates[:, 0:H])
        f = jax.nn.sigmoid(gates[:, H:2 * H])
        g = jnp.tanh(gates[:, 2 * H:3 * H])
        o = jax.nn.sigmoid(gates[:, 3 * H:4 * H])
        c_new = f * c + i * g
        h_new = o * jnp.tanh(c_new)
        return h_new, c_new

    # ---- both LSTM directions interleaved in a single unrolled loop ----
    def lstm_body(t, carry):
        h_f, c_f, h_b, c_b = carry
        tb = T - 1 - t
        h_f, c_f = cell(xf_s[pl.ds(t, 1), :], h_f, c_f, whh_f)
        hs_f[pl.ds(t, 1), :] = h_f
        h_b, c_b = cell(xb_s[pl.ds(tb, 1), :], h_b, c_b, whh_b)
        hs_b[pl.ds(tb, 1), :] = h_b
        return (h_f, c_f, h_b, c_b)

    jax.lax.fori_loop(
        0, T, lstm_body,
        (h0_ref[0:1, :], c0_ref[0:1, :], h0_ref[1:2, :], c0_ref[1:2, :]),
        unroll=True)

    # ---- hidden2tag without the lane-axis concat (wtag pre-split) ----
    feats_s[...] = (jnp.dot(hs_f[...], wtag_f_ref[...],
                            preferred_element_type=jnp.float32)
                    + jnp.dot(hs_b[...], wtag_b_ref[...],
                              preferred_element_type=jnp.float32)
                    + btag_ref[...])                                    # (T, K)

    # ---- Viterbi forward recursion ----
    trans = trans_ref[...]                                              # (K, K)
    kk_idx = jax.lax.broadcasted_iota(jnp.int32, (K, K), 1)             # hoisted
    k_row_idx = jax.lax.broadcasted_iota(jnp.int32, (1, K), 1)
    t_row_idx = jax.lax.broadcasted_iota(jnp.int32, (1, T), 1)

    def vit_body(t, fwd_var):                                           # (1, K)
        m = trans + fwd_var             # m[next, prev] = trans[next,prev]+fwd[prev]
        vmax = jnp.max(m, axis=1)                                       # (K,)
        # first index attaining the max (manual argmax)
        bptrs = jnp.min(jnp.where(m >= vmax[:, None], kk_idx, K), axis=1)
        bp_s[pl.ds(t, 1), :] = bptrs.reshape(1, K)
        feat = feats_s[pl.ds(t, 1), :]                                  # (1, K)
        return vmax.reshape(1, K) + feat

    fwd_var = jax.lax.fori_loop(0, T, vit_body, init_vvars_ref[...],
                                unroll=True)
    terminal = fwd_var + trans_stop_ref[...]                            # (1, K)

    # ---- terminal argmax + backpointer chase, fully in-kernel ----
    score = jnp.max(terminal, axis=1, keepdims=True)                    # (1, 1)
    score_ref[...] = score
    best_last = jnp.min(jnp.where(terminal >= score, k_row_idx, K),
                        axis=1, keepdims=True)                          # (1,1) i32

    path0 = jnp.where(t_row_idx == T - 1, best_last,
                      jnp.zeros((1, T), jnp.int32))

    def chase_body(i, carry):
        path, tag = carry                                               # (1,T),(1,1)
        t = T - 1 - i
        bp_row = bp_s[pl.ds(t, 1), :]                                   # (1, K)
        prev = jnp.sum(jnp.where(k_row_idx == tag, bp_row, 0),
                       axis=1, keepdims=True)                           # (1, 1)
        # at t == 0 this writes lane -1 (never matches) -> no-op, as intended
        path = jnp.where(t_row_idx == t - 1, prev, path)
        return (path, prev)

    path, start_tag = jax.lax.fori_loop(0, T, chase_body,
                                        (path0, best_last), unroll=True)
    path_ref[...] = path
    start_ref[...] = start_tag      # should equal the <START> tag index


def make_params(key, vocab_size, embed_dim, hidden_dim, tagset_size,
                start_idx, stop_idx):
    H = hidden_dim // 2
    ks = jax.random.split(key, 12)

    def rnd(k, shape, scale=0.1):
        return (scale * jax.random.normal(k, shape)).astype(jnp.float32)

    params = dict(
        embedding=rnd(ks[0], (vocab_size, embed_dim), 1.0),
        # weights pre-transposed (x @ W) relative to torch's (4H, E)/(4H, H)
        wih_f=rnd(ks[1], (embed_dim, 4 * H)),
        whh_f=rnd(ks[2], (H, 4 * H)),
        b_f=rnd(ks[3], (1, 4 * H)),           # bias_ih + bias_hh combined
        wih_b=rnd(ks[4], (embed_dim, 4 * H)),
        whh_b=rnd(ks[5], (H, 4 * H)),
        b_b=rnd(ks[6], (1, 4 * H)),
        # deterministic replacement for torch's per-call torch.randn init_hidden()
        h0=rnd(ks[7], (2, H), 1.0),           # row 0: fwd dir, row 1: bwd dir
        c0=rnd(ks[8], (2, H), 1.0),
        wtag=rnd(ks[9], (hidden_dim, tagset_size)),
        btag=rnd(ks[10], (1, tagset_size)),
    )
    trans = jax.random.normal(ks[11], (tagset_size, tagset_size)).astype(jnp.float32)
    trans = trans.at[start_idx, :].set(-10000.0)   # never transition INTO start
    trans = trans.at[:, stop_idx].set(-10000.0)    # never transition FROM stop
    params["transitions"] = trans
    return params


@functools.partial(jax.jit, static_argnames=("start_idx", "stop_idx"))
def bilstm_crf_forward(params, sentence, start_idx, stop_idx):
    T = sentence.shape[0]
    K = params["transitions"].shape[0]
    H = params["whh_f"].shape[0]

    # glue: embedding gather
    embeds = jnp.take(params["embedding"], sentence, axis=0)            # (T, E)

    init_vvars = jnp.full((1, K), -10000.0, jnp.float32).at[0, start_idx].set(0.0)
    trans_stop = params["transitions"][stop_idx:stop_idx + 1, :]        # (1, K)

    # pre-split the tag projection to avoid an in-kernel lane concat
    wtag_f = params["wtag"][:H, :]                                      # (H, K)
    wtag_b = params["wtag"][H:, :]                                      # (H, K)

    vmem = pl.BlockSpec(memory_space=pltpu.MemorySpace.VMEM)
    score, path, start_tag = pl.pallas_call(
        bilstm_crf_kernel,
        out_shape=(
            jax.ShapeDtypeStruct((1, 1), jnp.float32),   # Viterbi path score
            jax.ShapeDtypeStruct((1, T), jnp.int32),     # best tag sequence
            jax.ShapeDtypeStruct((1, 1), jnp.int32),     # start-tag sanity value
        ),
        in_specs=[vmem] * 15,
        out_specs=(vmem, vmem, vmem),
        scratch_shapes=[pltpu.VMEM((T, 4 * H), jnp.float32),   # X_f precompute
                        pltpu.VMEM((T, 4 * H), jnp.float32),   # X_b precompute
                        pltpu.VMEM((T, H), jnp.float32),       # fwd hidden states
                        pltpu.VMEM((T, H), jnp.float32),       # bwd hidden states
                        pltpu.VMEM((T, K), jnp.float32),       # emission features
                        pltpu.VMEM((T, K), jnp.int32)],        # backpointers
    )(embeds,
      params["wih_f"], params["whh_f"], params["b_f"],
      params["wih_b"], params["whh_b"], params["b_b"],
      params["h0"], params["c0"],
      wtag_f, wtag_b, params["btag"],
      params["transitions"], init_vvars, trans_stop)

    return score[0, 0], path[0], start_tag[0, 0]


if __name__ == "__main__":
    vocab_size = 20
    embed_dim = 16
    hidden_dim = 32
    tag2idx = {"B": 0, "I": 1, "O": 2, "<START>": 3, "<STOP>": 4}
    start_idx = tag2idx["<START>"]
    stop_idx = tag2idx["<STOP>"]
    T = 8

    key = jax.random.PRNGKey(0)
    pkey, skey = jax.random.split(key)
    params = make_params(pkey, vocab_size, embed_dim, hidden_dim,
                         len(tag2idx), start_idx, stop_idx)
    sentence = jax.random.randint(skey, (T,), 0, vocab_size, dtype=jnp.int32)

    score, best_path, start_carry = bilstm_crf_forward(
        params, sentence, start_idx, stop_idx)
    jax.block_until_ready((score, best_path, start_carry))

    # mirrors the `assert start == tag2idx[start_tag]` in the reference decode()
    assert int(start_carry) == start_idx

    # TODO(synk): for throughput over many sentences, add a leading "parallel"
    # grid axis (one sentence per grid step) and/or pack sentences along lanes.
    print("KERNEL_OK")
</pallas_src>

<mosaic_0001>
module attributes {stable_mosaic.version = 11 : i64} {
  func.func @bilstm_crf_kernel(%arg0: memref<8x16xf32, #tpu.memory_space<vmem>>, %arg1: memref<16x64xf32, #tpu.memory_space<vmem>>, %arg2: memref<16x64xf32, #tpu.memory_space<vmem>>, %arg3: memref<1x64xf32, #tpu.memory_space<vmem>>, %arg4: memref<16x64xf32, #tpu.memory_space<vmem>>, %arg5: memref<16x64xf32, #tpu.memory_space<vmem>>, %arg6: memref<1x64xf32, #tpu.memory_space<vmem>>, %arg7: memref<2x16xf32, #tpu.memory_space<vmem>>, %arg8: memref<2x16xf32, #tpu.memory_space<vmem>>, %arg9: memref<16x5xf32, #tpu.memory_space<vmem>>, %arg10: memref<16x5xf32, #tpu.memory_space<vmem>>, %arg11: memref<1x5xf32, #tpu.memory_space<vmem>>, %arg12: memref<5x5xf32, #tpu.memory_space<vmem>>, %arg13: memref<1x5xf32, #tpu.memory_space<vmem>>, %arg14: memref<1x5xf32, #tpu.memory_space<vmem>>, %arg15: memref<1x1xf32, #tpu.memory_space<vmem>>, %arg16: memref<1x8xi32, #tpu.memory_space<vmem>>, %arg17: memref<1x1xi32, #tpu.memory_space<vmem>>, %arg18: memref<8x64xf32, #tpu.memory_space<vmem>>, %arg19: memref<8x64xf32, #tpu.memory_space<vmem>>, %arg20: memref<8x16xf32, #tpu.memory_space<vmem>>, %arg21: memref<8x16xf32, #tpu.memory_space<vmem>>, %arg22: memref<8x5xf32, #tpu.memory_space<vmem>>, %arg23: memref<8x5xi32, #tpu.memory_space<vmem>>) attributes {dimension_semantics = [], scalar_prefetch = 0 : i64, scratch_operands = 6 : i64, tpu.core_type = #tpu.core_type<tc>} {
    %c0 = arith.constant 0 : index
    %c0_0 = arith.constant 0 : index
    %0 = vector.load %arg0[%c0, %c0_0] : memref<8x16xf32, #tpu.memory_space<vmem>>, vector<8x16xf32>
    %c0_1 = arith.constant 0 : index
    %c0_2 = arith.constant 0 : index
    %1 = vector.load %arg1[%c0_1, %c0_2] : memref<16x64xf32, #tpu.memory_space<vmem>>, vector<16x64xf32>
    %cst = arith.constant dense<0.000000e+00> : vector<8x64xf32>
    %2 = tpu.matmul %0, %1, %cst {dimension_numbers = #tpu.dot_dimension_numbers<[1], [0], [0], [1], [0, 0, 1, 1], [], []>} : vector<8x16xf32>, vector<16x64xf32>, vector<8x64xf32> -> vector<8x64xf32>
    %c0_3 = arith.constant 0 : index
    %c0_4 = arith.constant 0 : index
    %3 = vector.load %arg3[%c0_3, %c0_4] : memref<1x64xf32, #tpu.memory_space<vmem>>, vector<1x64xf32>
    %4 = vector.broadcast %3 : vector<1x64xf32> to vector<8x64xf32>
    %5 = arith.addf %2, %4 : vector<8x64xf32>
    %c0_5 = arith.constant 0 : index
    %c0_6 = arith.constant 0 : index
    %6 = vector.load %arg18[%c0_5, %c0_6] : memref<8x64xf32, #tpu.memory_space<vmem>>, vector<8x64xf32>
    tpu.vector_store %arg18[%c0_5, %c0_6], %5 {strides = array<i32>} : memref<8x64xf32, #tpu.memory_space<vmem>>, vector<8x64xf32>,
    %c0_7 = arith.constant 0 : index
    %c0_8 = arith.constant 0 : index
    %7 = vector.load %arg4[%c0_7, %c0_8] : memref<16x64xf32, #tpu.memory_space<vmem>>, vector<16x64xf32>
    %cst_9 = arith.constant dense<0.000000e+00> : vector<8x64xf32>
    %8 = tpu.matmul %0, %7, %cst_9 {dimension_numbers = #tpu.dot_dimension_numbers<[1], [0], [0], [1], [0, 0, 1, 1], [], []>} : vector<8x16xf32>, vector<16x64xf32>, vector<8x64xf32> -> vector<8x64xf32>
    %c0_10 = arith.constant 0 : index
    %c0_11 = arith.constant 0 : index
    %9 = vector.load %arg6[%c0_10, %c0_11] : memref<1x64xf32, #tpu.memory_space<vmem>>, vector<1x64xf32>
    %10 = vector.broadcast %9 : vector<1x64xf32> to vector<8x64xf32>
    %11 = arith.addf %8, %10 : vector<8x64xf32>
    %c0_12 = arith.constant 0 : index
    %c0_13 = arith.constant 0 : index
    %12 = vector.load %arg19[%c0_12, %c0_13] : memref<8x64xf32, #tpu.memory_space<vmem>>, vector<8x64xf32>
    tpu.vector_store %arg19[%c0_12, %c0_13], %11 {strides = array<i32>} : memref<8x64xf32, #tpu.memory_space<vmem>>, vector<8x64xf32>,
    %c0_14 = arith.constant 0 : index
    %c0_15 = arith.constant 0 : index
    %13 = vector.load %arg2[%c0_14, %c0_15] : memref<16x64xf32, #tpu.memory_space<vmem>>, vector<16x64xf32>
    %c0_16 = arith.constant 0 : index
    %c0_17 = arith.constant 0 : index
    %14 = vector.load %arg5[%c0_16, %c0_17] : memref<16x64xf32, #tpu.memory_space<vmem>>, vector<16x64xf32>
    %c0_18 = arith.constant 0 : index
    %c0_19 = arith.constant 0 : index
    %15 = vector.load %arg7[%c0_18, %c0_19] : memref<2x16xf32, #tpu.memory_space<vmem>>, vector<1x16xf32>
    %c0_20 = arith.constant 0 : index
    %c0_21 = arith.constant 0 : index
    %16 = vector.load %arg8[%c0_20, %c0_21] : memref<2x16xf32, #tpu.memory_space<vmem>>, vector<1x16xf32>
    %c1 = arith.constant 1 : index
    %c0_22 = arith.constant 0 : index
    %17 = vector.load %arg7[%c1, %c0_22] : memref<2x16xf32, #tpu.memory_space<vmem>>, vector<1x16xf32>
    %c1_23 = arith.constant 1 : index
    %c0_24 = arith.constant 0 : index
    %18 = vector.load %arg8[%c1_23, %c0_24] : memref<2x16xf32, #tpu.memory_space<vmem>>, vector<1x16xf32>
    %c0_i32 = arith.constant 0 : i32
    %c7_i32 = arith.constant 7 : i32
    %19 = arith.subi %c7_i32, %c0_i32 : i32
    %20 = arith.index_cast %c0_i32 : i32 to index
    %c0_25 = arith.constant 0 : index
    %21 = vector.load %arg18[%20, %c0_25] : memref<8x64xf32, #tpu.memory_space<vmem>>, vector<1x64xf32>
    %cst_26 = arith.constant dense<0.000000e+00> : vector<1x64xf32>
    %22 = tpu.matmul %15, %13, %cst_26 {dimension_numbers = #tpu.dot_dimension_numbers<[1], [0], [0], [1], [0, 0, 1, 1], [], []>} : vector<1x16xf32>, vector<16x64xf32>, vector<1x64xf32> -> vector<1x64xf32>
    %23 = arith.addf %21, %22 : vector<1x64xf32>
    %24 = vector.extract_strided_slice %23 {offsets = [0, 0], sizes = [1, 16], strides = [1, 1]} : vector<1x64xf32> to vector<1x16xf32>
    %25 = arith.negf %24 : vector<1x16xf32>
    %26 = math.exp %25 : vector<1x16xf32>
    %cst_27 = arith.constant 1.000000e+00 : f32
    %27 = vector.broadcast %cst_27 : f32 to vector<1x16xf32>
    %28 = arith.addf %27, %26 : vector<1x16xf32>
    %29 = arith.divf %27, %28 : vector<1x16xf32>
    %30 = vector.extract_strided_slice %23 {offsets = [0, 16], sizes = [1, 16], strides = [1, 1]} : vector<1x64xf32> to vector<1x16xf32>
    %31 = arith.negf %30 : vector<1x16xf32>
    %32 = math.exp %31 : vector<1x16xf32>
    %cst_28 = arith.constant 1.000000e+00 : f32
    %33 = vector.broadcast %cst_28 : f32 to vector<1x16xf32>
    %34 = arith.addf %33, %32 : vector<1x16xf32>
    %35 = arith.divf %33, %34 : vector<1x16xf32>
    %36 = vector.extract_strided_slice %23 {offsets = [0, 32], sizes = [1, 16], strides = [1, 1]} : vector<1x64xf32> to vector<1x16xf32>
    %37 = math.tanh %36 : vector<1x16xf32>
    %38 = vector.extract_strided_slice %23 {offsets = [0, 48], sizes = [1, 16], strides = [1, 1]} : vector<1x64xf32> to vector<1x16xf32>
    %39 = arith.negf %38 : vector<1x16xf32>
    %40 = math.exp %39 : vector<1x16xf32>
    %cst_29 = arith.constant 1.000000e+00 : f32
    %41 = vector.broadcast %cst_29 : f32 to vector<1x16xf32>
    %42 = arith.addf %41, %40 : vector<1x16xf32>
    %43 = arith.divf %41, %42 : vector<1x16xf32>
    %44 = arith.mulf %35, %16 : vector<1x16xf32>
    %45 = arith.mulf %29, %37 : vector<1x16xf32>
    %46 = arith.addf %44, %45 : vector<1x16xf32>
    %47 = math.tanh %46 : vector<1x16xf32>
    %48 = arith.mulf %43, %47 : vector<1x16xf32>
    %49 = arith.index_cast %c0_i32 : i32 to index
    %c0_30 = arith.constant 0 : index
    %50 = vector.load %arg20[%49, %c0_30] : memref<8x16xf32, #tpu.memory_space<vmem>>, vector<1x16xf32>
    tpu.vector_store %arg20[%49, %c0_30], %48 {strides = array<i32>} : memref<8x16xf32, #tpu.memory_space<vmem>>, vector<1x16xf32>,
    %51 = arith.index_cast %19 : i32 to index
    %c0_31 = arith.constant 0 : index
    %52 = vector.load %arg19[%51, %c0_31] : memref<8x64xf32, #tpu.memory_space<vmem>>, vector<1x64xf32>
    %cst_32 = arith.constant dense<0.000000e+00> : vector<1x64xf32>
    %53 = tpu.matmul %17, %14, %cst_32 {dimension_numbers = #tpu.dot_dimension_numbers<[1], [0], [0], [1], [0, 0, 1, 1], [], []>} : vector<1x16xf32>, vector<16x64xf32>, vector<1x64xf32> -> vector<1x64xf32>
    %54 = arith.addf %52, %53 : vector<1x64xf32>
    %55 = vector.extract_strided_slice %54 {offsets = [0, 0], sizes = [1, 16], strides = [1, 1]} : vector<1x64xf32> to vector<1x16xf32>
    %56 = arith.negf %55 : vector<1x16xf32>
    %57 = math.exp %56 : vector<1x16xf32>
    %cst_33 = arith.constant 1.000000e+00 : f32
    %58 = vector.broadcast %cst_33 : f32 to vector<1x16xf32>
    %59 = arith.addf %58, %57 : vector<1x16xf32>
    %60 = arith.divf %58, %59 : vector<1x16xf32>
    %61 = vector.extract_strided_slice %54 {offsets = [0, 16], sizes = [1, 16], strides = [1, 1]} : vector<1x64xf32> to vector<1x16xf32>
    %62 = arith.negf %61 : vector<1x16xf32>
    %63 = math.exp %62 : vector<1x16xf32>
    %cst_34 = arith.constant 1.000000e+00 : f32
    %64 = vector.broadcast %cst_34 : f32 to vector<1x16xf32>
    %65 = arith.addf %64, %63 : vector<1x16xf32>
    %66 = arith.divf %64, %65 : vector<1x16xf32>
    %67 = vector.extract_strided_slice %54 {offsets = [0, 32], sizes = [1, 16], strides = [1, 1]} : vector<1x64xf32> to vector<1x16xf32>
    %68 = math.tanh %67 : vector<1x16xf32>
    %69 = vector.extract_strided_slice %54 {offsets = [0, 48], sizes = [1, 16], strides = [1, 1]} : vector<1x64xf32> to vector<1x16xf32>
    %70 = arith.negf %69 : vector<1x16xf32>
    %71 = math.exp %70 : vector<1x16xf32>
    %cst_35 = arith.constant 1.000000e+00 : f32
    %72 = vector.broadcast %cst_35 : f32 to vector<1x16xf32>
    %73 = arith.addf %72, %71 : vector<1x16xf32>
    %74 = arith.divf %72, %73 : vector<1x16xf32>
    %75 = arith.mulf %66, %18 : vector<1x16xf32>
    %76 = arith.mulf %60, %68 : vector<1x16xf32>
    %77 = arith.addf %75, %76 : vector<1x16xf32>
    %78 = math.tanh %77 : vector<1x16xf32>
    %79 = arith.mulf %74, %78 : vector<1x16xf32>
    %80 = arith.index_cast %19 : i32 to index
    %c0_36 = arith.constant 0 : index
    %81 = vector.load %arg21[%80, %c0_36] : memref<8x16xf32, #tpu.memory_space<vmem>>, vector<1x16xf32>
    tpu.vector_store %arg21[%80, %c0_36], %79 {strides = array<i32>} : memref<8x16xf32, #tpu.memory_space<vmem>>, vector<1x16xf32>,
    %c1_i32 = arith.constant 1 : i32
    %c7_i32_37 = arith.constant 7 : i32
    %82 = arith.subi %c7_i32_37, %c1_i32 : i32
    %83 = arith.index_cast %c1_i32 : i32 to index
    %c0_38 = arith.constant 0 : index
    %84 = vector.load %arg18[%83, %c0_38] : memref<8x64xf32, #tpu.memory_space<vmem>>, vector<1x64xf32>
    %cst_39 = arith.constant dense<0.000000e+00> : vector<1x64xf32>
    %85 = tpu.matmul %48, %13, %cst_39 {dimension_numbers = #tpu.dot_dimension_numbers<[1], [0], [0], [1], [0, 0, 1, 1], [], []>} : vector<1x16xf32>, vector<16x64xf32>, vector<1x64xf32> -> vector<1x64xf32>
    %86 = arith.addf %84, %85 : vector<1x64xf32>
    %87 = vector.extract_strided_slice %86 {offsets = [0, 0], sizes = [1, 16], strides = [1, 1]} : vector<1x64xf32> to vector<1x16xf32>
    %88 = arith.negf %87 : vector<1x16xf32>
    %89 = math.exp %88 : vector<1x16xf32>
    %cst_40 = arith.constant 1.000000e+00 : f32
    %90 = vector.broadcast %cst_40 : f32 to vector<1x16xf32>
    %91 = arith.addf %90, %89 : vector<1x16xf32>
    %92 = arith.divf %90, %91 : vector<1x16xf32>
    %93 = vector.extract_strided_slice %86 {offsets = [0, 16], sizes = [1, 16], strides = [1, 1]} : vector<1x64xf32> to vector<1x16xf32>
    %94 = arith.negf %93 : vector<1x16xf32>
    %95 = math.exp %94 : vector<1x16xf32>
    %cst_41 = arith.constant 1.000000e+00 : f32
    %96 = vector.broadcast %cst_41 : f32 to vector<1x16xf32>
    %97 = arith.addf %96, %95 : vector<1x16xf32>
    %98 = arith.divf %96, %97 : vector<1x16xf32>
    %99 = vector.extract_strided_slice %86 {offsets = [0, 32], sizes = [1, 16], strides = [1, 1]} : vector<1x64xf32> to vector<1x16xf32>
    %100 = math.tanh %99 : vector<1x16xf32>
    %101 = vector.extract_strided_slice %86 {offsets = [0, 48], sizes = [1, 16], strides = [1, 1]} : vector<1x64xf32> to vector<1x16xf32>
    %102 = arith.negf %101 : vector<1x16xf32>
    %103 = math.exp %102 : vector<1x16xf32>
    %cst_42 = arith.constant 1.000000e+00 : f32
    %104 = vector.broadcast %cst_42 : f32 to vector<1x16xf32>
    %105 = arith.addf %104, %103 : vector<1x16xf32>
    %106 = arith.divf %104, %105 : vector<1x16xf32>
    %107 = arith.mulf %98, %46 : vector<1x16xf32>
    %108 = arith.mulf %92, %100 : vector<1x16xf32>
    %109 = arith.addf %107, %108 : vector<1x16xf32>
    %110 = math.tanh %109 : vector<1x16xf32>
    %111 = arith.mulf %106, %110 : vector<1x16xf32>
    %112 = arith.index_cast %c1_i32 : i32 to index
    %c0_43 = arith.constant 0 : index
    %113 = vector.load %arg20[%112, %c0_43] : memref<8x16xf32, #tpu.memory_space<vmem>>, vector<1x16xf32>
    tpu.vector_store %arg20[%112, %c0_43], %111 {strides = array<i32>} : memref<8x16xf32, #tpu.memory_space<vmem>>, vector<1x16xf32>,
    %114 = arith.index_cast %82 : i32 to index
    %c0_44 = arith.constant 0 : index
    %115 = vector.load %arg19[%114, %c0_44] : memref<8x64xf32, #tpu.memory_space<vmem>>, vector<1x64xf32>
    %cst_45 = arith.constant dense<0.000000e+00> : vector<1x64xf32>
    %116 = tpu.matmul %79, %14, %cst_45 {dimension_numbers = #tpu.dot_dimension_numbers<[1], [0], [0], [1], [0, 0, 1, 1], [], []>} : vector<1x16xf32>, vector<16x64xf32>, vector<1x64xf32> -> vector<1x64xf32>
    %117 = arith.addf %115, %116 : vector<1x64xf32>
    %118 = vector.extract_strided_slice %117 {offsets = [0, 0], sizes = [1, 16], strides = [1, 1]} : vector<1x64xf32> to vector<1x16xf32>
    %119 = arith.negf %118 : vector<1x16xf32>
    %120 = math.exp %119 : vector<1x16xf32>
    %cst_46 = arith.constant 1.000000e+00 : f32
    %121 = vector.broadcast %cst_46 : f32 to vector<1x16xf32>
    %122 = arith.addf %121, %120 : vector<1x16xf32>
    %123 = arith.divf %121, %122 : vector<1x16xf32>
    %124 = vector.extract_strided_slice %117 {offsets = [0, 16], sizes = [1, 16], strides = [1, 1]} : vector<1x64xf32> to vector<1x16xf32>
    %125 = arith.negf %124 : vector<1x16xf32>
    %126 = math.exp %125 : vector<1x16xf32>
    %cst_47 = arith.constant 1.000000e+00 : f32
    %127 = vector.broadcast %cst_47 : f32 to vector<1x16xf32>
    %128 = arith.addf %127, %126 : vector<1x16xf32>
    %129 = arith.divf %127, %128 : vector<1x16xf32>
    %130 = vector.extract_strided_slice %117 {offsets = [0, 32], sizes = [1, 16], strides = [1, 1]} : vector<1x64xf32> to vector<1x16xf32>
    %131 = math.tanh %130 : vector<1x16xf32>
    %132 = vector.extract_strided_slice %117 {offsets = [0, 48], sizes = [1, 16], strides = [1, 1]} : vector<1x64xf32> to vector<1x16xf32>
    %133 = arith.negf %132 : vector<1x16xf32>
    %134 = math.exp %133 : vector<1x16xf32>
    %cst_48 = arith.constant 1.000000e+00 : f32
    %135 = vector.broadcast %cst_48 : f32 to vector<1x16xf32>
    %136 = arith.addf %135, %134 : vector<1x16xf32>
    %137 = arith.divf %135, %136 : vector<1x16xf32>
    %138 = arith.mulf %129, %77 : vector<1x16xf32>
    %139 = arith.mulf %123, %131 : vector<1x16xf32>
    %140 = arith.addf %138, %139 : vector<1x16xf32>
    %141 = math.tanh %140 : vector<1x16xf32>
    %142 = arith.mulf %137, %141 : vector<1x16xf32>
    %143 = arith.index_cast %82 : i32 to index
    %c0_49 = arith.constant 0 : index
    %144 = vector.load %arg21[%143, %c0_49] : memref<8x16xf32, #tpu.memory_space<vmem>>, vector<1x16xf32>
    tpu.vector_store %arg21[%143, %c0_49], %142 {strides = array<i32>} : memref<8x16xf32, #tpu.memory_space<vmem>>, vector<1x16xf32>,
    %c2_i32 = arith.constant 2 : i32
    %c7_i32_50 = arith.constant 7 : i32
    %145 = arith.subi %c7_i32_50, %c2_i32 : i32
    %146 = arith.index_cast %c2_i32 : i32 to index
    %c0_51 = arith.constant 0 : index
    %147 = vector.load %arg18[%146, %c0_51] : memref<8x64xf32, #tpu.memory_space<vmem>>, vector<1x64xf32>
    %cst_52 = arith.constant dense<0.000000e+00> : vector<1x64xf32>
    %148 = tpu.matmul %111, %13, %cst_52 {dimension_numbers = #tpu.dot_dimension_numbers<[1], [0], [0], [1], [0, 0, 1, 1], [], []>} : vector<1x16xf32>, vector<16x64xf32>, vector<1x64xf32> -> vector<1x64xf32>
    %149 = arith.addf %147, %148 : vector<1x64xf32>
    %150 = vector.extract_strided_slice %149 {offsets = [0, 0], sizes = [1, 16], strides = [1, 1]} : vector<1x64xf32> to vector<1x16xf32>
    %151 = arith.negf %150 : vector<1x16xf32>
    %152 = math.exp %151 : vector<1x16xf32>
    %cst_53 = arith.constant 1.000000e+00 : f32
    %153 = vector.broadcast %cst_53 : f32 to vector<1x16xf32>
    %154 = arith.addf %153, %152 : vector<1x16xf32>
    %155 = arith.divf %153, %154 : vector<1x16xf32>
    %156 = vector.extract_strided_slice %149 {offsets = [0, 16], sizes = [1, 16], strides = [1, 1]} : vector<1x64xf32> to vector<1x16xf32>
    %157 = arith.negf %156 : vector<1x16xf32>
    %158 = math.exp %157 : vector<1x16xf32>
    %cst_54 = arith.constant 1.000000e+00 : f32
    %159 = vector.broadcast %cst_54 : f32 to vector<1x16xf32>
    %160 = arith.addf %159, %158 : vector<1x16xf32>
    %161 = arith.divf %159, %160 : vector<1x16xf32>
    %162 = vector.extract_strided_slice %149 {offsets = [0, 32], sizes = [1, 16], strides = [1, 1]} : vector<1x64xf32> to vector<1x16xf32>
    %163 = math.tanh %162 : vector<1x16xf32>
    %164 = vector.extract_strided_slice %149 {offsets = [0, 48], sizes = [1, 16], strides = [1, 1]} : vector<1x64xf32> to vector<1x16xf32>
    %165 = arith.negf %164 : vector<1x16xf32>
    %166 = math.exp %165 : vector<1x16xf32>
    %cst_55 = arith.constant 1.000000e+00 : f32
    %167 = vector.broadcast %cst_55 : f32 to vector<1x16xf32>
    %168 = arith.addf %167, %166 : vector<1x16xf32>
    %169 = arith.divf %167, %168 : vector<1x16xf32>
    %170 = arith.mulf %161, %109 : vector<1x16xf32>
    %171 = arith.mulf %155, %163 : vector<1x16xf32>
    %172 = arith.addf %170, %171 : vector<1x16xf32>
    %173 = math.tanh %172 : vector<1x16xf32>
    %174 = arith.mulf %169, %173 : vector<1x16xf32>
    %175 = arith.index_cast %c2_i32 : i32 to index
    %c0_56 = arith.constant 0 : index
    %176 = vector.load %arg20[%175, %c0_56] : memref<8x16xf32, #tpu.memory_space<vmem>>, vector<1x16xf32>
    tpu.vector_store %arg20[%175, %c0_56], %174 {strides = array<i32>} : memref<8x16xf32, #tpu.memory_space<vmem>>, vector<1x16xf32>,
    %177 = arith.index_cast %145 : i32 to index
    %c0_57 = arith.constant 0 : index
    %178 = vector.load %arg19[%177, %c0_57] : memref<8x64xf32, #tpu.memory_space<vmem>>, vector<1x64xf32>
    %cst_58 = arith.constant dense<0.000000e+00> : vector<1x64xf32>
    %179 = tpu.matmul %142, %14, %cst_58 {dimension_numbers = #tpu.dot_dimension_numbers<[1], [0], [0], [1], [0, 0, 1, 1], [], []>} : vector<1x16xf32>, vector<16x64xf32>, vector<1x64xf32> -> vector<1x64xf32>
    %180 = arith.addf %178, %179 : vector<1x64xf32>
    %181 = vector.extract_strided_slice %180 {offsets = [0, 0], sizes = [1, 16], strides = [1, 1]} : vector<1x64xf32> to vector<1x16xf32>
    %182 = arith.negf %181 : vector<1x16xf32>
    %183 = math.exp %182 : vector<1x16xf32>
    %cst_59 = arith.constant 1.000000e+00 : f32
    %184 = vector.broadcast %cst_59 : f32 to vector<1x16xf32>
    %185 = arith.addf %184, %183 : vector<1x16xf32>
    %186 = arith.divf %184, %185 : vector<1x16xf32>
    %187 = vector.extract_strided_slice %180 {offsets = [0, 16], sizes = [1, 16], strides = [1, 1]} : vector<1x64xf32> to vector<1x16xf32>
    %188 = arith.negf %187 : vector<1x16xf32>
    %189 = math.exp %188 : vector<1x16xf32>
    %cst_60 = arith.constant 1.000000e+00 : f32
    %190 = vector.broadcast %cst_60 : f32 to vector<1x16xf32>
    %191 = arith.addf %190, %189 : vector<1x16xf32>
    %192 = arith.divf %190, %191 : vector<1x16xf32>
    %193 = vector.extract_strided_slice %180 {offsets = [0, 32], sizes = [1, 16], strides = [1, 1]} : vector<1x64xf32> to vector<1x16xf32>
    %194 = math.tanh %193 : vector<1x16xf32>
    %195 = vector.extract_strided_slice %180 {offsets = [0, 48], sizes = [1, 16], strides = [1, 1]} : vector<1x64xf32> to vector<1x16xf32>
    %196 = arith.negf %195 : vector<1x16xf32>
    %197 = math.exp %196 : vector<1x16xf32>
    %cst_61 = arith.constant 1.000000e+00 : f32
    %198 = vector.broadcast %cst_61 : f32 to vector<1x16xf32>
    %199 = arith.addf %198, %197 : vector<1x16xf32>
    %200 = arith.divf %198, %199 : vector<1x16xf32>
    %201 = arith.mulf %192, %140 : vector<1x16xf32>
    %202 = arith.mulf %186, %194 : vector<1x16xf32>
    %203 = arith.addf %201, %202 : vector<1x16xf32>
    %204 = math.tanh %203 : vector<1x16xf32>
    %205 = arith.mulf %200, %204 : vector<1x16xf32>
    %206 = arith.index_cast %145 : i32 to index
    %c0_62 = arith.constant 0 : index
    %207 = vector.load %arg21[%206, %c0_62] : memref<8x16xf32, #tpu.memory_space<vmem>>, vector<1x16xf32>
    tpu.vector_store %arg21[%206, %c0_62], %205 {strides = array<i32>} : memref<8x16xf32, #tpu.memory_space<vmem>>, vector<1x16xf32>,
    %c3_i32 = arith.constant 3 : i32
    %c7_i32_63 = arith.constant 7 : i32
    %208 = arith.subi %c7_i32_63, %c3_i32 : i32
    %209 = arith.index_cast %c3_i32 : i32 to index
    %c0_64 = arith.constant 0 : index
    %210 = vector.load %arg18[%209, %c0_64] : memref<8x64xf32, #tpu.memory_space<vmem>>, vector<1x64xf32>
    %cst_65 = arith.constant dense<0.000000e+00> : vector<1x64xf32>
    %211 = tpu.matmul %174, %13, %cst_65 {dimension_numbers = #tpu.dot_dimension_numbers<[1], [0], [0], [1], [0, 0, 1, 1], [], []>} : vector<1x16xf32>, vector<16x64xf32>, vector<1x64xf32> -> vector<1x64xf32>
    %212 = arith.addf %210, %211 : vector<1x64xf32>
    %213 = vector.extract_strided_slice %212 {offsets = [0, 0], sizes = [1, 16], strides = [1, 1]} : vector<1x64xf32> to vector<1x16xf32>
    %214 = arith.negf %213 : vector<1x16xf32>
    %215 = math.exp %214 : vector<1x16xf32>
    %cst_66 = arith.constant 1.000000e+00 : f32
    %216 = vector.broadcast %cst_66 : f32 to vector<1x16xf32>
    %217 = arith.addf %216, %215 : vector<1x16xf32>
    %218 = arith.divf %216, %217 : vector<1x16xf32>
    %219 = vector.extract_strided_slice %212 {offsets = [0, 16], sizes = [1, 16], strides = [1, 1]} : vector<1x64xf32> to vector<1x16xf32>
    %220 = arith.negf %219 : vector<1x16xf32>
    %221 = math.exp %220 : vector<1x16xf32>
    %cst_67 = arith.constant 1.000000e+00 : f32
    %222 = vector.broadcast %cst_67 : f32 to vector<1x16xf32>
    %223 = arith.addf %222, %221 : vector<1x16xf32>
    %224 = arith.divf %222, %223 : vector<1x16xf32>
    %225 = vector.extract_strided_slice %212 {offsets = [0, 32], sizes = [1, 16], strides = [1, 1]} : vector<1x64xf32> to vector<1x16xf32>
    %226 = math.tanh %225 : vector<1x16xf32>
    %227 = vector.extract_strided_slice %212 {offsets = [0, 48], sizes = [1, 16], strides = [1, 1]} : vector<1x64xf32> to vector<1x16xf32>
    %228 = arith.negf %227 : vector<1x16xf32>
    %229 = math.exp %228 : vector<1x16xf32>
    %cst_68 = arith.constant 1.000000e+00 : f32
    %230 = vector.broadcast %cst_68 : f32 to vector<1x16xf32>
    %231 = arith.addf %230, %229 : vector<1x16xf32>
    %232 = arith.divf %230, %231 : vector<1x16xf32>
    %233 = arith.mulf %224, %172 : vector<1x16xf32>
    %234 = arith.mulf %218, %226 : vector<1x16xf32>
    %235 = arith.addf %233, %234 : vector<1x16xf32>
    %236 = math.tanh %235 : vector<1x16xf32>
    %237 = arith.mulf %232, %236 : vector<1x16xf32>
    %238 = arith.index_cast %c3_i32 : i32 to index
    %c0_69 = arith.constant 0 : index
    %239 = vector.load %arg20[%238, %c0_69] : memref<8x16xf32, #tpu.memory_space<vmem>>, vector<1x16xf32>
    tpu.vector_store %arg20[%238, %c0_69], %237 {strides = array<i32>} : memref<8x16xf32, #tpu.memory_space<vmem>>, vector<1x16xf32>,
    %240 = arith.index_cast %208 : i32 to index
    %c0_70 = arith.constant 0 : index
    %241 = vector.load %arg19[%240, %c0_70] : memref<8x64xf32, #tpu.memory_space<vmem>>, vector<1x64xf32>
    %cst_71 = arith.constant dense<0.000000e+00> : vector<1x64xf32>
    %242 = tpu.matmul %205, %14, %cst_71 {dimension_numbers = #tpu.dot_dimension_numbers<[1], [0], [0], [1], [0, 0, 1, 1], [], []>} : vector<1x16xf32>, vector<16x64xf32>, vector<1x64xf32> -> vector<1x64xf32>
    %243 = arith.addf %241, %242 : vector<1x64xf32>
    %244 = vector.extract_strided_slice %243 {offsets = [0, 0], sizes = [1, 16], strides = [1, 1]} : vector<1x64xf32> to vector<1x16xf32>
    %245 = arith.negf %244 : vector<1x16xf32>
    %246 = math.exp %245 : vector<1x16xf32>
    %cst_72 = arith.constant 1.000000e+00 : f32
    %247 = vector.broadcast %cst_72 : f32 to vector<1x16xf32>
    %248 = arith.addf %247, %246 : vector<1x16xf32>
    %249 = arith.divf %247, %248 : vector<1x16xf32>
    %250 = vector.extract_strided_slice %243 {offsets = [0, 16], sizes = [1, 16], strides = [1, 1]} : vector<1x64xf32> to vector<1x16xf32>
    %251 = arith.negf %250 : vector<1x16xf32>
    %252 = math.exp %251 : vector<1x16xf32>
    %cst_73 = arith.constant 1.000000e+00 : f32
    %253 = vector.broadcast %cst_73 : f32 to vector<1x16xf32>
    %254 = arith.addf %253, %252 : vector<1x16xf32>
    %255 = arith.divf %253, %254 : vector<1x16xf32>
    %256 = vector.extract_strided_slice %243 {offsets = [0, 32], sizes = [1, 16], strides = [1, 1]} : vector<1x64xf32> to vector<1x16xf32>
    %257 = math.tanh %256 : vector<1x16xf32>
    %258 = vector.extract_strided_slice %243 {offsets = [0, 48], sizes = [1, 16], strides = [1, 1]} : vector<1x64xf32> to vector<1x16xf32>
    %259 = arith.negf %258 : vector<1x16xf32>
    %260 = math.exp %259 : vector<1x16xf32>
    %cst_74 = arith.constant 1.000000e+00 : f32
    %261 = vector.broadcast %cst_74 : f32 to vector<1x16xf32>
    %262 = arith.addf %261, %260 : vector<1x16xf32>
    %263 = arith.divf %261, %262 : vector<1x16xf32>
    %264 = arith.mulf %255, %203 : vector<1x16xf32>
    %265 = arith.mulf %249, %257 : vector<1x16xf32>
    %266 = arith.addf %264, %265 : vector<1x16xf32>
    %267 = math.tanh %266 : vector<1x16xf32>
    %268 = arith.mulf %263, %267 : vector<1x16xf32>
    %269 = arith.index_cast %208 : i32 to index
    %c0_75 = arith.constant 0 : index
    %270 = vector.load %arg21[%269, %c0_75] : memref<8x16xf32, #tpu.memory_space<vmem>>, vector<1x16xf32>
    tpu.vector_store %arg21[%269, %c0_75], %268 {strides = array<i32>} : memref<8x16xf32, #tpu.memory_space<vmem>>, vector<1x16xf32>,
    %c4_i32 = arith.constant 4 : i32
    %c7_i32_76 = arith.constant 7 : i32
    %271 = arith.subi %c7_i32_76, %c4_i32 : i32
    %272 = arith.index_cast %c4_i32 : i32 to index
    %c0_77 = arith.constant 0 : index
    %273 = vector.load %arg18[%272, %c0_77] : memref<8x64xf32, #tpu.memory_space<vmem>>, vector<1x64xf32>
    %cst_78 = arith.constant dense<0.000000e+00> : vector<1x64xf32>
    %274 = tpu.matmul %237, %13, %cst_78 {dimension_numbers = #tpu.dot_dimension_numbers<[1], [0], [0], [1], [0, 0, 1, 1], [], []>} : vector<1x16xf32>, vector<16x64xf32>, vector<1x64xf32> -> vector<1x64xf32>
    %275 = arith.addf %273, %274 : vector<1x64xf32>
    %276 = vector.extract_strided_slice %275 {offsets = [0, 0], sizes = [1, 16], strides = [1, 1]} : vector<1x64xf32> to vector<1x16xf32>
    %277 = arith.negf %276 : vector<1x16xf32>
    %278 = math.exp %277 : vector<1x16xf32>
    %cst_79 = arith.constant 1.000000e+00 : f32
    %279 = vector.broadcast %cst_79 : f32 to vector<1x16xf32>
    %280 = arith.addf %279, %278 : vector<1x16xf32>
    %281 = arith.divf %279, %280 : vector<1x16xf32>
    %282 = vector.extract_strided_slice %275 {offsets = [0, 16], sizes = [1, 16], strides = [1, 1]} : vector<1x64xf32> to vector<1x16xf32>
    %283 = arith.negf %282 : vector<1x16xf32>
    %284 = math.exp %283 : vector<1x16xf32>
    %cst_80 = arith.constant 1.000000e+00 : f32
    %285 = vector.broadcast %cst_80 : f32 to vector<1x16xf32>
    %286 = arith.addf %285, %284 : vector<1x16xf32>
    %287 = arith.divf %285, %286 : vector<1x16xf32>
    %288 = vector.extract_strided_slice %275 {offsets = [0, 32], sizes = [1, 16], strides = [1, 1]} : vector<1x64xf32> to vector<1x16xf32>
    %289 = math.tanh %288 : vector<1x16xf32>
    %290 = vector.extract_strided_slice %275 {offsets = [0, 48], sizes = [1, 16], strides = [1, 1]} : vector<1x64xf32> to vector<1x16xf32>
    %291 = arith.negf %290 : vector<1x16xf32>
    %292 = math.exp %291 : vector<1x16xf32>
    %cst_81 = arith.constant 1.000000e+00 : f32
    %293 = vector.broadcast %cst_81 : f32 to vector<1x16xf32>
    %294 = arith.addf %293, %292 : vector<1x16xf32>
    %295 = arith.divf %293, %294 : vector<1x16xf32>
    %296 = arith.mulf %287, %235 : vector<1x16xf32>
    %297 = arith.mulf %281, %289 : vector<1x16xf32>
    %298 = arith.addf %296, %297 : vector<1x16xf32>
    %299 = math.tanh %298 : vector<1x16xf32>
    %300 = arith.mulf %295, %299 : vector<1x16xf32>
    %301 = arith.index_cast %c4_i32 : i32 to index
    %c0_82 = arith.constant 0 : index
    %302 = vector.load %arg20[%301, %c0_82] : memref<8x16xf32, #tpu.memory_space<vmem>>, vector<1x16xf32>
    tpu.vector_store %arg20[%301, %c0_82], %300 {strides = array<i32>} : memref<8x16xf32, #tpu.memory_space<vmem>>, vector<1x16xf32>,
    %303 = arith.index_cast %271 : i32 to index
    %c0_83 = arith.constant 0 : index
    %304 = vector.load %arg19[%303, %c0_83] : memref<8x64xf32, #tpu.memory_space<vmem>>, vector<1x64xf32>
    %cst_84 = arith.constant dense<0.000000e+00> : vector<1x64xf32>
    %305 = tpu.matmul %268, %14, %cst_84 {dimension_numbers = #tpu.dot_dimension_numbers<[1], [0], [0], [1], [0, 0, 1, 1], [], []>} : vector<1x16xf32>, vector<16x64xf32>, vector<1x64xf32> -> vector<1x64xf32>
    %306 = arith.addf %304, %305 : vector<1x64xf32>
    %307 = vector.extract_strided_slice %306 {offsets = [0, 0], sizes = [1, 16], strides = [1, 1]} : vector<1x64xf32> to vector<1x16xf32>
    %308 = arith.negf %307 : vector<1x16xf32>
    %309 = math.exp %308 : vector<1x16xf32>
    %cst_85 = arith.constant 1.000000e+00 : f32
    %310 = vector.broadcast %cst_85 : f32 to vector<1x16xf32>
    %311 = arith.addf %310, %309 : vector<1x16xf32>
    %312 = arith.divf %310, %311 : vector<1x16xf32>
    %313 = vector.extract_strided_slice %306 {offsets = [0, 16], sizes = [1, 16], strides = [1, 1]} : vector<1x64xf32> to vector<1x16xf32>
    %314 = arith.negf %313 : vector<1x16xf32>
    %315 = math.exp %314 : vector<1x16xf32>
    %cst_86 = arith.constant 1.000000e+00 : f32
    %316 = vector.broadcast %cst_86 : f32 to vector<1x16xf32>
    %317 = arith.addf %316, %315 : vector<1x16xf32>
    %318 = arith.divf %316, %317 : vector<1x16xf32>
    %319 = vector.extract_strided_slice %306 {offsets = [0, 32], sizes = [1, 16], strides = [1, 1]} : vector<1x64xf32> to vector<1x16xf32>
    %320 = math.tanh %319 : vector<1x16xf32>
    %321 = vector.extract_strided_slice %306 {offsets = [0, 48], sizes = [1, 16], strides = [1, 1]} : vector<1x64xf32> to vector<1x16xf32>
    %322 = arith.negf %321 : vector<1x16xf32>
    %323 = math.exp %322 : vector<1x16xf32>
    %cst_87 = arith.constant 1.000000e+00 : f32
    %324 = vector.broadcast %cst_87 : f32 to vector<1x16xf32>
    %325 = arith.addf %324, %323 : vector<1x16xf32>
    %326 = arith.divf %324, %325 : vector<1x16xf32>
    %327 = arith.mulf %318, %266 : vector<1x16xf32>
    %328 = arith.mulf %312, %320 : vector<1x16xf32>
    %329 = arith.addf %327, %328 : vector<1x16xf32>
    %330 = math.tanh %329 : vector<1x16xf32>
    %331 = arith.mulf %326, %330 : vector<1x16xf32>
    %332 = arith.index_cast %271 : i32 to index
    %c0_88 = arith.constant 0 : index
    %333 = vector.load %arg21[%332, %c0_88] : memref<8x16xf32, #tpu.memory_space<vmem>>, vector<1x16xf32>
    tpu.vector_store %arg21[%332, %c0_88], %331 {strides = array<i32>} : memref<8x16xf32, #tpu.memory_space<vmem>>, vector<1x16xf32>,
    %c5_i32 = arith.constant 5 : i32
    %c7_i32_89 = arith.constant 7 : i32
    %334 = arith.subi %c7_i32_89, %c5_i32 : i32
    %335 = arith.index_cast %c5_i32 : i32 to index
    %c0_90 = arith.constant 0 : index
    %336 = vector.load %arg18[%335, %c0_90] : memref<8x64xf32, #tpu.memory_space<vmem>>, vector<1x64xf32>
    %cst_91 = arith.constant dense<0.000000e+00> : vector<1x64xf32>
    %337 = tpu.matmul %300, %13, %cst_91 {dimension_numbers = #tpu.dot_dimension_numbers<[1], [0], [0], [1], [0, 0, 1, 1], [], []>} : vector<1x16xf32>, vector<16x64xf32>, vector<1x64xf32> -> vector<1x64xf32>
    %338 = arith.addf %336, %337 : vector<1x64xf32>
    %339 = vector.extract_strided_slice %338 {offsets = [0, 0], sizes = [1, 16], strides = [1, 1]} : vector<1x64xf32> to vector<1x16xf32>
    %340 = arith.negf %339 : vector<1x16xf32>
    %341 = math.exp %340 : vector<1x16xf32>
    %cst_92 = arith.constant 1.000000e+00 : f32
    %342 = vector.broadcast %cst_92 : f32 to vector<1x16xf32>
    %343 = arith.addf %342, %341 : vector<1x16xf32>
    %344 = arith.divf %342, %343 : vector<1x16xf32>
    %345 = vector.extract_strided_slice %338 {offsets = [0, 16], sizes = [1, 16], strides = [1, 1]} : vector<1x64xf32> to vector<1x16xf32>
    %346 = arith.negf %345 : vector<1x16xf32>
    %347 = math.exp %346 : vector<1x16xf32>
    %cst_93 = arith.constant 1.000000e+00 : f32
    %348 = vector.broadcast %cst_93 : f32 to vector<1x16xf32>
    %349 = arith.addf %348, %347 : vector<1x16xf32>
    %350 = arith.divf %348, %349 : vector<1x16xf32>
    %351 = vector.extract_strided_slice %338 {offsets = [0, 32], sizes = [1, 16], strides = [1, 1]} : vector<1x64xf32> to vector<1x16xf32>
    %352 = math.tanh %351 : vector<1x16xf32>
    %353 = vector.extract_strided_slice %338 {offsets = [0, 48], sizes = [1, 16], strides = [1, 1]} : vector<1x64xf32> to vector<1x16xf32>
    %354 = arith.negf %353 : vector<1x16xf32>
    %355 = math.exp %354 : vector<1x16xf32>
    %cst_94 = arith.constant 1.000000e+00 : f32
    %356 = vector.broadcast %cst_94 : f32 to vector<1x16xf32>
    %357 = arith.addf %356, %355 : vector<1x16xf32>
    %358 = arith.divf %356, %357 : vector<1x16xf32>
    %359 = arith.mulf %350, %298 : vector<1x16xf32>
    %360 = arith.mulf %344, %352 : vector<1x16xf32>
    %361 = arith.addf %359, %360 : vector<1x16xf32>
    %362 = math.tanh %361 : vector<1x16xf32>
    %363 = arith.mulf %358, %362 : vector<1x16xf32>
    %364 = arith.index_cast %c5_i32 : i32 to index
    %c0_95 = arith.constant 0 : index
    %365 = vector.load %arg20[%364, %c0_95] : memref<8x16xf32, #tpu.memory_space<vmem>>, vector<1x16xf32>
    tpu.vector_store %arg20[%364, %c0_95], %363 {strides = array<i32>} : memref<8x16xf32, #tpu.memory_space<vmem>>, vector<1x16xf32>,
    %366 = arith.index_cast %334 : i32 to index
    %c0_96 = arith.constant 0 : index
    %367 = vector.load %arg19[%366, %c0_96] : memref<8x64xf32, #tpu.memory_space<vmem>>, vector<1x64xf32>
    %cst_97 = arith.constant dense<0.000000e+00> : vector<1x64xf32>
    %368 = tpu.matmul %331, %14, %cst_97 {dimension_numbers = #tpu.dot_dimension_numbers<[1], [0], [0], [1], [0, 0, 1, 1], [], []>} : vector<1x16xf32>, vector<16x64xf32>, vector<1x64xf32> -> vector<1x64xf32>
    %369 = arith.addf %367, %368 : vector<1x64xf32>
    %370 = vector.extract_strided_slice %369 {offsets = [0, 0], sizes = [1, 16], strides = [1, 1]} : vector<1x64xf32> to vector<1x16xf32>
    %371 = arith.negf %370 : vector<1x16xf32>
    %372 = math.exp %371 : vector<1x16xf32>
    %cst_98 = arith.constant 1.000000e+00 : f32
    %373 = vector.broadcast %cst_98 : f32 to vector<1x16xf32>
    %374 = arith.addf %373, %372 : vector<1x16xf32>
    %375 = arith.divf %373, %374 : vector<1x16xf32>
    %376 = vector.extract_strided_slice %369 {offsets = [0, 16], sizes = [1, 16], strides = [1, 1]} : vector<1x64xf32> to vector<1x16xf32>
    %377 = arith.negf %376 : vector<1x16xf32>
    %378 = math.exp %377 : vector<1x16xf32>
    %cst_99 = arith.constant 1.000000e+00 : f32
    %379 = vector.broadcast %cst_99 : f32 to vector<1x16xf32>
    %380 = arith.addf %379, %378 : vector<1x16xf32>
    %381 = arith.divf %379, %380 : vector<1x16xf32>
    %382 = vector.extract_strided_slice %369 {offsets = [0, 32], sizes = [1, 16], strides = [1, 1]} : vector<1x64xf32> to vector<1x16xf32>
    %383 = math.tanh %382 : vector<1x16xf32>
    %384 = vector.extract_strided_slice %369 {offsets = [0, 48], sizes = [1, 16], strides = [1, 1]} : vector<1x64xf32> to vector<1x16xf32>
    %385 = arith.negf %384 : vector<1x16xf32>
    %386 = math.exp %385 : vector<1x16xf32>
    %cst_100 = arith.constant 1.000000e+00 : f32
    %387 = vector.broadcast %cst_100 : f32 to vector<1x16xf32>
    %388 = arith.addf %387, %386 : vector<1x16xf32>
    %389 = arith.divf %387, %388 : vector<1x16xf32>
    %390 = arith.mulf %381, %329 : vector<1x16xf32>
    %391 = arith.mulf %375, %383 : vector<1x16xf32>
    %392 = arith.addf %390, %391 : vector<1x16xf32>
    %393 = math.tanh %392 : vector<1x16xf32>
    %394 = arith.mulf %389, %393 : vector<1x16xf32>
    %395 = arith.index_cast %334 : i32 to index
    %c0_101 = arith.constant 0 : index
    %396 = vector.load %arg21[%395, %c0_101] : memref<8x16xf32, #tpu.memory_space<vmem>>, vector<1x16xf32>
    tpu.vector_store %arg21[%395, %c0_101], %394 {strides = array<i32>} : memref<8x16xf32, #tpu.memory_space<vmem>>, vector<1x16xf32>,
    %c6_i32 = arith.constant 6 : i32
    %c7_i32_102 = arith.constant 7 : i32
    %397 = arith.subi %c7_i32_102, %c6_i32 : i32
    %398 = arith.index_cast %c6_i32 : i32 to index
    %c0_103 = arith.constant 0 : index
    %399 = vector.load %arg18[%398, %c0_103] : memref<8x64xf32, #tpu.memory_space<vmem>>, vector<1x64xf32>
    %cst_104 = arith.constant dense<0.000000e+00> : vector<1x64xf32>
    %400 = tpu.matmul %363, %13, %cst_104 {dimension_numbers = #tpu.dot_dimension_numbers<[1], [0], [0], [1], [0, 0, 1, 1], [], []>} : vector<1x16xf32>, vector<16x64xf32>, vector<1x64xf32> -> vector<1x64xf32>
    %401 = arith.addf %399, %400 : vector<1x64xf32>
    %402 = vector.extract_strided_slice %401 {offsets = [0, 0], sizes = [1, 16], strides = [1, 1]} : vector<1x64xf32> to vector<1x16xf32>
    %403 = arith.negf %402 : vector<1x16xf32>
    %404 = math.exp %403 : vector<1x16xf32>
    %cst_105 = arith.constant 1.000000e+00 : f32
    %405 = vector.broadcast %cst_105 : f32 to vector<1x16xf32>
    %406 = arith.addf %405, %404 : vector<1x16xf32>
    %407 = arith.divf %405, %406 : vector<1x16xf32>
    %408 = vector.extract_strided_slice %401 {offsets = [0, 16], sizes = [1, 16], strides = [1, 1]} : vector<1x64xf32> to vector<1x16xf32>
    %409 = arith.negf %408 : vector<1x16xf32>
    %410 = math.exp %409 : vector<1x16xf32>
    %cst_106 = arith.constant 1.000000e+00 : f32
    %411 = vector.broadcast %cst_106 : f32 to vector<1x16xf32>
    %412 = arith.addf %411, %410 : vector<1x16xf32>
    %413 = arith.divf %411, %412 : vector<1x16xf32>
    %414 = vector.extract_strided_slice %401 {offsets = [0, 32], sizes = [1, 16], strides = [1, 1]} : vector<1x64xf32> to vector<1x16xf32>
    %415 = math.tanh %414 : vector<1x16xf32>
    %416 = vector.extract_strided_slice %401 {offsets = [0, 48], sizes = [1, 16], strides = [1, 1]} : vector<1x64xf32> to vector<1x16xf32>
    %417 = arith.negf %416 : vector<1x16xf32>
    %418 = math.exp %417 : vector<1x16xf32>
    %cst_107 = arith.constant 1.000000e+00 : f32
    %419 = vector.broadcast %cst_107 : f32 to vector<1x16xf32>
    %420 = arith.addf %419, %418 : vector<1x16xf32>
    %421 = arith.divf %419, %420 : vector<1x16xf32>
    %422 = arith.mulf %413, %361 : vector<1x16xf32>
    %423 = arith.mulf %407, %415 : vector<1x16xf32>
    %424 = arith.addf %422, %423 : vector<1x16xf32>
    %425 = math.tanh %424 : vector<1x16xf32>
    %426 = arith.mulf %421, %425 : vector<1x16xf32>
    %427 = arith.index_cast %c6_i32 : i32 to index
    %c0_108 = arith.constant 0 : index
    %428 = vector.load %arg20[%427, %c0_108] : memref<8x16xf32, #tpu.memory_space<vmem>>, vector<1x16xf32>
    tpu.vector_store %arg20[%427, %c0_108], %426 {strides = array<i32>} : memref<8x16xf32, #tpu.memory_space<vmem>>, vector<1x16xf32>,
    %429 = arith.index_cast %397 : i32 to index
    %c0_109 = arith.constant 0 : index
    %430 = vector.load %arg19[%429, %c0_109] : memref<8x64xf32, #tpu.memory_space<vmem>>, vector<1x64xf32>
    %cst_110 = arith.constant dense<0.000000e+00> : vector<1x64xf32>
    %431 = tpu.matmul %394, %14, %cst_110 {dimension_numbers = #tpu.dot_dimension_numbers<[1], [0], [0], [1], [0, 0, 1, 1], [], []>} : vector<1x16xf32>, vector<16x64xf32>, vector<1x64xf32> -> vector<1x64xf32>
    %432 = arith.addf %430, %431 : vector<1x64xf32>
    %433 = vector.extract_strided_slice %432 {offsets = [0, 0], sizes = [1, 16], strides = [1, 1]} : vector<1x64xf32> to vector<1x16xf32>
    %434 = arith.negf %433 : vector<1x16xf32>
    %435 = math.exp %434 : vector<1x16xf32>
    %cst_111 = arith.constant 1.000000e+00 : f32
    %436 = vector.broadcast %cst_111 : f32 to vector<1x16xf32>
    %437 = arith.addf %436, %435 : vector<1x16xf32>
    %438 = arith.divf %436, %437 : vector<1x16xf32>
    %439 = vector.extract_strided_slice %432 {offsets = [0, 16], sizes = [1, 16], strides = [1, 1]} : vector<1x64xf32> to vector<1x16xf32>
    %440 = arith.negf %439 : vector<1x16xf32>
    %441 = math.exp %440 : vector<1x16xf32>
    %cst_112 = arith.constant 1.000000e+00 : f32
    %442 = vector.broadcast %cst_112 : f32 to vector<1x16xf32>
    %443 = arith.addf %442, %441 : vector<1x16xf32>
    %444 = arith.divf %442, %443 : vector<1x16xf32>
    %445 = vector.extract_strided_slice %432 {offsets = [0, 32], sizes = [1, 16], strides = [1, 1]} : vector<1x64xf32> to vector<1x16xf32>
    %446 = math.tanh %445 : vector<1x16xf32>
    %447 = vector.extract_strided_slice %432 {offsets = [0, 48], sizes = [1, 16], strides = [1, 1]} : vector<1x64xf32> to vector<1x16xf32>
    %448 = arith.negf %447 : vector<1x16xf32>
    %449 = math.exp %448 : vector<1x16xf32>
    %cst_113 = arith.constant 1.000000e+00 : f32
    %450 = vector.broadcast %cst_113 : f32 to vector<1x16xf32>
    %451 = arith.addf %450, %449 : vector<1x16xf32>
    %452 = arith.divf %450, %451 : vector<1x16xf32>
    %453 = arith.mulf %444, %392 : vector<1x16xf32>
    %454 = arith.mulf %438, %446 : vector<1x16xf32>
    %455 = arith.addf %453, %454 : vector<1x16xf32>
    %456 = math.tanh %455 : vector<1x16xf32>
    %457 = arith.mulf %452, %456 : vector<1x16xf32>
    %458 = arith.index_cast %397 : i32 to index
    %c0_114 = arith.constant 0 : index
    %459 = vector.load %arg21[%458, %c0_114] : memref<8x16xf32, #tpu.memory_space<vmem>>, vector<1x16xf32>
    tpu.vector_store %arg21[%458, %c0_114], %457 {strides = array<i32>} : memref<8x16xf32, #tpu.memory_space<vmem>>, vector<1x16xf32>,
    %c7_i32_115 = arith.constant 7 : i32
    %c7_i32_116 = arith.constant 7 : i32
    %460 = arith.subi %c7_i32_116, %c7_i32_115 : i32
    %461 = arith.index_cast %c7_i32_115 : i32 to index
    %c0_117 = arith.constant 0 : index
    %462 = vector.load %arg18[%461, %c0_117] : memref<8x64xf32, #tpu.memory_space<vmem>>, vector<1x64xf32>
    %cst_118 = arith.constant dense<0.000000e+00> : vector<1x64xf32>
    %463 = tpu.matmul %426, %13, %cst_118 {dimension_numbers = #tpu.dot_dimension_numbers<[1], [0], [0], [1], [0, 0, 1, 1], [], []>} : vector<1x16xf32>, vector<16x64xf32>, vector<1x64xf32> -> vector<1x64xf32>
    %464 = arith.addf %462, %463 : vector<1x64xf32>
    %465 = vector.extract_strided_slice %464 {offsets = [0, 0], sizes = [1, 16], strides = [1, 1]} : vector<1x64xf32> to vector<1x16xf32>
    %466 = arith.negf %465 : vector<1x16xf32>
    %467 = math.exp %466 : vector<1x16xf32>
    %cst_119 = arith.constant 1.000000e+00 : f32
    %468 = vector.broadcast %cst_119 : f32 to vector<1x16xf32>
    %469 = arith.addf %468, %467 : vector<1x16xf32>
    %470 = arith.divf %468, %469 : vector<1x16xf32>
    %471 = vector.extract_strided_slice %464 {offsets = [0, 16], sizes = [1, 16], strides = [1, 1]} : vector<1x64xf32> to vector<1x16xf32>
    %472 = arith.negf %471 : vector<1x16xf32>
    %473 = math.exp %472 : vector<1x16xf32>
    %cst_120 = arith.constant 1.000000e+00 : f32
    %474 = vector.broadcast %cst_120 : f32 to vector<1x16xf32>
    %475 = arith.addf %474, %473 : vector<1x16xf32>
    %476 = arith.divf %474, %475 : vector<1x16xf32>
    %477 = vector.extract_strided_slice %464 {offsets = [0, 32], sizes = [1, 16], strides = [1, 1]} : vector<1x64xf32> to vector<1x16xf32>
    %478 = math.tanh %477 : vector<1x16xf32>
    %479 = vector.extract_strided_slice %464 {offsets = [0, 48], sizes = [1, 16], strides = [1, 1]} : vector<1x64xf32> to vector<1x16xf32>
    %480 = arith.negf %479 : vector<1x16xf32>
    %481 = math.exp %480 : vector<1x16xf32>
    %cst_121 = arith.constant 1.000000e+00 : f32
    %482 = vector.broadcast %cst_121 : f32 to vector<1x16xf32>
    %483 = arith.addf %482, %481 : vector<1x16xf32>
    %484 = arith.divf %482, %483 : vector<1x16xf32>
    %485 = arith.mulf %476, %424 : vector<1x16xf32>
    %486 = arith.mulf %470, %478 : vector<1x16xf32>
    %487 = arith.addf %485, %486 : vector<1x16xf32>
    %488 = math.tanh %487 : vector<1x16xf32>
    %489 = arith.mulf %484, %488 : vector<1x16xf32>
    %490 = arith.index_cast %c7_i32_115 : i32 to index
    %c0_122 = arith.constant 0 : index
    %491 = vector.load %arg20[%490, %c0_122] : memref<8x16xf32, #tpu.memory_space<vmem>>, vector<1x16xf32>
    tpu.vector_store %arg20[%490, %c0_122], %489 {strides = array<i32>} : memref<8x16xf32, #tpu.memory_space<vmem>>, vector<1x16xf32>,
    %492 = arith.index_cast %460 : i32 to index
    %c0_123 = arith.constant 0 : index
    %493 = vector.load %arg19[%492, %c0_123] : memref<8x64xf32, #tpu.memory_space<vmem>>, vector<1x64xf32>
    %cst_124 = arith.constant dense<0.000000e+00> : vector<1x64xf32>
    %494 = tpu.matmul %457, %14, %cst_124 {dimension_numbers = #tpu.dot_dimension_numbers<[1], [0], [0], [1], [0, 0, 1, 1], [], []>} : vector<1x16xf32>, vector<16x64xf32>, vector<1x64xf32> -> vector<1x64xf32>
    %495 = arith.addf %493, %494 : vector<1x64xf32>
    %496 = vector.extract_strided_slice %495 {offsets = [0, 0], sizes = [1, 16], strides = [1, 1]} : vector<1x64xf32> to vector<1x16xf32>
    %497 = arith.negf %496 : vector<1x16xf32>
    %498 = math.exp %497 : vector<1x16xf32>
    %cst_125 = arith.constant 1.000000e+00 : f32
    %499 = vector.broadcast %cst_125 : f32 to vector<1x16xf32>
    %500 = arith.addf %499, %498 : vector<1x16xf32>
    %501 = arith.divf %499, %500 : vector<1x16xf32>
    %502 = vector.extract_strided_slice %495 {offsets = [0, 16], sizes = [1, 16], strides = [1, 1]} : vector<1x64xf32> to vector<1x16xf32>
    %503 = arith.negf %502 : vector<1x16xf32>
    %504 = math.exp %503 : vector<1x16xf32>
    %cst_126 = arith.constant 1.000000e+00 : f32
    %505 = vector.broadcast %cst_126 : f32 to vector<1x16xf32>
    %506 = arith.addf %505, %504 : vector<1x16xf32>
    %507 = arith.divf %505, %506 : vector<1x16xf32>
    %508 = vector.extract_strided_slice %495 {offsets = [0, 32], sizes = [1, 16], strides = [1, 1]} : vector<1x64xf32> to vector<1x16xf32>
    %509 = math.tanh %508 : vector<1x16xf32>
    %510 = vector.extract_strided_slice %495 {offsets = [0, 48], sizes = [1, 16], strides = [1, 1]} : vector<1x64xf32> to vector<1x16xf32>
    %511 = arith.negf %510 : vector<1x16xf32>
    %512 = math.exp %511 : vector<1x16xf32>
    %cst_127 = arith.constant 1.000000e+00 : f32
    %513 = vector.broadcast %cst_127 : f32 to vector<1x16xf32>
    %514 = arith.addf %513, %512 : vector<1x16xf32>
    %515 = arith.divf %513, %514 : vector<1x16xf32>
    %516 = arith.mulf %507, %455 : vector<1x16xf32>
    %517 = arith.mulf %501, %509 : vector<1x16xf32>
    %518 = arith.addf %516, %517 : vector<1x16xf32>
    %519 = math.tanh %518 : vector<1x16xf32>
    %520 = arith.mulf %515, %519 : vector<1x16xf32>
    %521 = arith.index_cast %460 : i32 to index
    %c0_128 = arith.constant 0 : index
    %522 = vector.load %arg21[%521, %c0_128] : memref<8x16xf32, #tpu.memory_space<vmem>>, vector<1x16xf32>
    tpu.vector_store %arg21[%521, %c0_128], %520 {strides = array<i32>} : memref<8x16xf32, #tpu.memory_space<vmem>>, vector<1x16xf32>,
    %c8_i32 = arith.constant 8 : i32
    %c0_129 = arith.constant 0 : index
    %c0_130 = arith.constant 0 : index
    %523 = vector.load %arg20[%c0_129, %c0_130] : memref<8x16xf32, #tpu.memory_space<vmem>>, vector<8x16xf32>
    %c0_131 = arith.constant 0 : index
    %c0_132 = arith.constant 0 : index
    %524 = vector.load %arg9[%c0_131, %c0_132] : memref<16x5xf32, #tpu.memory_space<vmem>>, vector<16x5xf32>
    %cst_133 = arith.constant dense<0.000000e+00> : vector<8x5xf32>
    %525 = tpu.matmul %523, %524, %cst_133 {dimension_numbers = #tpu.dot_dimension_numbers<[1], [0], [0], [1], [0, 0, 1, 1], [], []>} : vector<8x16xf32>, vector<16x5xf32>, vector<8x5xf32> -> vector<8x5xf32>
    %c0_134 = arith.constant 0 : index
    %c0_135 = arith.constant 0 : index
    %526 = vector.load %arg21[%c0_134, %c0_135] : memref<8x16xf32, #tpu.memory_space<vmem>>, vector<8x16xf32>
    %c0_136 = arith.constant 0 : index
    %c0_137 = arith.constant 0 : index
    %527 = vector.load %arg10[%c0_136, %c0_137] : memref<16x5xf32, #tpu.memory_space<vmem>>, vector<16x5xf32>
    %cst_138 = arith.constant dense<0.000000e+00> : vector<8x5xf32>
    %528 = tpu.matmul %526, %527, %cst_138 {dimension_numbers = #tpu.dot_dimension_numbers<[1], [0], [0], [1], [0, 0, 1, 1], [], []>} : vector<8x16xf32>, vector<16x5xf32>, vector<8x5xf32> -> vector<8x5xf32>
    %529 = arith.addf %525, %528 : vector<8x5xf32>
    %c0_139 = arith.constant 0 : index
    %c0_140 = arith.constant 0 : index
    %530 = vector.load %arg11[%c0_139, %c0_140] : memref<1x5xf32, #tpu.memory_space<vmem>>, vector<1x5xf32>
    %531 = vector.broadcast %530 : vector<1x5xf32> to vector<8x5xf32>
    %532 = arith.addf %529, %531 : vector<8x5xf32>
    %c0_141 = arith.constant 0 : index
    %c0_142 = arith.constant 0 : index
    %533 = vector.load %arg22[%c0_141, %c0_142] : memref<8x5xf32, #tpu.memory_space<vmem>>, vector<8x5xf32>
    tpu.vector_store %arg22[%c0_141, %c0_142], %532 {strides = array<i32>} : memref<8x5xf32, #tpu.memory_space<vmem>>, vector<8x5xf32>,
    %c0_143 = arith.constant 0 : index
    %c0_144 = arith.constant 0 : index
    %534 = vector.load %arg12[%c0_143, %c0_144] : memref<5x5xf32, #tpu.memory_space<vmem>>, vector<5x5xf32>
    %535 = tpu.iota {dimensions = array<i32: 1>} : vector<5x5xi32>
    %536 = tpu.iota {dimensions = array<i32: 1>} : vector<1x5xi32>
    %537 = tpu.iota {dimensions = array<i32: 1>} : vector<1x8xi32>
    %c0_145 = arith.constant 0 : index
    %c0_146 = arith.constant 0 : index
    %538 = vector.load %arg13[%c0_145, %c0_146] : memref<1x5xf32, #tpu.memory_space<vmem>>, vector<1x5xf32>
    %c0_i32_147 = arith.constant 0 : i32
    %539 = vector.broadcast %538 : vector<1x5xf32> to vector<5x5xf32>
    %540 = arith.addf %534, %539 : vector<5x5xf32>
    %cst_148 = arith.constant dense<0xFF800000> : vector<5xf32>
    %541 = vector.multi_reduction <maximumf>, %540, %cst_148 [1] : vector<5x5xf32> to vector<5xf32>
    %542 = vector.shape_cast %541 : vector<5xf32> to vector<5x1xf32>
    %543 = vector.broadcast %542 : vector<5x1xf32> to vector<5x5xf32>
    %544 = arith.cmpf oge, %540, %543 : vector<5x5xf32>
    %c5_i32_149 = arith.constant 5 : i32
    %545 = vector.broadcast %c5_i32_149 : i32 to vector<5x5xi32>
    %546 = arith.select %544, %535, %545 : vector<5x5xi1>, vector<5x5xi32>
    %cst_150 = arith.constant dense<2147483647> : vector<5xi32>
    %547 = vector.multi_reduction <minsi>, %546, %cst_150 [1] : vector<5x5xi32> to vector<5xi32>
    %548 = vector.shape_cast %547 : vector<5xi32> to vector<1x5xi32>
    %549 = arith.index_cast %c0_i32_147 : i32 to index
    %c0_151 = arith.constant 0 : index
    %550 = vector.load %arg23[%549, %c0_151] : memref<8x5xi32, #tpu.memory_space<vmem>>, vector<1x5xi32>
    tpu.vector_store %arg23[%549, %c0_151], %548 {strides = array<i32>} : memref<8x5xi32, #tpu.memory_space<vmem>>, vector<1x5xi32>,
    %551 = arith.index_cast %c0_i32_147 : i32 to index
    %c0_152 = arith.constant 0 : index
    %552 = vector.load %arg22[%551, %c0_152] : memref<8x5xf32, #tpu.memory_space<vmem>>, vector<1x5xf32>
    %553 = vector.shape_cast %541 : vector<5xf32> to vector<1x5xf32>
    %554 = arith.addf %553, %552 : vector<1x5xf32>
    %c1_i32_153 = arith.constant 1 : i32
    %555 = vector.broadcast %554 : vector<1x5xf32> to vector<5x5xf32>
    %556 = arith.addf %534, %555 : vector<5x5xf32>
    %cst_154 = arith.constant dense<0xFF800000> : vector<5xf32>
    %557 = vector.multi_reduction <maximumf>, %556, %cst_154 [1] : vector<5x5xf32> to vector<5xf32>
    %558 = vector.shape_cast %557 : vector<5xf32> to vector<5x1xf32>
    %559 = vector.broadcast %558 : vector<5x1xf32> to vector<5x5xf32>
    %560 = arith.cmpf oge, %556, %559 : vector<5x5xf32>
    %c5_i32_155 = arith.constant 5 : i32
    %561 = vector.broadcast %c5_i32_155 : i32 to vector<5x5xi32>
    %562 = arith.select %560, %535, %561 : vector<5x5xi1>, vector<5x5xi32>
    %cst_156 = arith.constant dense<2147483647> : vector<5xi32>
    %563 = vector.multi_reduction <minsi>, %562, %cst_156 [1] : vector<5x5xi32> to vector<5xi32>
    %564 = vector.shape_cast %563 : vector<5xi32> to vector<1x5xi32>
    %565 = arith.index_cast %c1_i32_153 : i32 to index
    %c0_157 = arith.constant 0 : index
    %566 = vector.load %arg23[%565, %c0_157] : memref<8x5xi32, #tpu.memory_space<vmem>>, vector<1x5xi32>
    tpu.vector_store %arg23[%565, %c0_157], %564 {strides = array<i32>} : memref<8x5xi32, #tpu.memory_space<vmem>>, vector<1x5xi32>,
    %567 = arith.index_cast %c1_i32_153 : i32 to index
    %c0_158 = arith.constant 0 : index
    %568 = vector.load %arg22[%567, %c0_158] : memref<8x5xf32, #tpu.memory_space<vmem>>, vector<1x5xf32>
    %569 = vector.shape_cast %557 : vector<5xf32> to vector<1x5xf32>
    %570 = arith.addf %569, %568 : vector<1x5xf32>
    %c2_i32_159 = arith.constant 2 : i32
    %571 = vector.broadcast %570 : vector<1x5xf32> to vector<5x5xf32>
    %572 = arith.addf %534, %571 : vector<5x5xf32>
    %cst_160 = arith.constant dense<0xFF800000> : vector<5xf32>
    %573 = vector.multi_reduction <maximumf>, %572, %cst_160 [1] : vector<5x5xf32> to vector<5xf32>
    %574 = vector.shape_cast %573 : vector<5xf32> to vector<5x1xf32>
    %575 = vector.broadcast %574 : vector<5x1xf32> to vector<5x5xf32>
    %576 = arith.cmpf oge, %572, %575 : vector<5x5xf32>
    %c5_i32_161 = arith.constant 5 : i32
    %577 = vector.broadcast %c5_i32_161 : i32 to vector<5x5xi32>
    %578 = arith.select %576, %535, %577 : vector<5x5xi1>, vector<5x5xi32>
    %cst_162 = arith.constant dense<2147483647> : vector<5xi32>
    %579 = vector.multi_reduction <minsi>, %578, %cst_162 [1] : vector<5x5xi32> to vector<5xi32>
    %580 = vector.shape_cast %579 : vector<5xi32> to vector<1x5xi32>
    %581 = arith.index_cast %c2_i32_159 : i32 to index
    %c0_163 = arith.constant 0 : index
    %582 = vector.load %arg23[%581, %c0_163] : memref<8x5xi32, #tpu.memory_space<vmem>>, vector<1x5xi32>
    tpu.vector_store %arg23[%581, %c0_163], %580 {strides = array<i32>} : memref<8x5xi32, #tpu.memory_space<vmem>>, vector<1x5xi32>,
    %583 = arith.index_cast %c2_i32_159 : i32 to index
    %c0_164 = arith.constant 0 : index
    %584 = vector.load %arg22[%583, %c0_164] : memref<8x5xf32, #tpu.memory_space<vmem>>, vector<1x5xf32>
    %585 = vector.shape_cast %573 : vector<5xf32> to vector<1x5xf32>
    %586 = arith.addf %585, %584 : vector<1x5xf32>
    %c3_i32_165 = arith.constant 3 : i32
    %587 = vector.broadcast %586 : vector<1x5xf32> to vector<5x5xf32>
    %588 = arith.addf %534, %587 : vector<5x5xf32>
    %cst_166 = arith.constant dense<0xFF800000> : vector<5xf32>
    %589 = vector.multi_reduction <maximumf>, %588, %cst_166 [1] : vector<5x5xf32> to vector<5xf32>
    %590 = vector.shape_cast %589 : vector<5xf32> to vector<5x1xf32>
    %591 = vector.broadcast %590 : vector<5x1xf32> to vector<5x5xf32>
    %592 = arith.cmpf oge, %588, %591 : vector<5x5xf32>
    %c5_i32_167 = arith.constant 5 : i32
    %593 = vector.broadcast %c5_i32_167 : i32 to vector<5x5xi32>
    %594 = arith.select %592, %535, %593 : vector<5x5xi1>, vector<5x5xi32>
    %cst_168 = arith.constant dense<2147483647> : vector<5xi32>
    %595 = vector.multi_reduction <minsi>, %594, %cst_168 [1] : vector<5x5xi32> to vector<5xi32>
    %596 = vector.shape_cast %595 : vector<5xi32> to vector<1x5xi32>
    %597 = arith.index_cast %c3_i32_165 : i32 to index
    %c0_169 = arith.constant 0 : index
    %598 = vector.load %arg23[%597, %c0_169] : memref<8x5xi32, #tpu.memory_space<vmem>>, vector<1x5xi32>
    tpu.vector_store %arg23[%597, %c0_169], %596 {strides = array<i32>} : memref<8x5xi32, #tpu.memory_space<vmem>>, vector<1x5xi32>,
    %599 = arith.index_cast %c3_i32_165 : i32 to index
    %c0_170 = arith.constant 0 : index
    %600 = vector.load %arg22[%599, %c0_170] : memref<8x5xf32, #tpu.memory_space<vmem>>, vector<1x5xf32>
    %601 = vector.shape_cast %589 : vector<5xf32> to vector<1x5xf32>
    %602 = arith.addf %601, %600 : vector<1x5xf32>
    %c4_i32_171 = arith.constant 4 : i32
    %603 = vector.broadcast %602 : vector<1x5xf32> to vector<5x5xf32>
    %604 = arith.addf %534, %603 : vector<5x5xf32>
    %cst_172 = arith.constant dense<0xFF800000> : vector<5xf32>
    %605 = vector.multi_reduction <maximumf>, %604, %cst_172 [1] : vector<5x5xf32> to vector<5xf32>
    %606 = vector.shape_cast %605 : vector<5xf32> to vector<5x1xf32>
    %607 = vector.broadcast %606 : vector<5x1xf32> to vector<5x5xf32>
    %608 = arith.cmpf oge, %604, %607 : vector<5x5xf32>
    %c5_i32_173 = arith.constant 5 : i32
    %609 = vector.broadcast %c5_i32_173 : i32 to vector<5x5xi32>
    %610 = arith.select %608, %535, %609 : vector<5x5xi1>, vector<5x5xi32>
    %cst_174 = arith.constant dense<2147483647> : vector<5xi32>
    %611 = vector.multi_reduction <minsi>, %610, %cst_174 [1] : vector<5x5xi32> to vector<5xi32>
    %612 = vector.shape_cast %611 : vector<5xi32> to vector<1x5xi32>
    %613 = arith.index_cast %c4_i32_171 : i32 to index
    %c0_175 = arith.constant 0 : index
    %614 = vector.load %arg23[%613, %c0_175] : memref<8x5xi32, #tpu.memory_space<vmem>>, vector<1x5xi32>
    tpu.vector_store %arg23[%613, %c0_175], %612 {strides = array<i32>} : memref<8x5xi32, #tpu.memory_space<vmem>>, vector<1x5xi32>,
    %615 = arith.index_cast %c4_i32_171 : i32 to index
    %c0_176 = arith.constant 0 : index
    %616 = vector.load %arg22[%615, %c0_176] : memref<8x5xf32, #tpu.memory_space<vmem>>, vector<1x5xf32>
    %617 = vector.shape_cast %605 : vector<5xf32> to vector<1x5xf32>
    %618 = arith.addf %617, %616 : vector<1x5xf32>
    %c5_i32_177 = arith.constant 5 : i32
    %619 = vector.broadcast %618 : vector<1x5xf32> to vector<5x5xf32>
    %620 = arith.addf %534, %619 : vector<5x5xf32>
    %cst_178 = arith.constant dense<0xFF800000> : vector<5xf32>
    %621 = vector.multi_reduction <maximumf>, %620, %cst_178 [1] : vector<5x5xf32> to vector<5xf32>
    %622 = vector.shape_cast %621 : vector<5xf32> to vector<5x1xf32>
    %623 = vector.broadcast %622 : vector<5x1xf32> to vector<5x5xf32>
    %624 = arith.cmpf oge, %620, %623 : vector<5x5xf32>
    %c5_i32_179 = arith.constant 5 : i32
    %625 = vector.broadcast %c5_i32_179 : i32 to vector<5x5xi32>
    %626 = arith.select %624, %535, %625 : vector<5x5xi1>, vector<5x5xi32>
    %cst_180 = arith.constant dense<2147483647> : vector<5xi32>
    %627 = vector.multi_reduction <minsi>, %626, %cst_180 [1] : vector<5x5xi32> to vector<5xi32>
    %628 = vector.shape_cast %627 : vector<5xi32> to vector<1x5xi32>
    %629 = arith.index_cast %c5_i32_177 : i32 to index
    %c0_181 = arith.constant 0 : index
    %630 = vector.load %arg23[%629, %c0_181] : memref<8x5xi32, #tpu.memory_space<vmem>>, vector<1x5xi32>
    tpu.vector_store %arg23[%629, %c0_181], %628 {strides = array<i32>} : memref<8x5xi32, #tpu.memory_space<vmem>>, vector<1x5xi32>,
    %631 = arith.index_cast %c5_i32_177 : i32 to index
    %c0_182 = arith.constant 0 : index
    %632 = vector.load %arg22[%631, %c0_182] : memref<8x5xf32, #tpu.memory_space<vmem>>, vector<1x5xf32>
    %633 = vector.shape_cast %621 : vector<5xf32> to vector<1x5xf32>
    %634 = arith.addf %633, %632 : vector<1x5xf32>
    %c6_i32_183 = arith.constant 6 : i32
    %635 = vector.broadcast %634 : vector<1x5xf32> to vector<5x5xf32>
    %636 = arith.addf %534, %635 : vector<5x5xf32>
    %cst_184 = arith.constant dense<0xFF800000> : vector<5xf32>
    %637 = vector.multi_reduction <maximumf>, %636, %cst_184 [1] : vector<5x5xf32> to vector<5xf32>
    %638 = vector.shape_cast %637 : vector<5xf32> to vector<5x1xf32>
    %639 = vector.broadcast %638 : vector<5x1xf32> to vector<5x5xf32>
    %640 = arith.cmpf oge, %636, %639 : vector<5x5xf32>
    %c5_i32_185 = arith.constant 5 : i32
    %641 = vector.broadcast %c5_i32_185 : i32 to vector<5x5xi32>
    %642 = arith.select %640, %535, %641 : vector<5x5xi1>, vector<5x5xi32>
    %cst_186 = arith.constant dense<2147483647> : vector<5xi32>
    %643 = vector.multi_reduction <minsi>, %642, %cst_186 [1] : vector<5x5xi32> to vector<5xi32>
    %644 = vector.shape_cast %643 : vector<5xi32> to vector<1x5xi32>
    %645 = arith.index_cast %c6_i32_183 : i32 to index
    %c0_187 = arith.constant 0 : index
    %646 = vector.load %arg23[%645, %c0_187] : memref<8x5xi32, #tpu.memory_space<vmem>>, vector<1x5xi32>
    tpu.vector_store %arg23[%645, %c0_187], %644 {strides = array<i32>} : memref<8x5xi32, #tpu.memory_space<vmem>>, vector<1x5xi32>,
    %647 = arith.index_cast %c6_i32_183 : i32 to index
    %c0_188 = arith.constant 0 : index
    %648 = vector.load %arg22[%647, %c0_188] : memref<8x5xf32, #tpu.memory_space<vmem>>, vector<1x5xf32>
    %649 = vector.shape_cast %637 : vector<5xf32> to vector<1x5xf32>
    %650 = arith.addf %649, %648 : vector<1x5xf32>
    %c7_i32_189 = arith.constant 7 : i32
    %651 = vector.broadcast %650 : vector<1x5xf32> to vector<5x5xf32>
    %652 = arith.addf %534, %651 : vector<5x5xf32>
    %cst_190 = arith.constant dense<0xFF800000> : vector<5xf32>
    %653 = vector.multi_reduction <maximumf>, %652, %cst_190 [1] : vector<5x5xf32> to vector<5xf32>
    %654 = vector.shape_cast %653 : vector<5xf32> to vector<5x1xf32>
    %655 = vector.broadcast %654 : vector<5x1xf32> to vector<5x5xf32>
    %656 = arith.cmpf oge, %652, %655 : vector<5x5xf32>
    %c5_i32_191 = arith.constant 5 : i32
    %657 = vector.broadcast %c5_i32_191 : i32 to vector<5x5xi32>
    %658 = arith.select %656, %535, %657 : vector<5x5xi1>, vector<5x5xi32>
    %cst_192 = arith.constant dense<2147483647> : vector<5xi32>
    %659 = vector.multi_reduction <minsi>, %658, %cst_192 [1] : vector<5x5xi32> to vector<5xi32>
    %660 = vector.shape_cast %659 : vector<5xi32> to vector<1x5xi32>
    %661 = arith.index_cast %c7_i32_189 : i32 to index
    %c0_193 = arith.constant 0 : index
    %662 = vector.load %arg23[%661, %c0_193] : memref<8x5xi32, #tpu.memory_space<vmem>>, vector<1x5xi32>
    tpu.vector_store %arg23[%661, %c0_193], %660 {strides = array<i32>} : memref<8x5xi32, #tpu.memory_space<vmem>>, vector<1x5xi32>,
    %663 = arith.index_cast %c7_i32_189 : i32 to index
    %c0_194 = arith.constant 0 : index
    %664 = vector.load %arg22[%663, %c0_194] : memref<8x5xf32, #tpu.memory_space<vmem>>, vector<1x5xf32>
    %665 = vector.shape_cast %653 : vector<5xf32> to vector<1x5xf32>
    %666 = arith.addf %665, %664 : vector<1x5xf32>
    %c8_i32_195 = arith.constant 8 : i32
    %c0_196 = arith.constant 0 : index
    %c0_197 = arith.constant 0 : index
    %667 = vector.load %arg14[%c0_196, %c0_197] : memref<1x5xf32, #tpu.memory_space<vmem>>, vector<1x5xf32>
    %668 = arith.addf %666, %667 : vector<1x5xf32>
    %cst_198 = arith.constant dense<0xFF800000> : vector<1xf32>
    %669 = vector.multi_reduction <maximumf>, %668, %cst_198 [1] : vector<1x5xf32> to vector<1xf32>
    %670 = vector.shape_cast %669 : vector<1xf32> to vector<1x1xf32>
    %c0_199 = arith.constant 0 : index
    %c0_200 = arith.constant 0 : index
    %671 = vector.load %arg15[%c0_199, %c0_200] : memref<1x1xf32, #tpu.memory_space<vmem>>, vector<1x1xf32>
    tpu.vector_store %arg15[%c0_199, %c0_200], %670 {strides = array<i32>} : memref<1x1xf32, #tpu.memory_space<vmem>>, vector<1x1xf32>,
    %672 = vector.broadcast %670 : vector<1x1xf32> to vector<1x5xf32>
    %673 = arith.cmpf oge, %668, %672 : vector<1x5xf32>
    %c5_i32_201 = arith.constant 5 : i32
    %674 = vector.broadcast %c5_i32_201 : i32 to vector<1x5xi32>
    %675 = arith.select %673, %536, %674 : vector<1x5xi1>, vector<1x5xi32>
    %cst_202 = arith.constant dense<2147483647> : vector<1xi32>
    %676 = vector.multi_reduction <minsi>, %675, %cst_202 [1] : vector<1x5xi32> to vector<1xi32>
    %677 = vector.shape_cast %676 : vector<1xi32> to vector<1x1xi32>
    %c7_i32_203 = arith.constant 7 : i32
    %678 = vector.broadcast %c7_i32_203 : i32 to vector<1x8xi32>
    %679 = arith.cmpi eq, %537, %678 : vector<1x8xi32>
    %c0_i32_204 = arith.constant 0 : i32
    %680 = vector.broadcast %c0_i32_204 : i32 to vector<1x8xi32>
    %681 = vector.shape_cast %677 : vector<1x1xi32> to vector<1x1xi32>
    %682 = vector.broadcast %681 : vector<1x1xi32> to vector<1x8xi32>
    %683 = arith.select %679, %682, %680 : vector<1x8xi1>, vector<1x8xi32>
    %c0_i32_205 = arith.constant 0 : i32
    %c7_i32_206 = arith.constant 7 : i32
    %684 = arith.subi %c7_i32_206, %c0_i32_205 : i32
    %685 = arith.index_cast %684 : i32 to index
    %c0_207 = arith.constant 0 : index
    %686 = vector.load %arg23[%685, %c0_207] : memref<8x5xi32, #tpu.memory_space<vmem>>, vector<1x5xi32>
    %687 = vector.broadcast %677 : vector<1x1xi32> to vector<1x5xi32>
    %688 = arith.cmpi eq, %536, %687 : vector<1x5xi32>
    %c0_i32_208 = arith.constant 0 : i32
    %689 = vector.broadcast %c0_i32_208 : i32 to vector<1x5xi32>
    %690 = arith.select %688, %686, %689 : vector<1x5xi1>, vector<1x5xi32>
    %cst_209 = arith.constant dense<0> : vector<1xi32>
    %691 = vector.multi_reduction <add>, %690, %cst_209 [1] : vector<1x5xi32> to vector<1xi32>
    %692 = vector.shape_cast %691 : vector<1xi32> to vector<1x1xi32>
    %c1_i32_210 = arith.constant 1 : i32
    %693 = arith.subi %684, %c1_i32_210 : i32
    %694 = vector.broadcast %693 : i32 to vector<1x8xi32>
    %695 = arith.cmpi eq, %537, %694 : vector<1x8xi32>
    %696 = vector.shape_cast %692 : vector<1x1xi32> to vector<1x1xi32>
    %697 = vector.broadcast %696 : vector<1x1xi32> to vector<1x8xi32>
    %698 = arith.select %695, %697, %683 : vector<1x8xi1>, vector<1x8xi32>
    %c1_i32_211 = arith.constant 1 : i32
    %c7_i32_212 = arith.constant 7 : i32
    %699 = arith.subi %c7_i32_212, %c1_i32_211 : i32
    %700 = arith.index_cast %699 : i32 to index
    %c0_213 = arith.constant 0 : index
    %701 = vector.load %arg23[%700, %c0_213] : memref<8x5xi32, #tpu.memory_space<vmem>>, vector<1x5xi32>
    %702 = vector.broadcast %692 : vector<1x1xi32> to vector<1x5xi32>
    %703 = arith.cmpi eq, %536, %702 : vector<1x5xi32>
    %c0_i32_214 = arith.constant 0 : i32
    %704 = vector.broadcast %c0_i32_214 : i32 to vector<1x5xi32>
    %705 = arith.select %703, %701, %704 : vector<1x5xi1>, vector<1x5xi32>
    %cst_215 = arith.constant dense<0> : vector<1xi32>
    %706 = vector.multi_reduction <add>, %705, %cst_215 [1] : vector<1x5xi32> to vector<1xi32>
    %707 = vector.shape_cast %706 : vector<1xi32> to vector<1x1xi32>
    %c1_i32_216 = arith.constant 1 : i32
    %708 = arith.subi %699, %c1_i32_216 : i32
    %709 = vector.broadcast %708 : i32 to vector<1x8xi32>
    %710 = arith.cmpi eq, %537, %709 : vector<1x8xi32>
    %711 = vector.shape_cast %707 : vector<1x1xi32> to vector<1x1xi32>
    %712 = vector.broadcast %711 : vector<1x1xi32> to vector<1x8xi32>
    %713 = arith.select %710, %712, %698 : vector<1x8xi1>, vector<1x8xi32>
    %c2_i32_217 = arith.constant 2 : i32
    %c7_i32_218 = arith.constant 7 : i32
    %714 = arith.subi %c7_i32_218, %c2_i32_217 : i32
    %715 = arith.index_cast %714 : i32 to index
    %c0_219 = arith.constant 0 : index
    %716 = vector.load %arg23[%715, %c0_219] : memref<8x5xi32, #tpu.memory_space<vmem>>, vector<1x5xi32>
    %717 = vector.broadcast %707 : vector<1x1xi32> to vector<1x5xi32>
    %718 = arith.cmpi eq, %536, %717 : vector<1x5xi32>
    %c0_i32_220 = arith.constant 0 : i32
    %719 = vector.broadcast %c0_i32_220 : i32 to vector<1x5xi32>
    %720 = arith.select %718, %716, %719 : vector<1x5xi1>, vector<1x5xi32>
    %cst_221 = arith.constant dense<0> : vector<1xi32>
    %721 = vector.multi_reduction <add>, %720, %cst_221 [1] : vector<1x5xi32> to vector<1xi32>
    %722 = vector.shape_cast %721 : vector<1xi32> to vector<1x1xi32>
    %c1_i32_222 = arith.constant 1 : i32
    %723 = arith.subi %714, %c1_i32_222 : i32
    %724 = vector.broadcast %723 : i32 to vector<1x8xi32>
    %725 = arith.cmpi eq, %537, %724 : vector<1x8xi32>
    %726 = vector.shape_cast %722 : vector<1x1xi32> to vector<1x1xi32>
    %727 = vector.broadcast %726 : vector<1x1xi32> to vector<1x8xi32>
    %728 = arith.select %725, %727, %713 : vector<1x8xi1>, vector<1x8xi32>
    %c3_i32_223 = arith.constant 3 : i32
    %c7_i32_224 = arith.constant 7 : i32
    %729 = arith.subi %c7_i32_224, %c3_i32_223 : i32
    %730 = arith.index_cast %729 : i32 to index
    %c0_225 = arith.constant 0 : index
    %731 = vector.load %arg23[%730, %c0_225] : memref<8x5xi32, #tpu.memory_space<vmem>>, vector<1x5xi32>
    %732 = vector.broadcast %722 : vector<1x1xi32> to vector<1x5xi32>
    %733 = arith.cmpi eq, %536, %732 : vector<1x5xi32>
    %c0_i32_226 = arith.constant 0 : i32
    %734 = vector.broadcast %c0_i32_226 : i32 to vector<1x5xi32>
    %735 = arith.select %733, %731, %734 : vector<1x5xi1>, vector<1x5xi32>
    %cst_227 = arith.constant dense<0> : vector<1xi32>
    %736 = vector.multi_reduction <add>, %735, %cst_227 [1] : vector<1x5xi32> to vector<1xi32>
    %737 = vector.shape_cast %736 : vector<1xi32> to vector<1x1xi32>
    %c1_i32_228 = arith.constant 1 : i32
    %738 = arith.subi %729, %c1_i32_228 : i32
    %739 = vector.broadcast %738 : i32 to vector<1x8xi32>
    %740 = arith.cmpi eq, %537, %739 : vector<1x8xi32>
    %741 = vector.shape_cast %737 : vector<1x1xi32> to vector<1x1xi32>
    %742 = vector.broadcast %741 : vector<1x1xi32> to vector<1x8xi32>
    %743 = arith.select %740, %742, %728 : vector<1x8xi1>, vector<1x8xi32>
    %c4_i32_229 = arith.constant 4 : i32
    %c7_i32_230 = arith.constant 7 : i32
    %744 = arith.subi %c7_i32_230, %c4_i32_229 : i32
    %745 = arith.index_cast %744 : i32 to index
    %c0_231 = arith.constant 0 : index
    %746 = vector.load %arg23[%745, %c0_231] : memref<8x5xi32, #tpu.memory_space<vmem>>, vector<1x5xi32>
    %747 = vector.broadcast %737 : vector<1x1xi32> to vector<1x5xi32>
    %748 = arith.cmpi eq, %536, %747 : vector<1x5xi32>
    %c0_i32_232 = arith.constant 0 : i32
    %749 = vector.broadcast %c0_i32_232 : i32 to vector<1x5xi32>
    %750 = arith.select %748, %746, %749 : vector<1x5xi1>, vector<1x5xi32>
    %cst_233 = arith.constant dense<0> : vector<1xi32>
    %751 = vector.multi_reduction <add>, %750, %cst_233 [1] : vector<1x5xi32> to vector<1xi32>
    %752 = vector.shape_cast %751 : vector<1xi32> to vector<1x1xi32>
    %c1_i32_234 = arith.constant 1 : i32
    %753 = arith.subi %744, %c1_i32_234 : i32
    %754 = vector.broadcast %753 : i32 to vector<1x8xi32>
    %755 = arith.cmpi eq, %537, %754 : vector<1x8xi32>
    %756 = vector.shape_cast %752 : vector<1x1xi32> to vector<1x1xi32>
    %757 = vector.broadcast %756 : vector<1x1xi32> to vector<1x8xi32>
    %758 = arith.select %755, %757, %743 : vector<1x8xi1>, vector<1x8xi32>
    %c5_i32_235 = arith.constant 5 : i32
    %c7_i32_236 = arith.constant 7 : i32
    %759 = arith.subi %c7_i32_236, %c5_i32_235 : i32
    %760 = arith.index_cast %759 : i32 to index
    %c0_237 = arith.constant 0 : index
    %761 = vector.load %arg23[%760, %c0_237] : memref<8x5xi32, #tpu.memory_space<vmem>>, vector<1x5xi32>
    %762 = vector.broadcast %752 : vector<1x1xi32> to vector<1x5xi32>
    %763 = arith.cmpi eq, %536, %762 : vector<1x5xi32>
    %c0_i32_238 = arith.constant 0 : i32
    %764 = vector.broadcast %c0_i32_238 : i32 to vector<1x5xi32>
    %765 = arith.select %763, %761, %764 : vector<1x5xi1>, vector<1x5xi32>
    %cst_239 = arith.constant dense<0> : vector<1xi32>
    %766 = vector.multi_reduction <add>, %765, %cst_239 [1] : vector<1x5xi32> to vector<1xi32>
    %767 = vector.shape_cast %766 : vector<1xi32> to vector<1x1xi32>
    %c1_i32_240 = arith.constant 1 : i32
    %768 = arith.subi %759, %c1_i32_240 : i32
    %769 = vector.broadcast %768 : i32 to vector<1x8xi32>
    %770 = arith.cmpi eq, %537, %769 : vector<1x8xi32>
    %771 = vector.shape_cast %767 : vector<1x1xi32> to vector<1x1xi32>
    %772 = vector.broadcast %771 : vector<1x1xi32> to vector<1x8xi32>
    %773 = arith.select %770, %772, %758 : vector<1x8xi1>, vector<1x8xi32>
    %c6_i32_241 = arith.constant 6 : i32
    %c7_i32_242 = arith.constant 7 : i32
    %774 = arith.subi %c7_i32_242, %c6_i32_241 : i32
    %775 = arith.index_cast %774 : i32 to index
    %c0_243 = arith.constant 0 : index
    %776 = vector.load %arg23[%775, %c0_243] : memref<8x5xi32, #tpu.memory_space<vmem>>, vector<1x5xi32>
    %777 = vector.broadcast %767 : vector<1x1xi32> to vector<1x5xi32>
    %778 = arith.cmpi eq, %536, %777 : vector<1x5xi32>
    %c0_i32_244 = arith.constant 0 : i32
    %779 = vector.broadcast %c0_i32_244 : i32 to vector<1x5xi32>
    %780 = arith.select %778, %776, %779 : vector<1x5xi1>, vector<1x5xi32>
    %cst_245 = arith.constant dense<0> : vector<1xi32>
    %781 = vector.multi_reduction <add>, %780, %cst_245 [1] : vector<1x5xi32> to vector<1xi32>
    %782 = vector.shape_cast %781 : vector<1xi32> to vector<1x1xi32>
    %c1_i32_246 = arith.constant 1 : i32
    %783 = arith.subi %774, %c1_i32_246 : i32
    %784 = vector.broadcast %783 : i32 to vector<1x8xi32>
    %785 = arith.cmpi eq, %537, %784 : vector<1x8xi32>
    %786 = vector.shape_cast %782 : vector<1x1xi32> to vector<1x1xi32>
    %787 = vector.broadcast %786 : vector<1x1xi32> to vector<1x8xi32>
    %788 = arith.select %785, %787, %773 : vector<1x8xi1>, vector<1x8xi32>
    %c7_i32_247 = arith.constant 7 : i32
    %c7_i32_248 = arith.constant 7 : i32
    %789 = arith.subi %c7_i32_248, %c7_i32_247 : i32
    %790 = arith.index_cast %789 : i32 to index
    %c0_249 = arith.constant 0 : index
    %791 = vector.load %arg23[%790, %c0_249] : memref<8x5xi32, #tpu.memory_space<vmem>>, vector<1x5xi32>
    %792 = vector.broadcast %782 : vector<1x1xi32> to vector<1x5xi32>
    %793 = arith.cmpi eq, %536, %792 : vector<1x5xi32>
    %c0_i32_250 = arith.constant 0 : i32
    %794 = vector.broadcast %c0_i32_250 : i32 to vector<1x5xi32>
    %795 = arith.select %793, %791, %794 : vector<1x5xi1>, vector<1x5xi32>
    %cst_251 = arith.constant dense<0> : vector<1xi32>
    %796 = vector.multi_reduction <add>, %795, %cst_251 [1] : vector<1x5xi32> to vector<1xi32>
    %797 = vector.shape_cast %796 : vector<1xi32> to vector<1x1xi32>
    %c1_i32_252 = arith.constant 1 : i32
    %798 = arith.subi %789, %c1_i32_252 : i32
    %799 = vector.broadcast %798 : i32 to vector<1x8xi32>
    %800 = arith.cmpi eq, %537, %799 : vector<1x8xi32>
    %801 = vector.shape_cast %797 : vector<1x1xi32> to vector<1x1xi32>
    %802 = vector.broadcast %801 : vector<1x1xi32> to vector<1x8xi32>
    %803 = arith.select %800, %802, %788 : vector<1x8xi1>, vector<1x8xi32>
    %c8_i32_253 = arith.constant 8 : i32
    %c0_254 = arith.constant 0 : index
    %c0_255 = arith.constant 0 : index
    %804 = vector.load %arg16[%c0_254, %c0_255] : memref<1x8xi32, #tpu.memory_space<vmem>>, vector<1x8xi32>
    tpu.vector_store %arg16[%c0_254, %c0_255], %803 {strides = array<i32>} : memref<1x8xi32, #tpu.memory_space<vmem>>, vector<1x8xi32>,
    %c0_256 = arith.constant 0 : index
    %c0_257 = arith.constant 0 : index
    %805 = vector.load %arg17[%c0_256, %c0_257] : memref<1x1xi32, #tpu.memory_space<vmem>>, vector<1x1xi32>
    tpu.vector_store %arg17[%c0_256, %c0_257], %797 {strides = array<i32>} : memref<1x1xi32, #tpu.memory_space<vmem>>, vector<1x1xi32>,
    return
  }
}

</mosaic_0001>

<llo_original>
// kernel: bilstm_crf_forward.1
$region0: #{bilstm_crf_forward.1}
  #allocation0 [shape = 'u32[]', space=smem, size = 0x4, offset = 0x4, fixed_abs, tag = 'smem constant byte address 0x4 - core index']
  #allocation1 [shape = 'u32[144,128]{1,0:T(1,128)}', space=vmem, size = 0x12000, scoped, tag = 'internal scratch']
  #allocation2 [shape = 'f32[8,64]{1,0:T(8,128)}', space=vmem, size = 0x1000, scoped, tag = 'scratch operand']
  #allocation3 [shape = 'f32[8,64]{1,0:T(8,128)}', space=vmem, size = 0x1000, scoped, tag = 'scratch operand']
  #allocation4 [shape = 'f32[8,16]{1,0:T(8,128)}', space=vmem, size = 0x1000, scoped, tag = 'scratch operand']
  #allocation5 [shape = 'f32[8,16]{1,0:T(8,128)}', space=vmem, size = 0x1000, scoped, tag = 'scratch operand']
  #allocation6 [shape = 'f32[8,5]{1,0:T(8,128)}', space=vmem, size = 0x1000, scoped, tag = 'scratch operand']
  #allocation7 [shape = 's32[8,5]{1,0:T(8,128)}', space=vmem, size = 0x1000, scoped, tag = 'scratch operand']
  %s0 = inlined_call_operand.vmem [shape: f32[8,16], index: 0, kind: input, shape index: {}]
  %s1 = inlined_call_operand.vmem [shape: f32[16,64], index: 1, kind: input, shape index: {}]
  %s2 = inlined_call_operand.vmem [shape: f32[16,64], index: 2, kind: input, shape index: {}]
  %s3 = inlined_call_operand.vmem [shape: f32[1,64], index: 3, kind: input, shape index: {}]
  %s4 = inlined_call_operand.vmem [shape: f32[16,64], index: 4, kind: input, shape index: {}]
  %s5 = inlined_call_operand.vmem [shape: f32[16,64], index: 5, kind: input, shape index: {}]
  %s6 = inlined_call_operand.vmem [shape: f32[1,64], index: 6, kind: input, shape index: {}]
  %s7 = inlined_call_operand.vmem [shape: f32[2,16], index: 7, kind: input, shape index: {}]
  %s8 = inlined_call_operand.vmem [shape: f32[2,16], index: 8, kind: input, shape index: {}]
  %s9 = inlined_call_operand.vmem [shape: f32[16,5], index: 9, kind: input, shape index: {}]
  %s10 = inlined_call_operand.vmem [shape: f32[16,5], index: 10, kind: input, shape index: {}]
  %s11 = inlined_call_operand.vmem [shape: f32[1,5], index: 11, kind: input, shape index: {}]
  %s12 = inlined_call_operand.vmem [shape: f32[5,5], index: 12, kind: input, shape index: {}]
  %s13 = inlined_call_operand.vmem [shape: f32[1,5], index: 13, kind: input, shape index: {}]
  %s14 = inlined_call_operand.vmem [shape: f32[1,5], index: 14, kind: input, shape index: {}]
  %s15 = inlined_call_operand.hbm [shape: f32[1,1], index: 15, kind: output, shape index: {0}]
  %s16 = inlined_call_operand.hbm [shape: s32[1,8], index: 16, kind: output, shape index: {1}]
  %s17 = inlined_call_operand.hbm [shape: s32[1,1], index: 17, kind: output, shape index: {2}]
  %18 = xla_tuple %s15, %s16, %s17
  %s19 = sld [smem:[#allocation0]]
  $region86: #{bilstm_crf_forward.1} parent=0
    _
  %s21 = ssub.s32 1, %s19
  %s22 = scalar_select 0, %s21, %s19
  $region1: #{bilstm_crf_forward.1} parent=0
    #allocation8 [shape = 'u8[512]{0}', space=vmem, size = 0x400, scoped, tag = 'output window, operand 0, single buffered']
    #allocation9 [shape = 's32[1]{0}', space=sflag, size = 0x4, scoped, tag = 'scoped memory for bilstm_crf_forward.1']
    #allocation10 [shape = 'u8[512]{0}', space=vmem, size = 0x400, scoped, tag = 'output window, operand 1, single buffered']
    #allocation11 [shape = 's32[1]{0}', space=sflag, size = 0x4, scoped, tag = 'scoped memory for bilstm_crf_forward.1']
    #allocation12 [shape = 'u8[512]{0}', space=vmem, size = 0x400, scoped, tag = 'output window, operand 2, single buffered']
    %23 = vsyncpa [#allocation9], 0
    %24 = vsyncpa [#allocation11], 0
    // Predicated region
    $region2: #{bilstm_crf_forward.1} parent=1 // pred_check
      _
    $region3: #{bilstm_crf_forward.1} parent=1 // pred_check_branch
      %26 = sbr.rel (0) target = $region5
    $region4: #{bilstm_crf_forward.1} parent=1 // pred_region
      _
    $region5: #{bilstm_crf_forward.1} parent=1 // pred_fallthru
      _
    // Predicated region
    $region6: #{bilstm_crf_forward.1} parent=1 // pred_check
      _
    $region7: #{bilstm_crf_forward.1} parent=1 // pred_check_branch
      %28 = sbr.rel (0) target = $region9
    $region8: #{bilstm_crf_forward.1} parent=1 // pred_region
      _
    $region9: #{bilstm_crf_forward.1} parent=1 // pred_fallthru
      _
    // Predicated region
    $region10: #{bilstm_crf_forward.1} parent=1 // pred_check
      _
    $region11: #{bilstm_crf_forward.1} parent=1 // pred_check_branch
      %30 = sbr.rel (0) target = $region13
    $region12: #{bilstm_crf_forward.1} parent=1 // pred_region
      _
    $region13: #{bilstm_crf_forward.1} parent=1 // pred_fallthru
      _
    // Predicated region
    $region14: #{bilstm_crf_forward.1} parent=1 // pred_check
      _
    $region15: #{bilstm_crf_forward.1} parent=1 // pred_check_branch
      %32 = sbr.rel (0) target = $region17
    $region16: #{bilstm_crf_forward.1} parent=1 // pred_region
      _
    $region17: #{bilstm_crf_forward.1} parent=1 // pred_fallthru
      _
    // Predicated region
    $region18: #{bilstm_crf_forward.1} parent=1 // pred_check
      _
    $region19: #{bilstm_crf_forward.1} parent=1 // pred_check_branch
      %34 = sbr.rel (0) target = $region21
    $region20: #{bilstm_crf_forward.1} parent=1 // pred_region
      _
    $region21: #{bilstm_crf_forward.1} parent=1 // pred_fallthru
      _
    // Predicated region
    $region22: #{bilstm_crf_forward.1} parent=1 // pred_check
      _
    $region23: #{bilstm_crf_forward.1} parent=1 // pred_check_branch
      %36 = sbr.rel (0) target = $region25
    $region24: #{bilstm_crf_forward.1} parent=1 // pred_region
      _
    $region25: #{bilstm_crf_forward.1} parent=1 // pred_fallthru
      _
    // Predicated region
    $region26: #{bilstm_crf_forward.1} parent=1 // pred_check
      _
    $region27: #{bilstm_crf_forward.1} parent=1 // pred_check_branch
      %38 = sbr.rel (0) target = $region29
    $region28: #{bilstm_crf_forward.1} parent=1 // pred_region
      _
    $region29: #{bilstm_crf_forward.1} parent=1 // pred_fallthru
      _
    // Predicated region
    $region30: #{bilstm_crf_forward.1} parent=1 // pred_check
      _
    $region31: #{bilstm_crf_forward.1} parent=1 // pred_check_branch
      %40 = sbr.rel (0) target = $region33
    $region32: #{bilstm_crf_forward.1} parent=1 // pred_region
      _
    $region33: #{bilstm_crf_forward.1} parent=1 // pred_fallthru
      _
    // Predicated region
    $region34: #{bilstm_crf_forward.1} parent=1 // pred_check
      _
    $region35: #{bilstm_crf_forward.1} parent=1 // pred_check_branch
      %42 = sbr.rel (0) target = $region37
    $region36: #{bilstm_crf_forward.1} parent=1 // pred_region
      _
    $region37: #{bilstm_crf_forward.1} parent=1 // pred_fallthru
      _
    // Predicated region
    $region38: #{bilstm_crf_forward.1} parent=1 // pred_check
      _
    $region39: #{bilstm_crf_forward.1} parent=1 // pred_check_branch
      %44 = sbr.rel (0) target = $region41
    $region40: #{bilstm_crf_forward.1} parent=1 // pred_region
      _
    $region41: #{bilstm_crf_forward.1} parent=1 // pred_fallthru
      _
    // Predicated region
    $region42: #{bilstm_crf_forward.1} parent=1 // pred_check
      _
    $region43: #{bilstm_crf_forward.1} parent=1 // pred_check_branch
      %46 = sbr.rel (0) target = $region45
    $region44: #{bilstm_crf_forward.1} parent=1 // pred_region
      _
    $region45: #{bilstm_crf_forward.1} parent=1 // pred_fallthru
      _
    // Predicated region
    $region46: #{bilstm_crf_forward.1} parent=1 // pred_check
      _
    $region47: #{bilstm_crf_forward.1} parent=1 // pred_check_branch
      %48 = sbr.rel (0) target = $region49
    $region48: #{bilstm_crf_forward.1} parent=1 // pred_region
      _
    $region49: #{bilstm_crf_forward.1} parent=1 // pred_fallthru
      _
    // Predicated region
    $region50: #{bilstm_crf_forward.1} parent=1 // pred_check
      _
    $region51: #{bilstm_crf_forward.1} parent=1 // pred_check_branch
      %50 = sbr.rel (0) target = $region53
    $region52: #{bilstm_crf_forward.1} parent=1 // pred_region
      _
    $region53: #{bilstm_crf_forward.1} parent=1 // pred_fallthru
      _
    // Predicated region
    $region54: #{bilstm_crf_forward.1} parent=1 // pred_check
      _
    $region55: #{bilstm_crf_forward.1} parent=1 // pred_check_branch
      %52 = sbr.rel (0) target = $region57
    $region56: #{bilstm_crf_forward.1} parent=1 // pred_region
      _
    $region57: #{bilstm_crf_forward.1} parent=1 // pred_fallthru
      _
    // Predicated region
    $region58: #{bilstm_crf_forward.1} parent=1 // pred_check
      _
    $region59: #{bilstm_crf_forward.1} parent=1 // pred_check_branch
      %54 = sbr.rel (0) target = $region61
    $region60: #{bilstm_crf_forward.1} parent=1 // pred_region
      _
    $region61: #{bilstm_crf_forward.1} parent=1 // pred_fallthru
      _
    %v55 = vld [vmem:[%s0] sm:$0xff]
    %v56 = vld [vmem:[%s1] sm:$0xff]
    %v57 = vld [vmem:[%s1 + $0x8] sm:$0xff]
    %v58 = vld [vmem:[%s3] sm:$0x1]
    %v60 = vlaneseq
    %v61 = vshrl.u32 %v60, 7
    %v62 = vsub.s32 0, %v61
    %v63 = vrot.slane %v58, %v62
    %vm65 = vcmask 130048
    %v67 = vsel %vm65, %v55, 0
    %69 = vmatprep.subr.mxu0 0.0
    %70 = vmatpush1.msra.mxu0 0.0
    %71 = vmatprep.subr.mxu0 0.0
    %72 = vmatpush1.msra.mxu0 0.0
    %73 = vmatprep.subr.mxu0 0.0
    %74 = vmatpush1.msra.mxu0 0.0
    %75 = vmatprep.subr.mxu0 0.0
    %76 = vmatpush1.msra.mxu0 0.0
    %77 = vmatprep.subr.mxu0 0.0
    %78 = vmatpush1.msra.mxu0 0.0
    %79 = vmatprep.subr.mxu0 0.0
    %80 = vmatpush1.msra.mxu0 0.0
    %81 = vmatprep.subr.mxu0 0.0
    %82 = vmatpush1.msra.mxu0 0.0
    %83 = vmatprep.subr.mxu0 0.0
    %84 = vmatpush1.msra.mxu0 0.0
    %85 = vmatprep.subr.mxu0 0.0
    %86 = vmatpush1.msra.mxu0 0.0
    %87 = vmatprep.subr.mxu0 0.0
    %88 = vmatpush1.msra.mxu0 0.0
    %89 = vmatprep.subr.mxu0 0.0
    %90 = vmatpush1.msra.mxu0 0.0
    %91 = vmatprep.subr.mxu0 0.0
    %92 = vmatpush1.msra.mxu0 0.0
    %93 = vmatprep.subr.mxu0 0.0
    %94 = vmatpush1.msra.mxu0 0.0
    %95 = vmatprep.subr.mxu0 0.0
    %96 = vmatpush1.msra.mxu0 0.0
    %97 = vmatprep.subr.mxu0 0.0
    %98 = vmatpush1.msra.mxu0 %v57
    %99 = vmatprep.subr.mxu0 0.0
    %100 = vmatpush1.msra.mxu0 %v56
    %101 = vmatprep.subr.mxu0 0.0
    %102 = vmatpush2.msra.mxu0 0.0
    %103 = vmatprep.subr.mxu0 0.0
    %104 = vmatpush2.msra.mxu0 0.0
    %105 = vmatprep.subr.mxu0 0.0
    %106 = vmatpush2.msra.mxu0 0.0
    %107 = vmatprep.subr.mxu0 0.0
    %108 = vmatpush2.msra.mxu0 0.0
    %109 = vmatprep.subr.mxu0 0.0
    %110 = vmatpush2.msra.mxu0 0.0
    %111 = vmatprep.subr.mxu0 0.0
    %112 = vmatpush2.msra.mxu0 0.0
    %113 = vmatprep.subr.mxu0 0.0
    %114 = vmatpush2.msra.mxu0 0.0
    %115 = vmatprep.subr.mxu0 0.0
    %116 = vmatpush2.msra.mxu0 0.0
    %117 = vmatprep.subr.mxu0 0.0
    %118 = vmatpush2.msra.mxu0 0.0
    %119 = vmatprep.subr.mxu0 0.0
    %120 = vmatpush2.msra.mxu0 0.0
    %121 = vmatprep.subr.mxu0 0.0
    %122 = vmatpush2.msra.mxu0 0.0
    %123 = vmatprep.subr.mxu0 0.0
    %124 = vmatpush2.msra.mxu0 0.0
    %125 = vmatprep.subr.mxu0 0.0
    %126 = vmatpush2.msra.mxu0 0.0
    %127 = vmatprep.subr.mxu0 0.0
    %128 = vmatpush2.msra.mxu0 0.0
    %129 = vmatprep.subr.mxu0 0.0
    %130 = vmatpush2.msra.mxu0 0.0
    %131 = vmatprep.subr.mxu0 0.0
    %132 = vmatpush2.msra.mxu0 0.0
    %133 = vmatprep.mubr.f32.mxu0 0.0
    %134 = vmatmul.mubr.f32.gmra.mxu0 %v67
    %v135 = vpop.f32.mrf.mxu0
    %v136 = vadd.f32 %v63, %v135
    %v137 = vpop.f32.mrf.mxu0
    %138 = vdwg.mxu0
    %vm139 = vcmask 523264
    %140 = vst.msk [vmem:[#allocation2] sm:$0xff] %vm139, %v136
    %v141 = vld [vmem:[%s4] sm:$0xff]
    %v142 = vld [vmem:[%s4 + $0x8] sm:$0xff]
    %v143 = vld [vmem:[%s6] sm:$0x1]
    %v145 = vlaneseq
    %v146 = vshrl.u32 %v145, 7
    %v147 = vsub.s32 0, %v146
    %v148 = vrot.slane %v143, %v147
    %150 = vmatprep.subr.mxu0 0.0
    %151 = vmatpush1.msra.mxu0 0.0
    %152 = vmatprep.subr.mxu0 0.0
    %153 = vmatpush1.msra.mxu0 0.0
    %154 = vmatprep.subr.mxu0 0.0
    %155 = vmatpush1.msra.mxu0 0.0
    %156 = vmatprep.subr.mxu0 0.0
    %157 = vmatpush1.msra.mxu0 0.0
    %158 = vmatprep.subr.mxu0 0.0
    %159 = vmatpush1.msra.mxu0 0.0
    %160 = vmatprep.subr.mxu0 0.0
    %161 = vmatpush1.msra.mxu0 0.0
    %162 = vmatprep.subr.mxu0 0.0
    %163 = vmatpush1.msra.mxu0 0.0
    %164 = vmatprep.subr.mxu0 0.0
    %165 = vmatpush1.msra.mxu0 0.0
    %166 = vmatprep.subr.mxu0 0.0
    %167 = vmatpush1.msra.mxu0 0.0
    %168 = vmatprep.subr.mxu0 0.0
    %169 = vmatpush1.msra.mxu0 0.0
    %170 = vmatprep.subr.mxu0 0.0
    %171 = vmatpush1.msra.mxu0 0.0
    %172 = vmatprep.subr.mxu0 0.0
    %173 = vmatpush1.msra.mxu0 0.0
    %174 = vmatprep.subr.mxu0 0.0
    %175 = vmatpush1.msra.mxu0 0.0
    %176 = vmatprep.subr.mxu0 0.0
    %177 = vmatpush1.msra.mxu0 0.0
    %178 = vmatprep.subr.mxu0 0.0
    %179 = vmatpush1.msra.mxu0 %v142
    %180 = vmatprep.subr.mxu0 0.0
    %181 = vmatpush1.msra.mxu0 %v141
    %182 = vmatprep.subr.mxu0 0.0
    %183 = vmatpush2.msra.mxu0 0.0
    %184 = vmatprep.subr.mxu0 0.0
    %185 = vmatpush2.msra.mxu0 0.0
    %186 = vmatprep.subr.mxu0 0.0
    %187 = vmatpush2.msra.mxu0 0.0
    %188 = vmatprep.subr.mxu0 0.0
    %189 = vmatpush2.msra.mxu0 0.0
    %190 = vmatprep.subr.mxu0 0.0
    %191 = vmatpush2.msra.mxu0 0.0
    %192 = vmatprep.subr.mxu0 0.0
    %193 = vmatpush2.msra.mxu0 0.0
    %194 = vmatprep.subr.mxu0 0.0
    %195 = vmatpush2.msra.mxu0 0.0
    %196 = vmatprep.subr.mxu0 0.0
    %197 = vmatpush2.msra.mxu0 0.0
    %198 = vmatprep.subr.mxu0 0.0
    %199 = vmatpush2.msra.mxu0 0.0
    %200 = vmatprep.subr.mxu0 0.0
    %201 = vmatpush2.msra.mxu0 0.0
    %202 = vmatprep.subr.mxu0 0.0
    %203 = vmatpush2.msra.mxu0 0.0
    %204 = vmatprep.subr.mxu0 0.0
    %205 = vmatpush2.msra.mxu0 0.0
    %206 = vmatprep.subr.mxu0 0.0
    %207 = vmatpush2.msra.mxu0 0.0
    %208 = vmatprep.subr.mxu0 0.0
    %209 = vmatpush2.msra.mxu0 0.0
    %210 = vmatprep.subr.mxu0 0.0
    %211 = vmatpush2.msra.mxu0 0.0
    %212 = vmatprep.subr.mxu0 0.0
    %213 = vmatpush2.msra.mxu0 0.0
    %214 = vmatprep.mubr.f32.mxu0 0.0
    %215 = vmatmul.mubr.f32.gmra.mxu0 %v67
    %v216 = vpop.f32.mrf.mxu0
    %v217 = vadd.f32 %v148, %v216
    %v218 = vpop.f32.mrf.mxu0
    %219 = vdwg.mxu0
    %220 = vst.msk [vmem:[#allocation3] sm:$0xff] %vm139, %v217
    %v221 = vld [vmem:[%s2] sm:$0xff]
    %v222 = vld [vmem:[%s2 + $0x8] sm:$0xff]
    %v223 = vld [vmem:[%s5] sm:$0xff]
    %v224 = vld [vmem:[%s5 + $0x8] sm:$0xff]
    %v225 = vld [vmem:[%s7] sm:$0x1]
    %v226 = vld [vmem:[%s8] sm:$0x1]
    %v227 = vld [vmem:[%s7 + $0x1] sm:$0x1]
    %v228 = vld [vmem:[%s8 + $0x1] sm:$0x1]
    %v229 = vld [vmem:[#allocation2] sm:$0x1]
    %v231 = vsel %vm65, %v225, 0
    %233 = vmatprep.subr.mxu0 0.0
    %234 = vmatpush1.msra.mxu0 0.0
    %235 = vmatprep.subr.mxu0 0.0
    %236 = vmatpush1.msra.mxu0 0.0
    %237 = vmatprep.subr.mxu0 0.0
    %238 = vmatpush1.msra.mxu0 0.0
    %239 = vmatprep.subr.mxu0 0.0
    %240 = vmatpush1.msra.mxu0 0.0
    %241 = vmatprep.subr.mxu0 0.0
    %242 = vmatpush1.msra.mxu0 0.0
    %243 = vmatprep.subr.mxu0 0.0
    %244 = vmatpush1.msra.mxu0 0.0
    %245 = vmatprep.subr.mxu0 0.0
    %246 = vmatpush1.msra.mxu0 0.0
    %247 = vmatprep.subr.mxu0 0.0
    %248 = vmatpush1.msra.mxu0 0.0
    %249 = vmatprep.subr.mxu0 0.0
    %250 = vmatpush1.msra.mxu0 0.0
    %251 = vmatprep.subr.mxu0 0.0
    %252 = vmatpush1.msra.mxu0 0.0
    %253 = vmatprep.subr.mxu0 0.0
    %254 = vmatpush1.msra.mxu0 0.0
    %255 = vmatprep.subr.mxu0 0.0
    %256 = vmatpush1.msra.mxu0 0.0
    %257 = vmatprep.subr.mxu0 0.0
    %258 = vmatpush1.msra.mxu0 0.0
    %259 = vmatprep.subr.mxu0 0.0
    %260 = vmatpush1.msra.mxu0 0.0
    %261 = vmatprep.subr.mxu0 0.0
    %262 = vmatpush1.msra.mxu0 %v222
    %263 = vmatprep.subr.mxu0 0.0
    %264 = vmatpush1.msra.mxu0 %v221
    %265 = vmatprep.subr.mxu0 0.0
    %266 = vmatpush2.msra.mxu0 0.0
    %267 = vmatprep.subr.mxu0 0.0
    %268 = vmatpush2.msra.mxu0 0.0
    %269 = vmatprep.subr.mxu0 0.0
    %270 = vmatpush2.msra.mxu0 0.0
    %271 = vmatprep.subr.mxu0 0.0
    %272 = vmatpush2.msra.mxu0 0.0
    %273 = vmatprep.subr.mxu0 0.0
    %274 = vmatpush2.msra.mxu0 0.0
    %275 = vmatprep.subr.mxu0 0.0
    %276 = vmatpush2.msra.mxu0 0.0
    %277 = vmatprep.subr.mxu0 0.0
    %278 = vmatpush2.msra.mxu0 0.0
    %279 = vmatprep.subr.mxu0 0.0
    %280 = vmatpush2.msra.mxu0 0.0
    %281 = vmatprep.subr.mxu0 0.0
    %282 = vmatpush2.msra.mxu0 0.0
    %283 = vmatprep.subr.mxu0 0.0
    %284 = vmatpush2.msra.mxu0 0.0
    %285 = vmatprep.subr.mxu0 0.0
    %286 = vmatpush2.msra.mxu0 0.0
    %287 = vmatprep.subr.mxu0 0.0
    %288 = vmatpush2.msra.mxu0 0.0
    %289 = vmatprep.subr.mxu0 0.0
    %290 = vmatpush2.msra.mxu0 0.0
    %291 = vmatprep.subr.mxu0 0.0
    %292 = vmatpush2.msra.mxu0 0.0
    %293 = vmatprep.subr.mxu0 0.0
    %294 = vmatpush2.msra.mxu0 0.0
    %295 = vmatprep.subr.mxu0 0.0
    %296 = vmatpush2.msra.mxu0 0.0
    %297 = vmatprep.mubr.f32.mxu0 0.0
    %298 = vmatmul.mubr.f32.gmra.mxu0 %v231
    %v299 = vpop.f32.mrf.mxu0
    %v300 = vadd.f32 0.0, %v299
    %v301 = vpop.f32.mrf.mxu0
    %302 = vdwg.mxu0
    %v303 = vadd.f32 %v229, %v300
    %v304 = vxor.u32 %v303, 2147483648
    %v305 = vmul.f32 %v304, 1.442695
    %v306 = vpow.pop %v305
    %v307 = vadd.f32 %v306, 1.0
    %v308 = vrcp.pop %v307
    %v309 = vmul.f32 1.0, %v308
    %v310 = vtanh.pop %v303
    %312 = vrot.lane.b32.xlu0 %v226, 16
    %v313 = vpop.permute.xlu0 %312
    %v315 = vmul.f32 %v309, %v313
    %317 = vrot.lane.b32.xlu0 %v310, 96
    %v318 = vpop.permute.xlu0 %317
    %v320 = vmul.f32 %v309, %v318
    %322 = vrot.lane.b32.xlu0 %v320, 16
    %v323 = vpop.permute.xlu0 %322
    %v325 = vadd.f32 %v315, %v323
    %v326 = vtanh.pop %v325
    %328 = vrot.lane.b32.xlu0 %v326, 32
    %v329 = vpop.permute.xlu0 %328
    %v331 = vmul.f32 %v309, %v329
    %333 = vrot.lane.b32.xlu0 %v331, 80
    %v334 = vpop.permute.xlu0 %333
    %vm336 = vcmask 122880
    %337 = vst.msk [vmem:[#allocation4] sm:$0x1] %vm336, %v334
    %v338 = vld [vmem:[#allocation3 + $0x7] sm:$0x1]
    %v340 = vsel %vm65, %v227, 0
    %342 = vmatprep.subr.mxu0 0.0
    %343 = vmatpush1.msra.mxu0 0.0
    %344 = vmatprep.subr.mxu0 0.0
    %345 = vmatpush1.msra.mxu0 0.0
    %346 = vmatprep.subr.mxu0 0.0
    %347 = vmatpush1.msra.mxu0 0.0
    %348 = vmatprep.subr.mxu0 0.0
    %349 = vmatpush1.msra.mxu0 0.0
    %350 = vmatprep.subr.mxu0 0.0
    %351 = vmatpush1.msra.mxu0 0.0
    %352 = vmatprep.subr.mxu0 0.0
    %353 = vmatpush1.msra.mxu0 0.0
    %354 = vmatprep.subr.mxu0 0.0
    %355 = vmatpush1.msra.mxu0 0.0
    %356 = vmatprep.subr.mxu0 0.0
    %357 = vmatpush1.msra.mxu0 0.0
    %358 = vmatprep.subr.mxu0 0.0
    %359 = vmatpush1.msra.mxu0 0.0
    %360 = vmatprep.subr.mxu0 0.0
    %361 = vmatpush1.msra.mxu0 0.0
    %362 = vmatprep.subr.mxu0 0.0
    %363 = vmatpush1.msra.mxu0 0.0
    %364 = vmatprep.subr.mxu0 0.0
    %365 = vmatpush1.msra.mxu0 0.0
    %366 = vmatprep.subr.mxu0 0.0
    %367 = vmatpush1.msra.mxu0 0.0
    %368 = vmatprep.subr.mxu0 0.0
    %369 = vmatpush1.msra.mxu0 0.0
    %370 = vmatprep.subr.mxu0 0.0
    %371 = vmatpush1.msra.mxu0 %v224
    %372 = vmatprep.subr.mxu0 0.0
    %373 = vmatpush1.msra.mxu0 %v223
    %374 = vmatprep.subr.mxu0 0.0
    %375 = vmatpush2.msra.mxu0 0.0
    %376 = vmatprep.subr.mxu0 0.0
    %377 = vmatpush2.msra.mxu0 0.0
    %378 = vmatprep.subr.mxu0 0.0
    %379 = vmatpush2.msra.mxu0 0.0
    %380 = vmatprep.subr.mxu0 0.0
    %381 = vmatpush2.msra.mxu0 0.0
    %382 = vmatprep.subr.mxu0 0.0
    %383 = vmatpush2.msra.mxu0 0.0
    %384 = vmatprep.subr.mxu0 0.0
    %385 = vmatpush2.msra.mxu0 0.0
    %386 = vmatprep.subr.mxu0 0.0
    %387 = vmatpush2.msra.mxu0 0.0
    %388 = vmatprep.subr.mxu0 0.0
    %389 = vmatpush2.msra.mxu0 0.0
    %390 = vmatprep.subr.mxu0 0.0
    %391 = vmatpush2.msra.mxu0 0.0
    %392 = vmatprep.subr.mxu0 0.0
    %393 = vmatpush2.msra.mxu0 0.0
    %394 = vmatprep.subr.mxu0 0.0
    %395 = vmatpush2.msra.mxu0 0.0
    %396 = vmatprep.subr.mxu0 0.0
    %397 = vmatpush2.msra.mxu0 0.0
    %398 = vmatprep.subr.mxu0 0.0
    %399 = vmatpush2.msra.mxu0 0.0
    %400 = vmatprep.subr.mxu0 0.0
    %401 = vmatpush2.msra.mxu0 0.0
    %402 = vmatprep.subr.mxu0 0.0
    %403 = vmatpush2.msra.mxu0 0.0
    %404 = vmatprep.subr.mxu0 0.0
    %405 = vmatpush2.msra.mxu0 0.0
    %406 = vmatprep.mubr.f32.mxu0 0.0
    %407 = vmatmul.mubr.f32.gmra.mxu0 %v340
    %v408 = vpop.f32.mrf.mxu0
    %v409 = vadd.f32 0.0, %v408
    %v410 = vpop.f32.mrf.mxu0
    %411 = vdwg.mxu0
    %v412 = vadd.f32 %v338, %v409
    %v413 = vxor.u32 %v412, 2147483648
    %v414 = vmul.f32 %v413, 1.442695
    %v415 = vpow.pop %v414
    %v416 = vadd.f32 %v415, 1.0
    %v417 = vrcp.pop %v416
    %v418 = vmul.f32 1.0, %v417
    %v419 = vtanh.pop %v412
    %421 = vrot.lane.b32.xlu0 %v228, 16
    %v422 = vpop.permute.xlu0 %421
    %v424 = vmul.f32 %v418, %v422
    %426 = vrot.lane.b32.xlu0 %v419, 96
    %v427 = vpop.permute.xlu0 %426
    %v429 = vmul.f32 %v418, %v427
    %431 = vrot.lane.b32.xlu0 %v429, 16
    %v432 = vpop.permute.xlu0 %431
    %v434 = vadd.f32 %v424, %v432
    %v435 = vtanh.pop %v434
    %437 = vrot.lane.b32.xlu0 %v435, 32
    %v438 = vpop.permute.xlu0 %437
    %v440 = vmul.f32 %v418, %v438
    %442 = vrot.lane.b32.xlu0 %v440, 80
    %v443 = vpop.permute.xlu0 %442
    %445 = vst.msk [vmem:[#allocation5 + $0x7] sm:$0x1] %vm336, %v443
    %v446 = vld [vmem:[#allocation2 + $0x1] sm:$0x1]
    %v447 = vsel %vm65, %v334, 0
    %449 = vmatprep.subr.mxu0 0.0
    %450 = vmatpush1.msra.mxu0 0.0
    %451 = vmatprep.subr.mxu0 0.0
    %452 = vmatpush1.msra.mxu0 0.0
    %453 = vmatprep.subr.mxu0 0.0
    %454 = vmatpush1.msra.mxu0 0.0
    %455 = vmatprep.subr.mxu0 0.0
    %456 = vmatpush1.msra.mxu0 0.0
    %457 = vmatprep.subr.mxu0 0.0
    %458 = vmatpush1.msra.mxu0 0.0
    %459 = vmatprep.subr.mxu0 0.0
    %460 = vmatpush1.msra.mxu0 0.0
    %461 = vmatprep.subr.mxu0 0.0
    %462 = vmatpush1.msra.mxu0 0.0
    %463 = vmatprep.subr.mxu0 0.0
    %464 = vmatpush1.msra.mxu0 0.0
    %465 = vmatprep.subr.mxu0 0.0
    %466 = vmatpush1.msra.mxu0 0.0
    %467 = vmatprep.subr.mxu0 0.0
    %468 = vmatpush1.msra.mxu0 0.0
    %469 = vmatprep.subr.mxu0 0.0
    %470 = vmatpush1.msra.mxu0 0.0
    %471 = vmatprep.subr.mxu0 0.0
    %472 = vmatpush1.msra.mxu0 0.0
    %473 = vmatprep.subr.mxu0 0.0
    %474 = vmatpush1.msra.mxu0 0.0
    %475 = vmatprep.subr.mxu0 0.0
    %476 = vmatpush1.msra.mxu0 0.0
    %477 = vmatprep.subr.mxu0 0.0
    %478 = vmatpush1.msra.mxu0 %v222
    %479 = vmatprep.subr.mxu0 0.0
    %480 = vmatpush1.msra.mxu0 %v221
    %481 = vmatprep.subr.mxu0 0.0
    %482 = vmatpush2.msra.mxu0 0.0
    %483 = vmatprep.subr.mxu0 0.0
    %484 = vmatpush2.msra.mxu0 0.0
    %485 = vmatprep.subr.mxu0 0.0
    %486 = vmatpush2.msra.mxu0 0.0
    %487 = vmatprep.subr.mxu0 0.0
    %488 = vmatpush2.msra.mxu0 0.0
    %489 = vmatprep.subr.mxu0 0.0
    %490 = vmatpush2.msra.mxu0 0.0
    %491 = vmatprep.subr.mxu0 0.0
    %492 = vmatpush2.msra.mxu0 0.0
    %493 = vmatprep.subr.mxu0 0.0
    %494 = vmatpush2.msra.mxu0 0.0
    %495 = vmatprep.subr.mxu0 0.0
    %496 = vmatpush2.msra.mxu0 0.0
    %497 = vmatprep.subr.mxu0 0.0
    %498 = vmatpush2.msra.mxu0 0.0
    %499 = vmatprep.subr.mxu0 0.0
    %500 = vmatpush2.msra.mxu0 0.0
    %501 = vmatprep.subr.mxu0 0.0
    %502 = vmatpush2.msra.mxu0 0.0
    %503 = vmatprep.subr.mxu0 0.0
    %504 = vmatpush2.msra.mxu0 0.0
    %505 = vmatprep.subr.mxu0 0.0
    %506 = vmatpush2.msra.mxu0 0.0
    %507 = vmatprep.subr.mxu0 0.0
    %508 = vmatpush2.msra.mxu0 0.0
    %509 = vmatprep.subr.mxu0 0.0
    %510 = vmatpush2.msra.mxu0 0.0
    %511 = vmatprep.subr.mxu0 0.0
    %512 = vmatpush2.msra.mxu0 0.0
    %513 = vmatprep.mubr.f32.mxu0 0.0
    %514 = vmatmul.mubr.f32.gmra.mxu0 %v447
    %v515 = vpop.f32.mrf.mxu0
    %v516 = vadd.f32 0.0, %v515
    %v517 = vpop.f32.mrf.mxu0
    %518 = vdwg.mxu0
    %v519 = vadd.f32 %v446, %v516
    %v520 = vxor.u32 %v519, 2147483648
    %v521 = vmul.f32 %v520, 1.442695
    %v522 = vpow.pop %v521
    %v523 = vadd.f32 %v522, 1.0
    %v524 = vrcp.pop %v523
    %v525 = vmul.f32 1.0, %v524
    %v526 = vtanh.pop %v519
    %v527 = vmul.f32 %v525, %v325
    %529 = vrot.lane.b32.xlu0 %v526, 96
    %v530 = vpop.permute.xlu0 %529
    %v532 = vmul.f32 %v525, %v530
    %534 = vrot.lane.b32.xlu0 %v532, 16
    %v535 = vpop.permute.xlu0 %534
    %v537 = vadd.f32 %v527, %v535
    %v538 = vtanh.pop %v537
    %540 = vrot.lane.b32.xlu0 %v538, 32
    %v541 = vpop.permute.xlu0 %540
    %v543 = vmul.f32 %v525, %v541
    %545 = vrot.lane.b32.xlu0 %v543, 80
    %v546 = vpop.permute.xlu0 %545
    %548 = vst.msk [vmem:[#allocation4 + $0x1] sm:$0x1] %vm336, %v546
    %v549 = vld [vmem:[#allocation3 + $0x6] sm:$0x1]
    %v550 = vsel %vm65, %v443, 0
    %552 = vmatprep.subr.mxu0 0.0
    %553 = vmatpush1.msra.mxu0 0.0
    %554 = vmatprep.subr.mxu0 0.0
    %555 = vmatpush1.msra.mxu0 0.0
    %556 = vmatprep.subr.mxu0 0.0
    %557 = vmatpush1.msra.mxu0 0.0
    %558 = vmatprep.subr.mxu0 0.0
    %559 = vmatpush1.msra.mxu0 0.0
    %560 = vmatprep.subr.mxu0 0.0
    %561 = vmatpush1.msra.mxu0 0.0
    %562 = vmatprep.subr.mxu0 0.0
    %563 = vmatpush1.msra.mxu0 0.0
    %564 = vmatprep.subr.mxu0 0.0
    %565 = vmatpush1.msra.mxu0 0.0
    %566 = vmatprep.subr.mxu0 0.0
    %567 = vmatpush1.msra.mxu0 0.0
    %568 = vmatprep.subr.mxu0 0.0
    %569 = vmatpush1.msra.mxu0 0.0
    %570 = vmatprep.subr.mxu0 0.0
    %571 = vmatpush1.msra.mxu0 0.0
    %572 = vmatprep.subr.mxu0 0.0
    %573 = vmatpush1.msra.mxu0 0.0
    %574 = vmatprep.subr.mxu0 0.0
    %575 = vmatpush1.msra.mxu0 0.0
    %576 = vmatprep.subr.mxu0 0.0
    %577 = vmatpush1.msra.mxu0 0.0
    %578 = vmatprep.subr.mxu0 0.0
    %579 = vmatpush1.msra.mxu0 0.0
    %580 = vmatprep.subr.mxu0 0.0
    %581 = vmatpush1.msra.mxu0 %v224
    %582 = vmatprep.subr.mxu0 0.0
    %583 = vmatpush1.msra.mxu0 %v223
    %584 = vmatprep.subr.mxu0 0.0
    %585 = vmatpush2.msra.mxu0 0.0
    %586 = vmatprep.subr.mxu0 0.0
    %587 = vmatpush2.msra.mxu0 0.0
    %588 = vmatprep.subr.mxu0 0.0
    %589 = vmatpush2.msra.mxu0 0.0
    %590 = vmatprep.subr.mxu0 0.0
    %591 = vmatpush2.msra.mxu0 0.0
    %592 = vmatprep.subr.mxu0 0.0
    %593 = vmatpush2.msra.mxu0 0.0
    %594 = vmatprep.subr.mxu0 0.0
    %595 = vmatpush2.msra.mxu0 0.0
    %596 = vmatprep.subr.mxu0 0.0
    %597 = vmatpush2.msra.mxu0 0.0
    %598 = vmatprep.subr.mxu0 0.0
    %599 = vmatpush2.msra.mxu0 0.0
    %600 = vmatprep.subr.mxu0 0.0
    %601 = vmatpush2.msra.mxu0 0.0
    %602 = vmatprep.subr.mxu0 0.0
    %603 = vmatpush2.msra.mxu0 0.0
    %604 = vmatprep.subr.mxu0 0.0
    %605 = vmatpush2.msra.mxu0 0.0
    %606 = vmatprep.subr.mxu0 0.0
    %607 = vmatpush2.msra.mxu0 0.0
    %608 = vmatprep.subr.mxu0 0.0
    %609 = vmatpush2.msra.mxu0 0.0
    %610 = vmatprep.subr.mxu0 0.0
    %611 = vmatpush2.msra.mxu0 0.0
    %612 = vmatprep.subr.mxu0 0.0
    %613 = vmatpush2.msra.mxu0 0.0
    %614 = vmatprep.subr.mxu0 0.0
    %615 = vmatpush2.msra.mxu0 0.0
    %616 = vmatprep.mubr.f32.mxu0 0.0
    %617 = vmatmul.mubr.f32.gmra.mxu0 %v550
    %v618 = vpop.f32.mrf.mxu0
    %v619 = vadd.f32 0.0, %v618
    %v620 = vpop.f32.mrf.mxu0
    %621 = vdwg.mxu0
    %v622 = vadd.f32 %v549, %v619
    %v623 = vxor.u32 %v622, 2147483648
    %v624 = vmul.f32 %v623, 1.442695
    %v625 = vpow.pop %v624
    %v626 = vadd.f32 %v625, 1.0
    %v627 = vrcp.pop %v626
    %v628 = vmul.f32 1.0, %v627
    %v629 = vtanh.pop %v622
    %v630 = vmul.f32 %v628, %v434
    %632 = vrot.lane.b32.xlu0 %v629, 96
    %v633 = vpop.permute.xlu0 %632
    %v635 = vmul.f32 %v628, %v633
    %637 = vrot.lane.b32.xlu0 %v635, 16
    %v638 = vpop.permute.xlu0 %637
    %v640 = vadd.f32 %v630, %v638
    %v641 = vtanh.pop %v640
    %643 = vrot.lane.b32.xlu0 %v641, 32
    %v644 = vpop.permute.xlu0 %643
    %v646 = vmul.f32 %v628, %v644
    %648 = vrot.lane.b32.xlu0 %v646, 80
    %v649 = vpop.permute.xlu0 %648
    %651 = vst.msk [vmem:[#allocation5 + $0x6] sm:$0x1] %vm336, %v649
    %v652 = vld [vmem:[#allocation2 + $0x2] sm:$0x1]
    %v653 = vsel %vm65, %v546, 0
    %655 = vmatprep.subr.mxu0 0.0
    %656 = vmatpush1.msra.mxu0 0.0
    %657 = vmatprep.subr.mxu0 0.0
    %658 = vmatpush1.msra.mxu0 0.0
    %659 = vmatprep.subr.mxu0 0.0
    %660 = vmatpush1.msra.mxu0 0.0
    %661 = vmatprep.subr.mxu0 0.0
    %662 = vmatpush1.msra.mxu0 0.0
    %663 = vmatprep.subr.mxu0 0.0
    %664 = vmatpush1.msra.mxu0 0.0
    %665 = vmatprep.subr.mxu0 0.0
    %666 = vmatpush1.msra.mxu0 0.0
    %667 = vmatprep.subr.mxu0 0.0
    %668 = vmatpush1.msra.mxu0 0.0
    %669 = vmatprep.subr.mxu0 0.0
    %670 = vmatpush1.msra.mxu0 0.0
    %671 = vmatprep.subr.mxu0 0.0
    %672 = vmatpush1.msra.mxu0 0.0
    %673 = vmatprep.subr.mxu0 0.0
    %674 = vmatpush1.msra.mxu0 0.0
    %675 = vmatprep.subr.mxu0 0.0
    %676 = vmatpush1.msra.mxu0 0.0
    %677 = vmatprep.subr.mxu0 0.0
    %678 = vmatpush1.msra.mxu0 0.0
    %679 = vmatprep.subr.mxu0 0.0
    %680 = vmatpush1.msra.mxu0 0.0
    %681 = vmatprep.subr.mxu0 0.0
    %682 = vmatpush1.msra.mxu0 0.0
    %683 = vmatprep.subr.mxu0 0.0
    %684 = vmatpush1.msra.mxu0 %v222
    %685 = vmatprep.subr.mxu0 0.0
    %686 = vmatpush1.msra.mxu0 %v221
    %687 = vmatprep.subr.mxu0 0.0
    %688 = vmatpush2.msra.mxu0 0.0
    %689 = vmatprep.subr.mxu0 0.0
    %690 = vmatpush2.msra.mxu0 0.0
    %691 = vmatprep.subr.mxu0 0.0
    %692 = vmatpush2.msra.mxu0 0.0
    %693 = vmatprep.subr.mxu0 0.0
    %694 = vmatpush2.msra.mxu0 0.0
    %695 = vmatprep.subr.mxu0 0.0
    %696 = vmatpush2.msra.mxu0 0.0
    %697 = vmatprep.subr.mxu0 0.0
    %698 = vmatpush2.msra.mxu0 0.0
    %699 = vmatprep.subr.mxu0 0.0
    %700 = vmatpush2.msra.mxu0 0.0
    %701 = vmatprep.subr.mxu0 0.0
    %702 = vmatpush2.msra.mxu0 0.0
    %703 = vmatprep.subr.mxu0 0.0
    %704 = vmatpush2.msra.mxu0 0.0
    %705 = vmatprep.subr.mxu0 0.0
    %706 = vmatpush2.msra.mxu0 0.0
    %707 = vmatprep.subr.mxu0 0.0
    %708 = vmatpush2.msra.mxu0 0.0
    %709 = vmatprep.subr.mxu0 0.0
    %710 = vmatpush2.msra.mxu0 0.0
    %711 = vmatprep.subr.mxu0 0.0
    %712 = vmatpush2.msra.mxu0 0.0
    %713 = vmatprep.subr.mxu0 0.0
    %714 = vmatpush2.msra.mxu0 0.0
    %715 = vmatprep.subr.mxu0 0.0
    %716 = vmatpush2.msra.mxu0 0.0
    %717 = vmatprep.subr.mxu0 0.0
    %718 = vmatpush2.msra.mxu0 0.0
    %719 = vmatprep.mubr.f32.mxu0 0.0
    %720 = vmatmul.mubr.f32.gmra.mxu0 %v653
    %v721 = vpop.f32.mrf.mxu0
    %v722 = vadd.f32 0.0, %v721
    %v723 = vpop.f32.mrf.mxu0
    %724 = vdwg.mxu0
    %v725 = vadd.f32 %v652, %v722
    %v726 = vxor.u32 %v725, 2147483648
    %v727 = vmul.f32 %v726, 1.442695
    %v728 = vpow.pop %v727
    %v729 = vadd.f32 %v728, 1.0
    %v730 = vrcp.pop %v729
    %v731 = vmul.f32 1.0, %v730
    %v732 = vtanh.pop %v725
    %v733 = vmul.f32 %v731, %v537
    %735 = vrot.lane.b32.xlu0 %v732, 96
    %v736 = vpop.permute.xlu0 %735
    %v738 = vmul.f32 %v731, %v736
    %740 = vrot.lane.b32.xlu0 %v738, 16
    %v741 = vpop.permute.xlu0 %740
    %v743 = vadd.f32 %v733, %v741
    %v744 = vtanh.pop %v743
    %746 = vrot.lane.b32.xlu0 %v744, 32
    %v747 = vpop.permute.xlu0 %746
    %v749 = vmul.f32 %v731, %v747
    %751 = vrot.lane.b32.xlu0 %v749, 80
    %v752 = vpop.permute.xlu0 %751
    %754 = vst.msk [vmem:[#allocation4 + $0x2] sm:$0x1] %vm336, %v752
    %v755 = vld [vmem:[#allocation3 + $0x5] sm:$0x1]
    %v756 = vsel %vm65, %v649, 0
    %758 = vmatprep.subr.mxu0 0.0
    %759 = vmatpush1.msra.mxu0 0.0
    %760 = vmatprep.subr.mxu0 0.0
    %761 = vmatpush1.msra.mxu0 0.0
    %762 = vmatprep.subr.mxu0 0.0
    %763 = vmatpush1.msra.mxu0 0.0
    %764 = vmatprep.subr.mxu0 0.0
    %765 = vmatpush1.msra.mxu0 0.0
    %766 = vmatprep.subr.mxu0 0.0
    %767 = vmatpush1.msra.mxu0 0.0
    %768 = vmatprep.subr.mxu0 0.0
    %769 = vmatpush1.msra.mxu0 0.0
    %770 = vmatprep.subr.mxu0 0.0
    %771 = vmatpush1.msra.mxu0 0.0
    %772 = vmatprep.subr.mxu0 0.0
    %773 = vmatpush1.msra.mxu0 0.0
    %774 = vmatprep.subr.mxu0 0.0
    %775 = vmatpush1.msra.mxu0 0.0
    %776 = vmatprep.subr.mxu0 0.0
    %777 = vmatpush1.msra.mxu0 0.0
    %778 = vmatprep.subr.mxu0 0.0
    %779 = vmatpush1.msra.mxu0 0.0
    %780 = vmatprep.subr.mxu0 0.0
    %781 = vmatpush1.msra.mxu0 0.0
    %782 = vmatprep.subr.mxu0 0.0
    %783 = vmatpush1.msra.mxu0 0.0
    %784 = vmatprep.subr.mxu0 0.0
    %785 = vmatpush1.msra.mxu0 0.0
    %786 = vmatprep.subr.mxu0 0.0
    %787 = vmatpush1.msra.mxu0 %v224
    %788 = vmatprep.subr.mxu0 0.0
    %789 = vmatpush1.msra.mxu0 %v223
    %790 = vmatprep.subr.mxu0 0.0
    %791 = vmatpush2.msra.mxu0 0.0
    %792 = vmatprep.subr.mxu0 0.0
    %793 = vmatpush2.msra.mxu0 0.0
    %794 = vmatprep.subr.mxu0 0.0
    %795 = vmatpush2.msra.mxu0 0.0
    %796 = vmatprep.subr.mxu0 0.0
    %797 = vmatpush2.msra.mxu0 0.0
    %798 = vmatprep.subr.mxu0 0.0
    %799 = vmatpush2.msra.mxu0 0.0
    %800 = vmatprep.subr.mxu0 0.0
    %801 = vmatpush2.msra.mxu0 0.0
    %802 = vmatprep.subr.mxu0 0.0
    %803 = vmatpush2.msra.mxu0 0.0
    %804 = vmatprep.subr.mxu0 0.0
    %805 = vmatpush2.msra.mxu0 0.0
    %806 = vmatprep.subr.mxu0 0.0
    %807 = vmatpush2.msra.mxu0 0.0
    %808 = vmatprep.subr.mxu0 0.0
    %809 = vmatpush2.msra.mxu0 0.0
    %810 = vmatprep.subr.mxu0 0.0
    %811 = vmatpush2.msra.mxu0 0.0
    %812 = vmatprep.subr.mxu0 0.0
    %813 = vmatpush2.msra.mxu0 0.0
    %814 = vmatprep.subr.mxu0 0.0
    %815 = vmatpush2.msra.mxu0 0.0
    %816 = vmatprep.subr.mxu0 0.0
    %817 = vmatpush2.msra.mxu0 0.0
    %818 = vmatprep.subr.mxu0 0.0
    %819 = vmatpush2.msra.mxu0 0.0
    %820 = vmatprep.subr.mxu0 0.0
    %821 = vmatpush2.msra.mxu0 0.0
    %822 = vmatprep.mubr.f32.mxu0 0.0
    %823 = vmatmul.mubr.f32.gmra.mxu0 %v756
    %v824 = vpop.f32.mrf.mxu0
    %v825 = vadd.f32 0.0, %v824
    %v826 = vpop.f32.mrf.mxu0
    %827 = vdwg.mxu0
    %v828 = vadd.f32 %v755, %v825
    %v829 = vxor.u32 %v828, 2147483648
    %v830 = vmul.f32 %v829, 1.442695
    %v831 = vpow.pop %v830
    %v832 = vadd.f32 %v831, 1.0
    %v833 = vrcp.pop %v832
    %v834 = vmul.f32 1.0, %v833
    %v835 = vtanh.pop %v828
    %v836 = vmul.f32 %v834, %v640
    %838 = vrot.lane.b32.xlu0 %v835, 96
    %v839 = vpop.permute.xlu0 %838
    %v841 = vmul.f32 %v834, %v839
    %843 = vrot.lane.b32.xlu0 %v841, 16
    %v844 = vpop.permute.xlu0 %843
    %v846 = vadd.f32 %v836, %v844
    %v847 = vtanh.pop %v846
    %849 = vrot.lane.b32.xlu0 %v847, 32
    %v850 = vpop.permute.xlu0 %849
    %v852 = vmul.f32 %v834, %v850
    %854 = vrot.lane.b32.xlu0 %v852, 80
    %v855 = vpop.permute.xlu0 %854
    %857 = vst.msk [vmem:[#allocation5 + $0x5] sm:$0x1] %vm336, %v855
    %v858 = vld [vmem:[#allocation2 + $0x3] sm:$0x1]
    %v859 = vsel %vm65, %v752, 0
    %861 = vmatprep.subr.mxu0 0.0
    %862 = vmatpush1.msra.mxu0 0.0
    %863 = vmatprep.subr.mxu0 0.0
    %864 = vmatpush1.msra.mxu0 0.0
    %865 = vmatprep.subr.mxu0 0.0
    %866 = vmatpush1.msra.mxu0 0.0
    %867 = vmatprep.subr.mxu0 0.0
    %868 = vmatpush1.msra.mxu0 0.0
    %869 = vmatprep.subr.mxu0 0.0
    %870 = vmatpush1.msra.mxu0 0.0
    %871 = vmatprep.subr.mxu0 0.0
    %872 = vmatpush1.msra.mxu0 0.0
    %873 = vmatprep.subr.mxu0 0.0
    %874 = vmatpush1.msra.mxu0 0.0
    %875 = vmatprep.subr.mxu0 0.0
    %876 = vmatpush1.msra.mxu0 0.0
    %877 = vmatprep.subr.mxu0 0.0
    %878 = vmatpush1.msra.mxu0 0.0
    %879 = vmatprep.subr.mxu0 0.0
    %880 = vmatpush1.msra.mxu0 0.0
    %881 = vmatprep.subr.mxu0 0.0
    %882 = vmatpush1.msra.mxu0 0.0
    %883 = vmatprep.subr.mxu0 0.0
    %884 = vmatpush1.msra.mxu0 0.0
    %885 = vmatprep.subr.mxu0 0.0
    %886 = vmatpush1.msra.mxu0 0.0
    %887 = vmatprep.subr.mxu0 0.0
    %888 = vmatpush1.msra.mxu0 0.0
    %889 = vmatprep.subr.mxu0 0.0
    %890 = vmatpush1.msra.mxu0 %v222
    %891 = vmatprep.subr.mxu0 0.0
    %892 = vmatpush1.msra.mxu0 %v221
    %893 = vmatprep.subr.mxu0 0.0
    %894 = vmatpush2.msra.mxu0 0.0
    %895 = vmatprep.subr.mxu0 0.0
    %896 = vmatpush2.msra.mxu0 0.0
    %897 = vmatprep.subr.mxu0 0.0
    %898 = vmatpush2.msra.mxu0 0.0
    %899 = vmatprep.subr.mxu0 0.0
    %900 = vmatpush2.msra.mxu0 0.0
    %901 = vmatprep.subr.mxu0 0.0
    %902 = vmatpush2.msra.mxu0 0.0
    %903 = vmatprep.subr.mxu0 0.0
    %904 = vmatpush2.msra.mxu0 0.0
    %905 = vmatprep.subr.mxu0 0.0
    %906 = vmatpush2.msra.mxu0 0.0
    %907 = vmatprep.subr.mxu0 0.0
    %908 = vmatpush2.msra.mxu0 0.0
    %909 = vmatprep.subr.mxu0 0.0
    %910 = vmatpush2.msra.mxu0 0.0
    %911 = vmatprep.subr.mxu0 0.0
    %912 = vmatpush2.msra.mxu0 0.0
    %913 = vmatprep.subr.mxu0 0.0
    %914 = vmatpush2.msra.mxu0 0.0
    %915 = vmatprep.subr.mxu0 0.0
    %916 = vmatpush2.msra.mxu0 0.0
    %917 = vmatprep.subr.mxu0 0.0
    %918 = vmatpush2.msra.mxu0 0.0
    %919 = vmatprep.subr.mxu0 0.0
    %920 = vmatpush2.msra.mxu0 0.0
    %921 = vmatprep.subr.mxu0 0.0
    %922 = vmatpush2.msra.mxu0 0.0
    %923 = vmatprep.subr.mxu0 0.0
    %924 = vmatpush2.msra.mxu0 0.0
    %925 = vmatprep.mubr.f32.mxu0 0.0
    %926 = vmatmul.mubr.f32.gmra.mxu0 %v859
    %v927 = vpop.f32.mrf.mxu0
    %v928 = vadd.f32 0.0, %v927
    %v929 = vpop.f32.mrf.mxu0
    %930 = vdwg.mxu0
    %v931 = vadd.f32 %v858, %v928
    %v932 = vxor.u32 %v931, 2147483648
    %v933 = vmul.f32 %v932, 1.442695
    %v934 = vpow.pop %v933
    %v935 = vadd.f32 %v934, 1.0
    %v936 = vrcp.pop %v935
    %v937 = vmul.f32 1.0, %v936
    %v938 = vtanh.pop %v931
    %v939 = vmul.f32 %v937, %v743
    %941 = vrot.lane.b32.xlu0 %v938, 96
    %v942 = vpop.permute.xlu0 %941
    %v944 = vmul.f32 %v937, %v942
    %946 = vrot.lane.b32.xlu0 %v944, 16
    %v947 = vpop.permute.xlu0 %946
    %v949 = vadd.f32 %v939, %v947
    %v950 = vtanh.pop %v949
    %952 = vrot.lane.b32.xlu0 %v950, 32
    %v953 = vpop.permute.xlu0 %952
    %v955 = vmul.f32 %v937, %v953
    %957 = vrot.lane.b32.xlu0 %v955, 80
    %v958 = vpop.permute.xlu0 %957
    %960 = vst.msk [vmem:[#allocation4 + $0x3] sm:$0x1] %vm336, %v958
    %v961 = vld [vmem:[#allocation3 + $0x4] sm:$0x1]
    %v962 = vsel %vm65, %v855, 0
    %964 = vmatprep.subr.mxu0 0.0
    %965 = vmatpush1.msra.mxu0 0.0
    %966 = vmatprep.subr.mxu0 0.0
    %967 = vmatpush1.msra.mxu0 0.0
    %968 = vmatprep.subr.mxu0 0.0
    %969 = vmatpush1.msra.mxu0 0.0
    %970 = vmatprep.subr.mxu0 0.0
    %971 = vmatpush1.msra.mxu0 0.0
    %972 = vmatprep.subr.mxu0 0.0
    %973 = vmatpush1.msra.mxu0 0.0
    %974 = vmatprep.subr.mxu0 0.0
    %975 = vmatpush1.msra.mxu0 0.0
    %976 = vmatprep.subr.mxu0 0.0
    %977 = vmatpush1.msra.mxu0 0.0
    %978 = vmatprep.subr.mxu0 0.0
    %979 = vmatpush1.msra.mxu0 0.0
    %980 = vmatprep.subr.mxu0 0.0
    %981 = vmatpush1.msra.mxu0 0.0
    %982 = vmatprep.subr.mxu0 0.0
    %983 = vmatpush1.msra.mxu0 0.0
    %984 = vmatprep.subr.mxu0 0.0
    %985 = vmatpush1.msra.mxu0 0.0
    %986 = vmatprep.subr.mxu0 0.0
    %987 = vmatpush1.msra.mxu0 0.0
    %988 = vmatprep.subr.mxu0 0.0
    %989 = vmatpush1.msra.mxu0 0.0
    %990 = vmatprep.subr.mxu0 0.0
    %991 = vmatpush1.msra.mxu0 0.0
    %992 = vmatprep.subr.mxu0 0.0
    %993 = vmatpush1.msra.mxu0 %v224
    %994 = vmatprep.subr.mxu0 0.0
    %995 = vmatpush1.msra.mxu0 %v223
    %996 = vmatprep.subr.mxu0 0.0
    %997 = vmatpush2.msra.mxu0 0.0
    %998 = vmatprep.subr.mxu0 0.0
    %999 = vmatpush2.msra.mxu0 0.0
    %1000 = vmatprep.subr.mxu0 0.0
    %1001 = vmatpush2.msra.mxu0 0.0
    %1002 = vmatprep.subr.mxu0 0.0
    %1003 = vmatpush2.msra.mxu0 0.0
    %1004 = vmatprep.subr.mxu0 0.0
    %1005 = vmatpush2.msra.mxu0 0.0
    %1006 = vmatprep.subr.mxu0 0.0
    %1007 = vmatpush2.msra.mxu0 0.0
    %1008 = vmatprep.subr.mxu0 0.0
    %1009 = vmatpush2.msra.mxu0 0.0
    %1010 = vmatprep.subr.mxu0 0.0
    %1011 = vmatpush2.msra.mxu0 0.0
    %1012 = vmatprep.subr.mxu0 0.0
    %1013 = vmatpush2.msra.mxu0 0.0
    %1014 = vmatprep.subr.mxu0 0.0
    %1015 = vmatpush2.msra.mxu0 0.0
    %1016 = vmatprep.subr.mxu0 0.0
    %1017 = vmatpush2.msra.mxu0 0.0
    %1018 = vmatprep.subr.mxu0 0.0
    %1019 = vmatpush2.msra.mxu0 0.0
    %1020 = vmatprep.subr.mxu0 0.0
    %1021 = vmatpush2.msra.mxu0 0.0
    %1022 = vmatprep.subr.mxu0 0.0
    %1023 = vmatpush2.msra.mxu0 0.0
    %1024 = vmatprep.subr.mxu0 0.0
    %1025 = vmatpush2.msra.mxu0 0.0
    %1026 = vmatprep.subr.mxu0 0.0
    %1027 = vmatpush2.msra.mxu0 0.0
    %1028 = vmatprep.mubr.f32.mxu0 0.0
    %1029 = vmatmul.mubr.f32.gmra.mxu0 %v962
    %v1030 = vpop.f32.mrf.mxu0
    %v1031 = vadd.f32 0.0, %v1030
    %v1032 = vpop.f32.mrf.mxu0
    %1033 = vdwg.mxu0
    %v1034 = vadd.f32 %v961, %v1031
    %v1035 = vxor.u32 %v1034, 2147483648
    %v1036 = vmul.f32 %v1035, 1.442695
    %v1037 = vpow.pop %v1036
    %v1038 = vadd.f32 %v1037, 1.0
    %v1039 = vrcp.pop %v1038
    %v1040 = vmul.f32 1.0, %v1039
    %v1041 = vtanh.pop %v1034
    %v1042 = vmul.f32 %v1040, %v846
    %1044 = vrot.lane.b32.xlu0 %v1041, 96
    %v1045 = vpop.permute.xlu0 %1044
    %v1047 = vmul.f32 %v1040, %v1045
    %1049 = vrot.lane.b32.xlu0 %v1047, 16
    %v1050 = vpop.permute.xlu0 %1049
    %v1052 = vadd.f32 %v1042, %v1050
    %v1053 = vtanh.pop %v1052
    %1055 = vrot.lane.b32.xlu0 %v1053, 32
    %v1056 = vpop.permute.xlu0 %1055
    %v1058 = vmul.f32 %v1040, %v1056
    %1060 = vrot.lane.b32.xlu0 %v1058, 80
    %v1061 = vpop.permute.xlu0 %1060
    %1063 = vst.msk [vmem:[#allocation5 + $0x4] sm:$0x1] %vm336, %v1061
    %v1064 = vld [vmem:[#allocation2 + $0x4] sm:$0x1]
    %v1065 = vsel %vm65, %v958, 0
    %1067 = vmatprep.subr.mxu0 0.0
    %1068 = vmatpush1.msra.mxu0 0.0
    %1069 = vmatprep.subr.mxu0 0.0
    %1070 = vmatpush1.msra.mxu0 0.0
    %1071 = vmatprep.subr.mxu0 0.0
    %1072 = vmatpush1.msra.mxu0 0.0
    %1073 = vmatprep.subr.mxu0 0.0
    %1074 = vmatpush1.msra.mxu0 0.0
    %1075 = vmatprep.subr.mxu0 0.0
    %1076 = vmatpush1.msra.mxu0 0.0
    %1077 = vmatprep.subr.mxu0 0.0
    %1078 = vmatpush1.msra.mxu0 0.0
    %1079 = vmatprep.subr.mxu0 0.0
    %1080 = vmatpush1.msra.mxu0 0.0
    %1081 = vmatprep.subr.mxu0 0.0
    %1082 = vmatpush1.msra.mxu0 0.0
    %1083 = vmatprep.subr.mxu0 0.0
    %1084 = vmatpush1.msra.mxu0 0.0
    %1085 = vmatprep.subr.mxu0 0.0
    %1086 = vmatpush1.msra.mxu0 0.0
    %1087 = vmatprep.subr.mxu0 0.0
    %1088 = vmatpush1.msra.mxu0 0.0
    %1089 = vmatprep.subr.mxu0 0.0
    %1090 = vmatpush1.msra.mxu0 0.0
    %1091 = vmatprep.subr.mxu0 0.0
    %1092 = vmatpush1.msra.mxu0 0.0
    %1093 = vmatprep.subr.mxu0 0.0
    %1094 = vmatpush1.msra.mxu0 0.0
    %1095 = vmatprep.subr.mxu0 0.0
    %1096 = vmatpush1.msra.mxu0 %v222
    %1097 = vmatprep.subr.mxu0 0.0
    %1098 = vmatpush1.msra.mxu0 %v221
    %1099 = vmatprep.subr.mxu0 0.0
    %1100 = vmatpush2.msra.mxu0 0.0
    %1101 = vmatprep.subr.mxu0 0.0
    %1102 = vmatpush2.msra.mxu0 0.0
    %1103 = vmatprep.subr.mxu0 0.0
    %1104 = vmatpush2.msra.mxu0 0.0
    %1105 = vmatprep.subr.mxu0 0.0
    %1106 = vmatpush2.msra.mxu0 0.0
    %1107 = vmatprep.subr.mxu0 0.0
    %1108 = vmatpush2.msra.mxu0 0.0
    %1109 = vmatprep.subr.mxu0 0.0
    %1110 = vmatpush2.msra.mxu0 0.0
    %1111 = vmatprep.subr.mxu0 0.0
    %1112 = vmatpush2.msra.mxu0 0.0
    %1113 = vmatprep.subr.mxu0 0.0
    %1114 = vmatpush2.msra.mxu0 0.0
    %1115 = vmatprep.subr.mxu0 0.0
    %1116 = vmatpush2.msra.mxu0 0.0
    %1117 = vmatprep.subr.mxu0 0.0
    %1118 = vmatpush2.msra.mxu0 0.0
    %1119 = vmatprep.subr.mxu0 0.0
    %1120 = vmatpush2.msra.mxu0 0.0
    %1121 = vmatprep.subr.mxu0 0.0
    %1122 = vmatpush2.msra.mxu0 0.0
    %1123 = vmatprep.subr.mxu0 0.0
    %1124 = vmatpush2.msra.mxu0 0.0
    %1125 = vmatprep.subr.mxu0 0.0
    %1126 = vmatpush2.msra.mxu0 0.0
    %1127 = vmatprep.subr.mxu0 0.0
    %1128 = vmatpush2.msra.mxu0 0.0
    %1129 = vmatprep.subr.mxu0 0.0
    %1130 = vmatpush2.msra.mxu0 0.0
    %1131 = vmatprep.mubr.f32.mxu0 0.0
    %1132 = vmatmul.mubr.f32.gmra.mxu0 %v1065
    %v1133 = vpop.f32.mrf.mxu0
    %v1134 = vadd.f32 0.0, %v1133
    %v1135 = vpop.f32.mrf.mxu0
    %1136 = vdwg.mxu0
    %v1137 = vadd.f32 %v1064, %v1134
    %v1138 = vxor.u32 %v1137, 2147483648
    %v1139 = vmul.f32 %v1138, 1.442695
    %v1140 = vpow.pop %v1139
    %v1141 = vadd.f32 %v1140, 1.0
    %v1142 = vrcp.pop %v1141
    %v1143 = vmul.f32 1.0, %v1142
    %v1144 = vtanh.pop %v1137
    %v1145 = vmul.f32 %v1143, %v949
    %1147 = vrot.lane.b32.xlu0 %v1144, 96
    %v1148 = vpop.permute.xlu0 %1147
    %v1150 = vmul.f32 %v1143, %v1148
    %1152 = vrot.lane.b32.xlu0 %v1150, 16
    %v1153 = vpop.permute.xlu0 %1152
    %v1155 = vadd.f32 %v1145, %v1153
    %v1156 = vtanh.pop %v1155
    %1158 = vrot.lane.b32.xlu0 %v1156, 32
    %v1159 = vpop.permute.xlu0 %1158
    %v1161 = vmul.f32 %v1143, %v1159
    %1163 = vrot.lane.b32.xlu0 %v1161, 80
    %v1164 = vpop.permute.xlu0 %1163
    %1166 = vst.msk [vmem:[#allocation4 + $0x4] sm:$0x1] %vm336, %v1164
    %v1167 = vld [vmem:[#allocation3 + $0x3] sm:$0x1]
    %v1168 = vsel %vm65, %v1061, 0
    %1170 = vmatprep.subr.mxu0 0.0
    %1171 = vmatpush1.msra.mxu0 0.0
    %1172 = vmatprep.subr.mxu0 0.0
    %1173 = vmatpush1.msra.mxu0 0.0
    %1174 = vmatprep.subr.mxu0 0.0
    %1175 = vmatpush1.msra.mxu0 0.0
    %1176 = vmatprep.subr.mxu0 0.0
    %1177 = vmatpush1.msra.mxu0 0.0
    %1178 = vmatprep.subr.mxu0 0.0
    %1179 = vmatpush1.msra.mxu0 0.0
    %1180 = vmatprep.subr.mxu0 0.0
    %1181 = vmatpush1.msra.mxu0 0.0
    %1182 = vmatprep.subr.mxu0 0.0
    %1183 = vmatpush1.msra.mxu0 0.0
    %1184 = vmatprep.subr.mxu0 0.0
    %1185 = vmatpush1.msra.mxu0 0.0
    %1186 = vmatprep.subr.mxu0 0.0
    %1187 = vmatpush1.msra.mxu0 0.0
    %1188 = vmatprep.subr.mxu0 0.0
    %1189 = vmatpush1.msra.mxu0 0.0
    %1190 = vmatprep.subr.mxu0 0.0
    %1191 = vmatpush1.msra.mxu0 0.0
    %1192 = vmatprep.subr.mxu0 0.0
    %1193 = vmatpush1.msra.mxu0 0.0
    %1194 = vmatprep.subr.mxu0 0.0
    %1195 = vmatpush1.msra.mxu0 0.0
    %1196 = vmatprep.subr.mxu0 0.0
    %1197 = vmatpush1.msra.mxu0 0.0
    %1198 = vmatprep.subr.mxu0 0.0
    %1199 = vmatpush1.msra.mxu0 %v224
    %1200 = vmatprep.subr.mxu0 0.0
    %1201 = vmatpush1.msra.mxu0 %v223
    %1202 = vmatprep.subr.mxu0 0.0
    %1203 = vmatpush2.msra.mxu0 0.0
    %1204 = vmatprep.subr.mxu0 0.0
    %1205 = vmatpush2.msra.mxu0 0.0
    %1206 = vmatprep.subr.mxu0 0.0
    %1207 = vmatpush2.msra.mxu0 0.0
    %1208 = vmatprep.subr.mxu0 0.0
    %1209 = vmatpush2.msra.mxu0 0.0
    %1210 = vmatprep.subr.mxu0 0.0
    %1211 = vmatpush2.msra.mxu0 0.0
    %1212 = vmatprep.subr.mxu0 0.0
    %1213 = vmatpush2.msra.mxu0 0.0
    %1214 = vmatprep.subr.mxu0 0.0
    %1215 = vmatpush2.msra.mxu0 0.0
    %1216 = vmatprep.subr.mxu0 0.0
    %1217 = vmatpush2.msra.mxu0 0.0
    %1218 = vmatprep.subr.mxu0 0.0
    %1219 = vmatpush2.msra.mxu0 0.0
    %1220 = vmatprep.subr.mxu0 0.0
    %1221 = vmatpush2.msra.mxu0 0.0
    %1222 = vmatprep.subr.mxu0 0.0
    %1223 = vmatpush2.msra.mxu0 0.0
    %1224 = vmatprep.subr.mxu0 0.0
    %1225 = vmatpush2.msra.mxu0 0.0
    %1226 = vmatprep.subr.mxu0 0.0
    %1227 = vmatpush2.msra.mxu0 0.0
    %1228 = vmatprep.subr.mxu0 0.0
    %1229 = vmatpush2.msra.mxu0 0.0
    %1230 = vmatprep.subr.mxu0 0.0
    %1231 = vmatpush2.msra.mxu0 0.0
    %1232 = vmatprep.subr.mxu0 0.0
    %1233 = vmatpush2.msra.mxu0 0.0
    %1234 = vmatprep.mubr.f32.mxu0 0.0
    %1235 = vmatmul.mubr.f32.gmra.mxu0 %v1168
    %v1236 = vpop.f32.mrf.mxu0
    %v1237 = vadd.f32 0.0, %v1236
    %v1238 = vpop.f32.mrf.mxu0
    %1239 = vdwg.mxu0
    %v1240 = vadd.f32 %v1167, %v1237
    %v1241 = vxor.u32 %v1240, 2147483648
    %v1242 = vmul.f32 %v1241, 1.442695
    %v1243 = vpow.pop %v1242
    %v1244 = vadd.f32 %v1243, 1.0
    %v1245 = vrcp.pop %v1244
    %v1246 = vmul.f32 1.0, %v1245
    %v1247 = vtanh.pop %v1240
    %v1248 = vmul.f32 %v1246, %v1052
    %1250 = vrot.lane.b32.xlu0 %v1247, 96
    %v1251 = vpop.permute.xlu0 %1250
    %v1253 = vmul.f32 %v1246, %v1251
    %1255 = vrot.lane.b32.xlu0 %v1253, 16
    %v1256 = vpop.permute.xlu0 %1255
    %v1258 = vadd.f32 %v1248, %v1256
    %v1259 = vtanh.pop %v1258
    %1261 = vrot.lane.b32.xlu0 %v1259, 32
    %v1262 = vpop.permute.xlu0 %1261
    %v1264 = vmul.f32 %v1246, %v1262
    %1266 = vrot.lane.b32.xlu0 %v1264, 80
    %v1267 = vpop.permute.xlu0 %1266
    %1269 = vst.msk [vmem:[#allocation5 + $0x3] sm:$0x1] %vm336, %v1267
    %v1270 = vld [vmem:[#allocation2 + $0x5] sm:$0x1]
    %v1271 = vsel %vm65, %v1164, 0
    %1273 = vmatprep.subr.mxu0 0.0
    %1274 = vmatpush1.msra.mxu0 0.0
    %1275 = vmatprep.subr.mxu0 0.0
    %1276 = vmatpush1.msra.mxu0 0.0
    %1277 = vmatprep.subr.mxu0 0.0
    %1278 = vmatpush1.msra.mxu0 0.0
    %1279 = vmatprep.subr.mxu0 0.0
    %1280 = vmatpush1.msra.mxu0 0.0
    %1281 = vmatprep.subr.mxu0 0.0
    %1282 = vmatpush1.msra.mxu0 0.0
    %1283 = vmatprep.subr.mxu0 0.0
    %1284 = vmatpush1.msra.mxu0 0.0
    %1285 = vmatprep.subr.mxu0 0.0
    %1286 = vmatpush1.msra.mxu0 0.0
    %1287 = vmatprep.subr.mxu0 0.0
    %1288 = vmatpush1.msra.mxu0 0.0
    %1289 = vmatprep.subr.mxu0 0.0
    %1290 = vmatpush1.msra.mxu0 0.0
    %1291 = vmatprep.subr.mxu0 0.0
    %1292 = vmatpush1.msra.mxu0 0.0
    %1293 = vmatprep.subr.mxu0 0.0
    %1294 = vmatpush1.msra.mxu0 0.0
    %1295 = vmatprep.subr.mxu0 0.0
    %1296 = vmatpush1.msra.mxu0 0.0
    %1297 = vmatprep.subr.mxu0 0.0
    %1298 = vmatpush1.msra.mxu0 0.0
    %1299 = vmatprep.subr.mxu0 0.0
    %1300 = vmatpush1.msra.mxu0 0.0
    %1301 = vmatprep.subr.mxu0 0.0
    %1302 = vmatpush1.msra.mxu0 %v222
    %1303 = vmatprep.subr.mxu0 0.0
    %1304 = vmatpush1.msra.mxu0 %v221
    %1305 = vmatprep.subr.mxu0 0.0
    %1306 = vmatpush2.msra.mxu0 0.0
    %1307 = vmatprep.subr.mxu0 0.0
    %1308 = vmatpush2.msra.mxu0 0.0
    %1309 = vmatprep.subr.mxu0 0.0
    %1310 = vmatpush2.msra.mxu0 0.0
    %1311 = vmatprep.subr.mxu0 0.0
    %1312 = vmatpush2.msra.mxu0 0.0
    %1313 = vmatprep.subr.mxu0 0.0
    %1314 = vmatpush2.msra.mxu0 0.0
    %1315 = vmatprep.subr.mxu0 0.0
    %1316 = vmatpush2.msra.mxu0 0.0
    %1317 = vmatprep.subr.mxu0 0.0
    %1318 = vmatpush2.msra.mxu0 0.0
    %1319 = vmatprep.subr.mxu0 0.0
    %1320 = vmatpush2.msra.mxu0 0.0
    %1321 = vmatprep.subr.mxu0 0.0
    %1322 = vmatpush2.msra.mxu0 0.0
    %1323 = vmatprep.subr.mxu0 0.0
    %1324 = vmatpush2.msra.mxu0 0.0
    %1325 = vmatprep.subr.mxu0 0.0
    %1326 = vmatpush2.msra.mxu0 0.0
    %1327 = vmatprep.subr.mxu0 0.0
    %1328 = vmatpush2.msra.mxu0 0.0
    %1329 = vmatprep.subr.mxu0 0.0
    %1330 = vmatpush2.msra.mxu0 0.0
    %1331 = vmatprep.subr.mxu0 0.0
    %1332 = vmatpush2.msra.mxu0 0.0
    %1333 = vmatprep.subr.mxu0 0.0
    %1334 = vmatpush2.msra.mxu0 0.0
    %1335 = vmatprep.subr.mxu0 0.0
    %1336 = vmatpush2.msra.mxu0 0.0
    %1337 = vmatprep.mubr.f32.mxu0 0.0
    %1338 = vmatmul.mubr.f32.gmra.mxu0 %v1271
    %v1339 = vpop.f32.mrf.mxu0
    %v1340 = vadd.f32 0.0, %v1339
    %v1341 = vpop.f32.mrf.mxu0
    %1342 = vdwg.mxu0
    %v1343 = vadd.f32 %v1270, %v1340
    %v1344 = vxor.u32 %v1343, 2147483648
    %v1345 = vmul.f32 %v1344, 1.442695
    %v1346 = vpow.pop %v1345
    %v1347 = vadd.f32 %v1346, 1.0
    %v1348 = vrcp.pop %v1347
    %v1349 = vmul.f32 1.0, %v1348
    %v1350 = vtanh.pop %v1343
    %v1351 = vmul.f32 %v1349, %v1155
    %1353 = vrot.lane.b32.xlu0 %v1350, 96
    %v1354 = vpop.permute.xlu0 %1353
    %v1356 = vmul.f32 %v1349, %v1354
    %1358 = vrot.lane.b32.xlu0 %v1356, 16
    %v1359 = vpop.permute.xlu0 %1358
    %v1361 = vadd.f32 %v1351, %v1359
    %v1362 = vtanh.pop %v1361
    %1364 = vrot.lane.b32.xlu0 %v1362, 32
    %v1365 = vpop.permute.xlu0 %1364
    %v1367 = vmul.f32 %v1349, %v1365
    %1369 = vrot.lane.b32.xlu0 %v1367, 80
    %v1370 = vpop.permute.xlu0 %1369
    %1372 = vst.msk [vmem:[#allocation4 + $0x5] sm:$0x1] %vm336, %v1370
    %v1373 = vld [vmem:[#allocation3 + $0x2] sm:$0x1]
    %v1374 = vsel %vm65, %v1267, 0
    %1376 = vmatprep.subr.mxu0 0.0
    %1377 = vmatpush1.msra.mxu0 0.0
    %1378 = vmatprep.subr.mxu0 0.0
    %1379 = vmatpush1.msra.mxu0 0.0
    %1380 = vmatprep.subr.mxu0 0.0
    %1381 = vmatpush1.msra.mxu0 0.0
    %1382 = vmatprep.subr.mxu0 0.0
    %1383 = vmatpush1.msra.mxu0 0.0
    %1384 = vmatprep.subr.mxu0 0.0
    %1385 = vmatpush1.msra.mxu0 0.0
    %1386 = vmatprep.subr.mxu0 0.0
    %1387 = vmatpush1.msra.mxu0 0.0
    %1388 = vmatprep.subr.mxu0 0.0
    %1389 = vmatpush1.msra.mxu0 0.0
    %1390 = vmatprep.subr.mxu0 0.0
    %1391 = vmatpush1.msra.mxu0 0.0
    %1392 = vmatprep.subr.mxu0 0.0
    %1393 = vmatpush1.msra.mxu0 0.0
    %1394 = vmatprep.subr.mxu0 0.0
    %1395 = vmatpush1.msra.mxu0 0.0
    %1396 = vmatprep.subr.mxu0 0.0
    %1397 = vmatpush1.msra.mxu0 0.0
    %1398 = vmatprep.subr.mxu0 0.0
    %1399 = vmatpush1.msra.mxu0 0.0
    %1400 = vmatprep.subr.mxu0 0.0
    %1401 = vmatpush1.msra.mxu0 0.0
    %1402 = vmatprep.subr.mxu0 0.0
    %1403 = vmatpush1.msra.mxu0 0.0
    %1404 = vmatprep.subr.mxu0 0.0
    %1405 = vmatpush1.msra.mxu0 %v224
    %1406 = vmatprep.subr.mxu0 0.0
    %1407 = vmatpush1.msra.mxu0 %v223
    %1408 = vmatprep.subr.mxu0 0.0
    %1409 = vmatpush2.msra.mxu0 0.0
    %1410 = vmatprep.subr.mxu0 0.0
    %1411 = vmatpush2.msra.mxu0 0.0
    %1412 = vmatprep.subr.mxu0 0.0
    %1413 = vmatpush2.msra.mxu0 0.0
    %1414 = vmatprep.subr.mxu0 0.0
    %1415 = vmatpush2.msra.mxu0 0.0
    %1416 = vmatprep.subr.mxu0 0.0
    %1417 = vmatpush2.msra.mxu0 0.0
    %1418 = vmatprep.subr.mxu0 0.0
    %1419 = vmatpush2.msra.mxu0 0.0
    %1420 = vmatprep.subr.mxu0 0.0
    %1421 = vmatpush2.msra.mxu0 0.0
    %1422 = vmatprep.subr.mxu0 0.0
    %1423 = vmatpush2.msra.mxu0 0.0
    %1424 = vmatprep.subr.mxu0 0.0
    %1425 = vmatpush2.msra.mxu0 0.0
    %1426 = vmatprep.subr.mxu0 0.0
    %1427 = vmatpush2.msra.mxu0 0.0
    %1428 = vmatprep.subr.mxu0 0.0
    %1429 = vmatpush2.msra.mxu0 0.0
    %1430 = vmatprep.subr.mxu0 0.0
    %1431 = vmatpush2.msra.mxu0 0.0
    %1432 = vmatprep.subr.mxu0 0.0
    %1433 = vmatpush2.msra.mxu0 0.0
    %1434 = vmatprep.subr.mxu0 0.0
    %1435 = vmatpush2.msra.mxu0 0.0
    %1436 = vmatprep.subr.mxu0 0.0
    %1437 = vmatpush2.msra.mxu0 0.0
    %1438 = vmatprep.subr.mxu0 0.0
    %1439 = vmatpush2.msra.mxu0 0.0
    %1440 = vmatprep.mubr.f32.mxu0 0.0
    %1441 = vmatmul.mubr.f32.gmra.mxu0 %v1374
    %v1442 = vpop.f32.mrf.mxu0
    %v1443 = vadd.f32 0.0, %v1442
    %v1444 = vpop.f32.mrf.mxu0
    %1445 = vdwg.mxu0
    %v1446 = vadd.f32 %v1373, %v1443
    %v1447 = vxor.u32 %v1446, 2147483648
    %v1448 = vmul.f32 %v1447, 1.442695
    %v1449 = vpow.pop %v1448
    %v1450 = vadd.f32 %v1449, 1.0
    %v1451 = vrcp.pop %v1450
    %v1452 = vmul.f32 1.0, %v1451
    %v1453 = vtanh.pop %v1446
    %v1454 = vmul.f32 %v1452, %v1258
    %1456 = vrot.lane.b32.xlu0 %v1453, 96
    %v1457 = vpop.permute.xlu0 %1456
    %v1459 = vmul.f32 %v1452, %v1457
    %1461 = vrot.lane.b32.xlu0 %v1459, 16
    %v1462 = vpop.permute.xlu0 %1461
    %v1464 = vadd.f32 %v1454, %v1462
    %v1465 = vtanh.pop %v1464
    %1467 = vrot.lane.b32.xlu0 %v1465, 32
    %v1468 = vpop.permute.xlu0 %1467
    %v1470 = vmul.f32 %v1452, %v1468
    %1472 = vrot.lane.b32.xlu0 %v1470, 80
    %v1473 = vpop.permute.xlu0 %1472
    %1475 = vst.msk [vmem:[#allocation5 + $0x2] sm:$0x1] %vm336, %v1473
    %v1476 = vld [vmem:[#allocation2 + $0x6] sm:$0x1]
    %v1477 = vsel %vm65, %v1370, 0
    %1479 = vmatprep.subr.mxu0 0.0
    %1480 = vmatpush1.msra.mxu0 0.0
    %1481 = vmatprep.subr.mxu0 0.0
    %1482 = vmatpush1.msra.mxu0 0.0
    %1483 = vmatprep.subr.mxu0 0.0
    %1484 = vmatpush1.msra.mxu0 0.0
    %1485 = vmatprep.subr.mxu0 0.0
    %1486 = vmatpush1.msra.mxu0 0.0
    %1487 = vmatprep.subr.mxu0 0.0
    %1488 = vmatpush1.msra.mxu0 0.0
    %1489 = vmatprep.subr.mxu0 0.0
    %1490 = vmatpush1.msra.mxu0 0.0
    %1491 = vmatprep.subr.mxu0 0.0
    %1492 = vmatpush1.msra.mxu0 0.0
    %1493 = vmatprep.subr.mxu0 0.0
    %1494 = vmatpush1.msra.mxu0 0.0
    %1495 = vmatprep.subr.mxu0 0.0
    %1496 = vmatpush1.msra.mxu0 0.0
    %1497 = vmatprep.subr.mxu0 0.0
    %1498 = vmatpush1.msra.mxu0 0.0
    %1499 = vmatprep.subr.mxu0 0.0
    %1500 = vmatpush1.msra.mxu0 0.0
    %1501 = vmatprep.subr.mxu0 0.0
    %1502 = vmatpush1.msra.mxu0 0.0
    %1503 = vmatprep.subr.mxu0 0.0
    %1504 = vmatpush1.msra.mxu0 0.0
    %1505 = vmatprep.subr.mxu0 0.0
    %1506 = vmatpush1.msra.mxu0 0.0
    %1507 = vmatprep.subr.mxu0 0.0
    %1508 = vmatpush1.msra.mxu0 %v222
    %1509 = vmatprep.subr.mxu0 0.0
    %1510 = vmatpush1.msra.mxu0 %v221
    %1511 = vmatprep.subr.mxu0 0.0
    %1512 = vmatpush2.msra.mxu0 0.0
    %1513 = vmatprep.subr.mxu0 0.0
    %1514 = vmatpush2.msra.mxu0 0.0
    %1515 = vmatprep.subr.mxu0 0.0
    %1516 = vmatpush2.msra.mxu0 0.0
    %1517 = vmatprep.subr.mxu0 0.0
    %1518 = vmatpush2.msra.mxu0 0.0
    %1519 = vmatprep.subr.mxu0 0.0
    %1520 = vmatpush2.msra.mxu0 0.0
    %1521 = vmatprep.subr.mxu0 0.0
    %1522 = vmatpush2.msra.mxu0 0.0
    %1523 = vmatprep.subr.mxu0 0.0
    %1524 = vmatpush2.msra.mxu0 0.0
    %1525 = vmatprep.subr.mxu0 0.0
    %1526 = vmatpush2.msra.mxu0 0.0
    %1527 = vmatprep.subr.mxu0 0.0
    %1528 = vmatpush2.msra.mxu0 0.0
    %1529 = vmatprep.subr.mxu0 0.0
    %1530 = vmatpush2.msra.mxu0 0.0
    %1531 = vmatprep.subr.mxu0 0.0
    %1532 = vmatpush2.msra.mxu0 0.0
    %1533 = vmatprep.subr.mxu0 0.0
    %1534 = vmatpush2.msra.mxu0 0.0
    %1535 = vmatprep.subr.mxu0 0.0
    %1536 = vmatpush2.msra.mxu0 0.0
    %1537 = vmatprep.subr.mxu0 0.0
    %1538 = vmatpush2.msra.mxu0 0.0
    %1539 = vmatprep.subr.mxu0 0.0
    %1540 = vmatpush2.msra.mxu0 0.0
    %1541 = vmatprep.subr.mxu0 0.0
    %1542 = vmatpush2.msra.mxu0 0.0
    %1543 = vmatprep.mubr.f32.mxu0 0.0
    %1544 = vmatmul.mubr.f32.gmra.mxu0 %v1477
    %v1545 = vpop.f32.mrf.mxu0
    %v1546 = vadd.f32 0.0, %v1545
    %v1547 = vpop.f32.mrf.mxu0
    %1548 = vdwg.mxu0
    %v1549 = vadd.f32 %v1476, %v1546
    %v1550 = vxor.u32 %v1549, 2147483648
    %v1551 = vmul.f32 %v1550, 1.442695
    %v1552 = vpow.pop %v1551
    %v1553 = vadd.f32 %v1552, 1.0
    %v1554 = vrcp.pop %v1553
    %v1555 = vmul.f32 1.0, %v1554
    %v1556 = vtanh.pop %v1549
    %v1557 = vmul.f32 %v1555, %v1361
    %1559 = vrot.lane.b32.xlu0 %v1556, 96
    %v1560 = vpop.permute.xlu0 %1559
    %v1562 = vmul.f32 %v1555, %v1560
    %1564 = vrot.lane.b32.xlu0 %v1562, 16
    %v1565 = vpop.permute.xlu0 %1564
    %v1567 = vadd.f32 %v1557, %v1565
    %v1568 = vtanh.pop %v1567
    %1570 = vrot.lane.b32.xlu0 %v1568, 32
    %v1571 = vpop.permute.xlu0 %1570
    %v1573 = vmul.f32 %v1555, %v1571
    %1575 = vrot.lane.b32.xlu0 %v1573, 80
    %v1576 = vpop.permute.xlu0 %1575
    %1578 = vst.msk [vmem:[#allocation4 + $0x6] sm:$0x1] %vm336, %v1576
    %v1579 = vld [vmem:[#allocation3 + $0x1] sm:$0x1]
    %v1580 = vsel %vm65, %v1473, 0
    %1582 = vmatprep.subr.mxu0 0.0
    %1583 = vmatpush1.msra.mxu0 0.0
    %1584 = vmatprep.subr.mxu0 0.0
    %1585 = vmatpush1.msra.mxu0 0.0
    %1586 = vmatprep.subr.mxu0 0.0
    %1587 = vmatpush1.msra.mxu0 0.0
    %1588 = vmatprep.subr.mxu0 0.0
    %1589 = vmatpush1.msra.mxu0 0.0
    %1590 = vmatprep.subr.mxu0 0.0
    %1591 = vmatpush1.msra.mxu0 0.0
    %1592 = vmatprep.subr.mxu0 0.0
    %1593 = vmatpush1.msra.mxu0 0.0
    %1594 = vmatprep.subr.mxu0 0.0
    %1595 = vmatpush1.msra.mxu0 0.0
    %1596 = vmatprep.subr.mxu0 0.0
    %1597 = vmatpush1.msra.mxu0 0.0
    %1598 = vmatprep.subr.mxu0 0.0
    %1599 = vmatpush1.msra.mxu0 0.0
    %1600 = vmatprep.subr.mxu0 0.0
    %1601 = vmatpush1.msra.mxu0 0.0
    %1602 = vmatprep.subr.mxu0 0.0
    %1603 = vmatpush1.msra.mxu0 0.0
    %1604 = vmatprep.subr.mxu0 0.0
    %1605 = vmatpush1.msra.mxu0 0.0
    %1606 = vmatprep.subr.mxu0 0.0
    %1607 = vmatpush1.msra.mxu0 0.0
    %1608 = vmatprep.subr.mxu0 0.0
    %1609 = vmatpush1.msra.mxu0 0.0
    %1610 = vmatprep.subr.mxu0 0.0
    %1611 = vmatpush1.msra.mxu0 %v224
    %1612 = vmatprep.subr.mxu0 0.0
    %1613 = vmatpush1.msra.mxu0 %v223
    %1614 = vmatprep.subr.mxu0 0.0
    %1615 = vmatpush2.msra.mxu0 0.0
    %1616 = vmatprep.subr.mxu0 0.0
    %1617 = vmatpush2.msra.mxu0 0.0
    %1618 = vmatprep.subr.mxu0 0.0
    %1619 = vmatpush2.msra.mxu0 0.0
    %1620 = vmatprep.subr.mxu0 0.0
    %1621 = vmatpush2.msra.mxu0 0.0
    %1622 = vmatprep.subr.mxu0 0.0
    %1623 = vmatpush2.msra.mxu0 0.0
    %1624 = vmatprep.subr.mxu0 0.0
    %1625 = vmatpush2.msra.mxu0 0.0
    %1626 = vmatprep.subr.mxu0 0.0
    %1627 = vmatpush2.msra.mxu0 0.0
    %1628 = vmatprep.subr.mxu0 0.0
    %1629 = vmatpush2.msra.mxu0 0.0
    %1630 = vmatprep.subr.mxu0 0.0
    %1631 = vmatpush2.msra.mxu0 0.0
    %1632 = vmatprep.subr.mxu0 0.0
    %1633 = vmatpush2.msra.mxu0 0.0
    %1634 = vmatprep.subr.mxu0 0.0
    %1635 = vmatpush2.msra.mxu0 0.0
    %1636 = vmatprep.subr.mxu0 0.0
    %1637 = vmatpush2.msra.mxu0 0.0
    %1638 = vmatprep.subr.mxu0 0.0
    %1639 = vmatpush2.msra.mxu0 0.0
    %1640 = vmatprep.subr.mxu0 0.0
    %1641 = vmatpush2.msra.mxu0 0.0
    %1642 = vmatprep.subr.mxu0 0.0
    %1643 = vmatpush2.msra.mxu0 0.0
    %1644 = vmatprep.subr.mxu0 0.0
    %1645 = vmatpush2.msra.mxu0 0.0
    %1646 = vmatprep.mubr.f32.mxu0 0.0
    %1647 = vmatmul.mubr.f32.gmra.mxu0 %v1580
    %v1648 = vpop.f32.mrf.mxu0
    %v1649 = vadd.f32 0.0, %v1648
    %v1650 = vpop.f32.mrf.mxu0
    %1651 = vdwg.mxu0
    %v1652 = vadd.f32 %v1579, %v1649
    %v1653 = vxor.u32 %v1652, 2147483648
    %v1654 = vmul.f32 %v1653, 1.442695
    %v1655 = vpow.pop %v1654
    %v1656 = vadd.f32 %v1655, 1.0
    %v1657 = vrcp.pop %v1656
    %v1658 = vmul.f32 1.0, %v1657
    %v1659 = vtanh.pop %v1652
    %v1660 = vmul.f32 %v1658, %v1464
    %1662 = vrot.lane.b32.xlu0 %v1659, 96
    %v1663 = vpop.permute.xlu0 %1662
    %v1665 = vmul.f32 %v1658, %v1663
    %1667 = vrot.lane.b32.xlu0 %v1665, 16
    %v1668 = vpop.permute.xlu0 %1667
    %v1670 = vadd.f32 %v1660, %v1668
    %v1671 = vtanh.pop %v1670
    %1673 = vrot.lane.b32.xlu0 %v1671, 32
    %v1674 = vpop.permute.xlu0 %1673
    %v1676 = vmul.f32 %v1658, %v1674
    %1678 = vrot.lane.b32.xlu0 %v1676, 80
    %v1679 = vpop.permute.xlu0 %1678
    %1681 = vst.msk [vmem:[#allocation5 + $0x1] sm:$0x1] %vm336, %v1679
    %v1682 = vld [vmem:[#allocation2 + $0x7] sm:$0x1]
    %v1683 = vsel %vm65, %v1576, 0
    %1685 = vmatprep.subr.mxu0 0.0
    %1686 = vmatpush1.msra.mxu0 0.0
    %1687 = vmatprep.subr.mxu0 0.0
    %1688 = vmatpush1.msra.mxu0 0.0
    %1689 = vmatprep.subr.mxu0 0.0
    %1690 = vmatpush1.msra.mxu0 0.0
    %1691 = vmatprep.subr.mxu0 0.0
    %1692 = vmatpush1.msra.mxu0 0.0
    %1693 = vmatprep.subr.mxu0 0.0
    %1694 = vmatpush1.msra.mxu0 0.0
    %1695 = vmatprep.subr.mxu0 0.0
    %1696 = vmatpush1.msra.mxu0 0.0
    %1697 = vmatprep.subr.mxu0 0.0
    %1698 = vmatpush1.msra.mxu0 0.0
    %1699 = vmatprep.subr.mxu0 0.0
    %1700 = vmatpush1.msra.mxu0 0.0
    %1701 = vmatprep.subr.mxu0 0.0
    %1702 = vmatpush1.msra.mxu0 0.0
    %1703 = vmatprep.subr.mxu0 0.0
    %1704 = vmatpush1.msra.mxu0 0.0
    %1705 = vmatprep.subr.mxu0 0.0
    %1706 = vmatpush1.msra.mxu0 0.0
    %1707 = vmatprep.subr.mxu0 0.0
    %1708 = vmatpush1.msra.mxu0 0.0
    %1709 = vmatprep.subr.mxu0 0.0
    %1710 = vmatpush1.msra.mxu0 0.0
    %1711 = vmatprep.subr.mxu0 0.0
    %1712 = vmatpush1.msra.mxu0 0.0
    %1713 = vmatprep.subr.mxu0 0.0
    %1714 = vmatpush1.msra.mxu0 %v222
    %1715 = vmatprep.subr.mxu0 0.0
    %1716 = vmatpush1.msra.mxu0 %v221
    %1717 = vmatprep.subr.mxu0 0.0
    %1718 = vmatpush2.msra.mxu0 0.0
    %1719 = vmatprep.subr.mxu0 0.0
    %1720 = vmatpush2.msra.mxu0 0.0
    %1721 = vmatprep.subr.mxu0 0.0
    %1722 = vmatpush2.msra.mxu0 0.0
    %1723 = vmatprep.subr.mxu0 0.0
    %1724 = vmatpush2.msra.mxu0 0.0
    %1725 = vmatprep.subr.mxu0 0.0
    %1726 = vmatpush2.msra.mxu0 0.0
    %1727 = vmatprep.subr.mxu0 0.0
    %1728 = vmatpush2.msra.mxu0 0.0
    %1729 = vmatprep.subr.mxu0 0.0
    %1730 = vmatpush2.msra.mxu0 0.0
    %1731 = vmatprep.subr.mxu0 0.0
    %1732 = vmatpush2.msra.mxu0 0.0
    %1733 = vmatprep.subr.mxu0 0.0
    %1734 = vmatpush2.msra.mxu0 0.0
    %1735 = vmatprep.subr.mxu0 0.0
    %1736 = vmatpush2.msra.mxu0 0.0
    %1737 = vmatprep.subr.mxu0 0.0
    %1738 = vmatpush2.msra.mxu0 0.0
    %1739 = vmatprep.subr.mxu0 0.0
    %1740 = vmatpush2.msra.mxu0 0.0
    %1741 = vmatprep.subr.mxu0 0.0
    %1742 = vmatpush2.msra.mxu0 0.0
    %1743 = vmatprep.subr.mxu0 0.0
    %1744 = vmatpush2.msra.mxu0 0.0
    %1745 = vmatprep.subr.mxu0 0.0
    %1746 = vmatpush2.msra.mxu0 0.0
    %1747 = vmatprep.subr.mxu0 0.0
    %1748 = vmatpush2.msra.mxu0 0.0
    %1749 = vmatprep.mubr.f32.mxu0 0.0
    %1750 = vmatmul.mubr.f32.gmra.mxu0 %v1683
    %v1751 = vpop.f32.mrf.mxu0
    %v1752 = vadd.f32 0.0, %v1751
    %v1753 = vpop.f32.mrf.mxu0
    %1754 = vdwg.mxu0
    %v1755 = vadd.f32 %v1682, %v1752
    %v1756 = vxor.u32 %v1755, 2147483648
    %v1757 = vmul.f32 %v1756, 1.442695
    %v1758 = vpow.pop %v1757
    %v1759 = vadd.f32 %v1758, 1.0
    %v1760 = vrcp.pop %v1759
    %v1761 = vmul.f32 1.0, %v1760
    %v1762 = vtanh.pop %v1755
    %v1763 = vmul.f32 %v1761, %v1567
    %1765 = vrot.lane.b32.xlu0 %v1762, 96
    %v1766 = vpop.permute.xlu0 %1765
    %v1768 = vmul.f32 %v1761, %v1766
    %1770 = vrot.lane.b32.xlu0 %v1768, 16
    %v1771 = vpop.permute.xlu0 %1770
    %v1773 = vadd.f32 %v1763, %v1771
    %v1774 = vtanh.pop %v1773
    %1776 = vrot.lane.b32.xlu0 %v1774, 32
    %v1777 = vpop.permute.xlu0 %1776
    %v1779 = vmul.f32 %v1761, %v1777
    %1781 = vrot.lane.b32.xlu0 %v1779, 80
    %v1782 = vpop.permute.xlu0 %1781
    %1784 = vst.msk [vmem:[#allocation4 + $0x7] sm:$0x1] %vm336, %v1782
    %v1785 = vld [vmem:[#allocation3] sm:$0x1]
    %v1786 = vsel %vm65, %v1679, 0
    %1788 = vmatprep.subr.mxu0 0.0
    %1789 = vmatpush1.msra.mxu0 0.0
    %1790 = vmatprep.subr.mxu0 0.0
    %1791 = vmatpush1.msra.mxu0 0.0
    %1792 = vmatprep.subr.mxu0 0.0
    %1793 = vmatpush1.msra.mxu0 0.0
    %1794 = vmatprep.subr.mxu0 0.0
    %1795 = vmatpush1.msra.mxu0 0.0
    %1796 = vmatprep.subr.mxu0 0.0
    %1797 = vmatpush1.msra.mxu0 0.0
    %1798 = vmatprep.subr.mxu0 0.0
    %1799 = vmatpush1.msra.mxu0 0.0
    %1800 = vmatprep.subr.mxu0 0.0
    %1801 = vmatpush1.msra.mxu0 0.0
    %1802 = vmatprep.subr.mxu0 0.0
    %1803 = vmatpush1.msra.mxu0 0.0
    %1804 = vmatprep.subr.mxu0 0.0
    %1805 = vmatpush1.msra.mxu0 0.0
    %1806 = vmatprep.subr.mxu0 0.0
    %1807 = vmatpush1.msra.mxu0 0.0
    %1808 = vmatprep.subr.mxu0 0.0
    %1809 = vmatpush1.msra.mxu0 0.0
    %1810 = vmatprep.subr.mxu0 0.0
    %1811 = vmatpush1.msra.mxu0 0.0
    %1812 = vmatprep.subr.mxu0 0.0
    %1813 = vmatpush1.msra.mxu0 0.0
    %1814 = vmatprep.subr.mxu0 0.0
    %1815 = vmatpush1.msra.mxu0 0.0
    %1816 = vmatprep.subr.mxu0 0.0
    %1817 = vmatpush1.msra.mxu0 %v224
    %1818 = vmatprep.subr.mxu0 0.0
    %1819 = vmatpush1.msra.mxu0 %v223
    %1820 = vmatprep.subr.mxu0 0.0
    %1821 = vmatpush2.msra.mxu0 0.0
    %1822 = vmatprep.subr.mxu0 0.0
    %1823 = vmatpush2.msra.mxu0 0.0
    %1824 = vmatprep.subr.mxu0 0.0
    %1825 = vmatpush2.msra.mxu0 0.0
    %1826 = vmatprep.subr.mxu0 0.0
    %1827 = vmatpush2.msra.mxu0 0.0
    %1828 = vmatprep.subr.mxu0 0.0
    %1829 = vmatpush2.msra.mxu0 0.0
    %1830 = vmatprep.subr.mxu0 0.0
    %1831 = vmatpush2.msra.mxu0 0.0
    %1832 = vmatprep.subr.mxu0 0.0
    %1833 = vmatpush2.msra.mxu0 0.0
    %1834 = vmatprep.subr.mxu0 0.0
    %1835 = vmatpush2.msra.mxu0 0.0
    %1836 = vmatprep.subr.mxu0 0.0
    %1837 = vmatpush2.msra.mxu0 0.0
    %1838 = vmatprep.subr.mxu0 0.0
    %1839 = vmatpush2.msra.mxu0 0.0
    %1840 = vmatprep.subr.mxu0 0.0
    %1841 = vmatpush2.msra.mxu0 0.0
    %1842 = vmatprep.subr.mxu0 0.0
    %1843 = vmatpush2.msra.mxu0 0.0
    %1844 = vmatprep.subr.mxu0 0.0
    %1845 = vmatpush2.msra.mxu0 0.0
    %1846 = vmatprep.subr.mxu0 0.0
    %1847 = vmatpush2.msra.mxu0 0.0
    %1848 = vmatprep.subr.mxu0 0.0
    %1849 = vmatpush2.msra.mxu0 0.0
    %1850 = vmatprep.subr.mxu0 0.0
    %1851 = vmatpush2.msra.mxu0 0.0
    %1852 = vmatprep.mubr.f32.mxu0 0.0
    %1853 = vmatmul.mubr.f32.gmra.mxu0 %v1786
    %v1854 = vpop.f32.mrf.mxu0
    %v1855 = vadd.f32 0.0, %v1854
    %v1856 = vpop.f32.mrf.mxu0
    %1857 = vdwg.mxu0
    %v1858 = vadd.f32 %v1785, %v1855
    %v1859 = vxor.u32 %v1858, 2147483648
    %v1860 = vmul.f32 %v1859, 1.442695
    %v1861 = vpow.pop %v1860
    %v1862 = vadd.f32 %v1861, 1.0
    %v1863 = vrcp.pop %v1862
    %v1864 = vmul.f32 1.0, %v1863
    %v1865 = vtanh.pop %v1858
    %v1866 = vmul.f32 %v1864, %v1670
    %1868 = vrot.lane.b32.xlu0 %v1865, 96
    %v1869 = vpop.permute.xlu0 %1868
    %v1871 = vmul.f32 %v1864, %v1869
    %1873 = vrot.lane.b32.xlu0 %v1871, 16
    %v1874 = vpop.permute.xlu0 %1873
    %v1876 = vadd.f32 %v1866, %v1874
    %v1877 = vtanh.pop %v1876
    %1879 = vrot.lane.b32.xlu0 %v1877, 32
    %v1880 = vpop.permute.xlu0 %1879
    %v1882 = vmul.f32 %v1864, %v1880
    %1884 = vrot.lane.b32.xlu0 %v1882, 80
    %v1885 = vpop.permute.xlu0 %1884
    %1887 = vst.msk [vmem:[#allocation5] sm:$0x1] %vm336, %v1885
    %v1888 = vld [vmem:[#allocation4] sm:$0xff]
    %v1889 = vld [vmem:[%s9] sm:$0xff]
    %v1890 = vld [vmem:[%s9 + $0x8] sm:$0xff]
    %v1891 = vld [vmem:[#allocation5] sm:$0xff]
    %v1892 = vld [vmem:[%s10] sm:$0xff]
    %v1893 = vld [vmem:[%s10 + $0x8] sm:$0xff]
    %v1895 = vsel %vm65, %v1891, 0
    %1897 = vmatprep.subr.mxu0 0.0
    %1898 = vmatpush1.msra.mxu0 0.0
    %1899 = vmatprep.subr.mxu0 0.0
    %1900 = vmatpush1.msra.mxu0 0.0
    %1901 = vmatprep.subr.mxu0 0.0
    %1902 = vmatpush1.msra.mxu0 0.0
    %1903 = vmatprep.subr.mxu0 0.0
    %1904 = vmatpush1.msra.mxu0 0.0
    %1905 = vmatprep.subr.mxu0 0.0
    %1906 = vmatpush1.msra.mxu0 0.0
    %1907 = vmatprep.subr.mxu0 0.0
    %1908 = vmatpush1.msra.mxu0 0.0
    %1909 = vmatprep.subr.mxu0 0.0
    %1910 = vmatpush1.msra.mxu0 0.0
    %1911 = vmatprep.subr.mxu0 0.0
    %1912 = vmatpush1.msra.mxu0 0.0
    %1913 = vmatprep.subr.mxu0 0.0
    %1914 = vmatpush1.msra.mxu0 0.0
    %1915 = vmatprep.subr.mxu0 0.0
    %1916 = vmatpush1.msra.mxu0 0.0
    %1917 = vmatprep.subr.mxu0 0.0
    %1918 = vmatpush1.msra.mxu0 0.0
    %1919 = vmatprep.subr.mxu0 0.0
    %1920 = vmatpush1.msra.mxu0 0.0
    %1921 = vmatprep.subr.mxu0 0.0
    %1922 = vmatpush1.msra.mxu0 0.0
    %1923 = vmatprep.subr.mxu0 0.0
    %1924 = vmatpush1.msra.mxu0 0.0
    %1925 = vmatprep.subr.mxu0 0.0
    %1926 = vmatpush1.msra.mxu0 %v1893
    %1927 = vmatprep.subr.mxu0 0.0
    %1928 = vmatpush1.msra.mxu0 %v1892
    %1929 = vmatprep.subr.mxu0 0.0
    %1930 = vmatpush2.msra.mxu0 0.0
    %1931 = vmatprep.subr.mxu0 0.0
    %1932 = vmatpush2.msra.mxu0 0.0
    %1933 = vmatprep.subr.mxu0 0.0
    %1934 = vmatpush2.msra.mxu0 0.0
    %1935 = vmatprep.subr.mxu0 0.0
    %1936 = vmatpush2.msra.mxu0 0.0
    %1937 = vmatprep.subr.mxu0 0.0
    %1938 = vmatpush2.msra.mxu0 0.0
    %1939 = vmatprep.subr.mxu0 0.0
    %1940 = vmatpush2.msra.mxu0 0.0
    %1941 = vmatprep.subr.mxu0 0.0
    %1942 = vmatpush2.msra.mxu0 0.0
    %1943 = vmatprep.subr.mxu0 0.0
    %1944 = vmatpush2.msra.mxu0 0.0
    %1945 = vmatprep.subr.mxu0 0.0
    %1946 = vmatpush2.msra.mxu0 0.0
    %1947 = vmatprep.subr.mxu0 0.0
    %1948 = vmatpush2.msra.mxu0 0.0
    %1949 = vmatprep.subr.mxu0 0.0
    %1950 = vmatpush2.msra.mxu0 0.0
    %1951 = vmatprep.subr.mxu0 0.0
    %1952 = vmatpush2.msra.mxu0 0.0
    %1953 = vmatprep.subr.mxu0 0.0
    %1954 = vmatpush2.msra.mxu0 0.0
    %1955 = vmatprep.subr.mxu0 0.0
    %1956 = vmatpush2.msra.mxu0 0.0
    %1957 = vmatprep.subr.mxu0 0.0
    %1958 = vmatpush2.msra.mxu0 0.0
    %1959 = vmatprep.subr.mxu0 0.0
    %1960 = vmatpush2.msra.mxu0 0.0
    %1961 = vmatprep.mubr.f32.mxu0 0.0
    %1962 = vmatmul.mubr.f32.gmra.mxu0 %v1895
    %v1963 = vpop.f32.mrf.mxu0
    %v1964 = vadd.f32 0.0, %v1963
    %v1965 = vpop.f32.mrf.mxu0
    %1966 = vdwg.mxu0
    %v1968 = vsel %vm65, %v1888, 0
    %1970 = vmatprep.subr.mxu0 0.0
    %1971 = vmatpush1.msra.mxu0 0.0
    %1972 = vmatprep.subr.mxu0 0.0
    %1973 = vmatpush1.msra.mxu0 0.0
    %1974 = vmatprep.subr.mxu0 0.0
    %1975 = vmatpush1.msra.mxu0 0.0
    %1976 = vmatprep.subr.mxu0 0.0
    %1977 = vmatpush1.msra.mxu0 0.0
    %1978 = vmatprep.subr.mxu0 0.0
    %1979 = vmatpush1.msra.mxu0 0.0
    %1980 = vmatprep.subr.mxu0 0.0
    %1981 = vmatpush1.msra.mxu0 0.0
    %1982 = vmatprep.subr.mxu0 0.0
    %1983 = vmatpush1.msra.mxu0 0.0
    %1984 = vmatprep.subr.mxu0 0.0
    %1985 = vmatpush1.msra.mxu0 0.0
    %1986 = vmatprep.subr.mxu0 0.0
    %1987 = vmatpush1.msra.mxu0 0.0
    %1988 = vmatprep.subr.mxu0 0.0
    %1989 = vmatpush1.msra.mxu0 0.0
    %1990 = vmatprep.subr.mxu0 0.0
    %1991 = vmatpush1.msra.mxu0 0.0
    %1992 = vmatprep.subr.mxu0 0.0
    %1993 = vmatpush1.msra.mxu0 0.0
    %1994 = vmatprep.subr.mxu0 0.0
    %1995 = vmatpush1.msra.mxu0 0.0
    %1996 = vmatprep.subr.mxu0 0.0
    %1997 = vmatpush1.msra.mxu0 0.0
    %1998 = vmatprep.subr.mxu0 0.0
    %1999 = vmatpush1.msra.mxu0 %v1890
    %2000 = vmatprep.subr.mxu0 0.0
    %2001 = vmatpush1.msra.mxu0 %v1889
    %2002 = vmatprep.subr.mxu0 0.0
    %2003 = vmatpush2.msra.mxu0 0.0
    %2004 = vmatprep.subr.mxu0 0.0
    %2005 = vmatpush2.msra.mxu0 0.0
    %2006 = vmatprep.subr.mxu0 0.0
    %2007 = vmatpush2.msra.mxu0 0.0
    %2008 = vmatprep.subr.mxu0 0.0
    %2009 = vmatpush2.msra.mxu0 0.0
    %2010 = vmatprep.subr.mxu0 0.0
    %2011 = vmatpush2.msra.mxu0 0.0
    %2012 = vmatprep.subr.mxu0 0.0
    %2013 = vmatpush2.msra.mxu0 0.0
    %2014 = vmatprep.subr.mxu0 0.0
    %2015 = vmatpush2.msra.mxu0 0.0
    %2016 = vmatprep.subr.mxu0 0.0
    %2017 = vmatpush2.msra.mxu0 0.0
    %2018 = vmatprep.subr.mxu0 0.0
    %2019 = vmatpush2.msra.mxu0 0.0
    %2020 = vmatprep.subr.mxu0 0.0
    %2021 = vmatpush2.msra.mxu0 0.0
    %2022 = vmatprep.subr.mxu0 0.0
    %2023 = vmatpush2.msra.mxu0 0.0
    %2024 = vmatprep.subr.mxu0 0.0
    %2025 = vmatpush2.msra.mxu0 0.0
    %2026 = vmatprep.subr.mxu0 0.0
    %2027 = vmatpush2.msra.mxu0 0.0
    %2028 = vmatprep.subr.mxu0 0.0
    %2029 = vmatpush2.msra.mxu0 0.0
    %2030 = vmatprep.subr.mxu0 0.0
    %2031 = vmatpush2.msra.mxu0 0.0
    %2032 = vmatprep.subr.mxu0 0.0
    %2033 = vmatpush2.msra.mxu0 0.0
    %2034 = vmatprep.mubr.f32.mxu0 0.0
    %2035 = vmatmul.mubr.f32.gmra.mxu0 %v1968
    %v2036 = vpop.f32.mrf.mxu0
    %v2037 = vadd.f32 %v1964, %v2036
    %v2038 = vpop.f32.mrf.mxu0
    %2039 = vdwg.mxu0
    %v2040 = vld [vmem:[%s11] sm:$0x1]
    %v2042 = vlaneseq
    %v2043 = vshrl.u32 %v2042, 7
    %v2044 = vsub.s32 0, %v2043
    %v2045 = vrot.slane %v2040, %v2044
    %v2047 = vadd.f32 %v2037, %v2045
    %vm2048 = vcmask 39936
    %2049 = vst.msk [vmem:[#allocation6] sm:$0xff] %vm2048, %v2047
    %v2050 = vld [vmem:[%s12] sm:$0x1f]
    %v2051 = vlaneseq
    %v2052 = vand.u32 %v2051, 127
    %v2053 = vld [vmem:[%s13] sm:$0x1]
    %v2055 = vlaneseq
    %v2056 = vshrl.u32 %v2055, 7
    %v2057 = vsub.s32 0, %v2056
    %v2058 = vrot.slane %v2053, %v2057
    %v2060 = vadd.f32 %v2050, %v2058
    %vm2061 = vcmask 36864
    %v2062 = vsel %vm2061, %v2060, -inf
    %2063 = vmax.xlane.f32.xlu0 %v2062
    %v2064 = vpop.xlane.xlu0 %2063
    %vm2065 = vcmp.ge.f32.partialorder %v2060, %v2064
    %v2066 = vsel %vm2065, %v2052, 5
    %v2067 = vsel %vm2061, %v2066, 2147483647
    %v2068 = vand.u32 %v2067, 65535
    %v2069 = vshra.s32 %v2067, 16
    %v2070 = vcvt.s32.f32 %v2068
    %v2071 = vcvt.s32.f32 %v2069
    %2072 = vmin.xlane.f32.xlu0 %v2071
    %v2073 = vpop.xlane.xlu0 %2072
    %vm2074 = vcmp.eq.f32.partialorder %v2071, %v2073
    %v2075 = vsel %vm2074, %v2070, inf
    %2076 = vmin.xlane.f32.xlu0 %v2075
    %v2077 = vpop.xlane.xlu0 %2076
    %v2078 = vcvt.f32.s32 %v2077
    %v2079 = vcvt.f32.s32 %v2073
    %v2080 = vshll.u32 %v2079, 16
    %v2081 = vadd.s32 %v2080, %v2078
    %v2082 = vlaneseq
    %v2083 = vshrl.u32 %v2082, 7
    %v2084 = vsub.s32 %v2052, %v2083
    %v2085 = vrot.slane %v2081, %v2084
    %vm2086 = vcmask 32768
    %2087 = vst.msk [vmem:[#allocation7] sm:$0x1] %vm2086, %v2085
    %v2088 = vld [vmem:[#allocation6] sm:$0x1]
    %v2090 = vlaneseq
    %v2091 = vshrl.u32 %v2090, 7
    %v2092 = vsub.s32 0, %v2091
    %v2093 = vrot.slane %v2088, %v2092
    %2095 = vbcast.lane.b32.xlu0 %v2093, 256
    %v2096 = vpop.permute.xlu0 %2095
    %v2098 = vadd.f32 %v2064, %v2096
    %2100 = vset.pattern.permute.xlu0 0
    %2101 = vperm.xlu0 %2100, %v2098
    %v2102 = vpop.permute.xlu0 %2101
    %v2103 = vlaneseq
    %v2104 = vshrl.u32 %v2103, 7
    %v2105 = vsub.s32 %v2052, %v2104
    %v2106 = vrot.slane %v2102, %v2105
    %vm2107 = vcmask 1042434
    %v2108 = vsel %vm2107, %v2106, %v2106
    %vm2109 = vcmask 1043459
    %v2110 = vsel %vm2109, %v2106, %v2108
    %vm2111 = vcmask 1044484
    %v2112 = vsel %vm2111, %v2106, %v2110
    %v2114 = vadd.f32 %v2050, %v2112
    %v2115 = vsel %vm2061, %v2114, -inf
    %2116 = vmax.xlane.f32.xlu0 %v2115
    %v2117 = vpop.xlane.xlu0 %2116
    %vm2118 = vcmp.ge.f32.partialorder %v2114, %v2117
    %v2119 = vsel %vm2118, %v2052, 5
    %v2120 = vsel %vm2061, %v2119, 2147483647
    %v2121 = vand.u32 %v2120, 65535
    %v2122 = vshra.s32 %v2120, 16
    %v2123 = vcvt.s32.f32 %v2121
    %v2124 = vcvt.s32.f32 %v2122
    %2125 = vmin.xlane.f32.xlu0 %v2124
    %v2126 = vpop.xlane.xlu0 %2125
    %vm2127 = vcmp.eq.f32.partialorder %v2124, %v2126
    %v2128 = vsel %vm2127, %v2123, inf
    %2129 = vmin.xlane.f32.xlu0 %v2128
    %v2130 = vpop.xlane.xlu0 %2129
    %v2131 = vcvt.f32.s32 %v2130
    %v2132 = vcvt.f32.s32 %v2126
    %v2133 = vshll.u32 %v2132, 16
    %v2134 = vadd.s32 %v2133, %v2131
    %v2135 = vlaneseq
    %v2136 = vshrl.u32 %v2135, 7
    %v2137 = vsub.s32 %v2052, %v2136
    %v2138 = vrot.slane %v2134, %v2137
    %2139 = vst.msk [vmem:[#allocation7 + $0x1] sm:$0x1] %vm2086, %v2138
    %v2140 = vld [vmem:[#allocation6 + $0x1] sm:$0x1]
    %v2142 = vlaneseq
    %v2143 = vshrl.u32 %v2142, 7
    %v2144 = vsub.s32 0, %v2143
    %v2145 = vrot.slane %v2140, %v2144
    %2147 = vbcast.lane.b32.xlu0 %v2145, 256
    %v2148 = vpop.permute.xlu0 %2147
    %v2150 = vadd.f32 %v2117, %v2148
    %2152 = vset.pattern.permute.xlu0 0
    %2153 = vperm.xlu0 %2152, %v2150
    %v2154 = vpop.permute.xlu0 %2153
    %v2155 = vlaneseq
    %v2156 = vshrl.u32 %v2155, 7
    %v2157 = vsub.s32 %v2052, %v2156
    %v2158 = vrot.slane %v2154, %v2157
    %v2159 = vsel %vm2107, %v2158, %v2158
    %v2160 = vsel %vm2109, %v2158, %v2159
    %v2161 = vsel %vm2111, %v2158, %v2160
    %v2163 = vadd.f32 %v2050, %v2161
    %v2164 = vsel %vm2061, %v2163, -inf
    %2165 = vmax.xlane.f32.xlu0 %v2164
    %v2166 = vpop.xlane.xlu0 %2165
    %vm2167 = vcmp.ge.f32.partialorder %v2163, %v2166
    %v2168 = vsel %vm2167, %v2052, 5
    %v2169 = vsel %vm2061, %v2168, 2147483647
    %v2170 = vand.u32 %v2169, 65535
    %v2171 = vshra.s32 %v2169, 16
    %v2172 = vcvt.s32.f32 %v2170
    %v2173 = vcvt.s32.f32 %v2171
    %2174 = vmin.xlane.f32.xlu0 %v2173
    %v2175 = vpop.xlane.xlu0 %2174
    %vm2176 = vcmp.eq.f32.partialorder %v2173, %v2175
    %v2177 = vsel %vm2176, %v2172, inf
    %2178 = vmin.xlane.f32.xlu0 %v2177
    %v2179 = vpop.xlane.xlu0 %2178
    %v2180 = vcvt.f32.s32 %v2179
    %v2181 = vcvt.f32.s32 %v2175
    %v2182 = vshll.u32 %v2181, 16
    %v2183 = vadd.s32 %v2182, %v2180
    %v2184 = vlaneseq
    %v2185 = vshrl.u32 %v2184, 7
    %v2186 = vsub.s32 %v2052, %v2185
    %v2187 = vrot.slane %v2183, %v2186
    %2188 = vst.msk [vmem:[#allocation7 + $0x2] sm:$0x1] %vm2086, %v2187
    %v2189 = vld [vmem:[#allocation6 + $0x2] sm:$0x1]
    %v2191 = vlaneseq
    %v2192 = vshrl.u32 %v2191, 7
    %v2193 = vsub.s32 0, %v2192
    %v2194 = vrot.slane %v2189, %v2193
    %2196 = vbcast.lane.b32.xlu0 %v2194, 256
    %v2197 = vpop.permute.xlu0 %2196
    %v2199 = vadd.f32 %v2166, %v2197
    %2201 = vset.pattern.permute.xlu0 0
    %2202 = vperm.xlu0 %2201, %v2199
    %v2203 = vpop.permute.xlu0 %2202
    %v2204 = vlaneseq
    %v2205 = vshrl.u32 %v2204, 7
    %v2206 = vsub.s32 %v2052, %v2205
    %v2207 = vrot.slane %v2203, %v2206
    %v2208 = vsel %vm2107, %v2207, %v2207
    %v2209 = vsel %vm2109, %v2207, %v2208
    %v2210 = vsel %vm2111, %v2207, %v2209
    %v2212 = vadd.f32 %v2050, %v2210
    %v2213 = vsel %vm2061, %v2212, -inf
    %2214 = vmax.xlane.f32.xlu0 %v2213
    %v2215 = vpop.xlane.xlu0 %2214
    %vm2216 = vcmp.ge.f32.partialorder %v2212, %v2215
    %v2217 = vsel %vm2216, %v2052, 5
    %v2218 = vsel %vm2061, %v2217, 2147483647
    %v2219 = vand.u32 %v2218, 65535
    %v2220 = vshra.s32 %v2218, 16
    %v2221 = vcvt.s32.f32 %v2219
    %v2222 = vcvt.s32.f32 %v2220
    %2223 = vmin.xlane.f32.xlu0 %v2222
    %v2224 = vpop.xlane.xlu0 %2223
    %vm2225 = vcmp.eq.f32.partialorder %v2222, %v2224
    %v2226 = vsel %vm2225, %v2221, inf
    %2227 = vmin.xlane.f32.xlu0 %v2226
    %v2228 = vpop.xlane.xlu0 %2227
    %v2229 = vcvt.f32.s32 %v2228
    %v2230 = vcvt.f32.s32 %v2224
    %v2231 = vshll.u32 %v2230, 16
    %v2232 = vadd.s32 %v2231, %v2229
    %v2233 = vlaneseq
    %v2234 = vshrl.u32 %v2233, 7
    %v2235 = vsub.s32 %v2052, %v2234
    %v2236 = vrot.slane %v2232, %v2235
    %2237 = vst.msk [vmem:[#allocation7 + $0x3] sm:$0x1] %vm2086, %v2236
    %v2238 = vld [vmem:[#allocation6 + $0x3] sm:$0x1]
    %v2240 = vlaneseq
    %v2241 = vshrl.u32 %v2240, 7
    %v2242 = vsub.s32 0, %v2241
    %v2243 = vrot.slane %v2238, %v2242
    %2245 = vbcast.lane.b32.xlu0 %v2243, 256
    %v2246 = vpop.permute.xlu0 %2245
    %v2248 = vadd.f32 %v2215, %v2246
    %2250 = vset.pattern.permute.xlu0 0
    %2251 = vperm.xlu0 %2250, %v2248
    %v2252 = vpop.permute.xlu0 %2251
    %v2253 = vlaneseq
    %v2254 = vshrl.u32 %v2253, 7
    %v2255 = vsub.s32 %v2052, %v2254
    %v2256 = vrot.slane %v2252, %v2255
    %v2257 = vsel %vm2107, %v2256, %v2256
    %v2258 = vsel %vm2109, %v2256, %v2257
    %v2259 = vsel %vm2111, %v2256, %v2258
    %v2261 = vadd.f32 %v2050, %v2259
    %v2262 = vsel %vm2061, %v2261, -inf
    %2263 = vmax.xlane.f32.xlu0 %v2262
    %v2264 = vpop.xlane.xlu0 %2263
    %vm2265 = vcmp.ge.f32.partialorder %v2261, %v2264
    %v2266 = vsel %vm2265, %v2052, 5
    %v2267 = vsel %vm2061, %v2266, 2147483647
    %v2268 = vand.u32 %v2267, 65535
    %v2269 = vshra.s32 %v2267, 16
    %v2270 = vcvt.s32.f32 %v2268
    %v2271 = vcvt.s32.f32 %v2269
    %2272 = vmin.xlane.f32.xlu0 %v2271
    %v2273 = vpop.xlane.xlu0 %2272
    %vm2274 = vcmp.eq.f32.partialorder %v2271, %v2273
    %v2275 = vsel %vm2274, %v2270, inf
    %2276 = vmin.xlane.f32.xlu0 %v2275
    %v2277 = vpop.xlane.xlu0 %2276
    %v2278 = vcvt.f32.s32 %v2277
    %v2279 = vcvt.f32.s32 %v2273
    %v2280 = vshll.u32 %v2279, 16
    %v2281 = vadd.s32 %v2280, %v2278
    %v2282 = vlaneseq
    %v2283 = vshrl.u32 %v2282, 7
    %v2284 = vsub.s32 %v2052, %v2283
    %v2285 = vrot.slane %v2281, %v2284
    %2286 = vst.msk [vmem:[#allocation7 + $0x4] sm:$0x1] %vm2086, %v2285
    %v2287 = vld [vmem:[#allocation6 + $0x4] sm:$0x1]
    %v2289 = vlaneseq
    %v2290 = vshrl.u32 %v2289, 7
    %v2291 = vsub.s32 0, %v2290
    %v2292 = vrot.slane %v2287, %v2291
    %2294 = vbcast.lane.b32.xlu0 %v2292, 256
    %v2295 = vpop.permute.xlu0 %2294
    %v2297 = vadd.f32 %v2264, %v2295
    %2299 = vset.pattern.permute.xlu0 0
    %2300 = vperm.xlu0 %2299, %v2297
    %v2301 = vpop.permute.xlu0 %2300
    %v2302 = vlaneseq
    %v2303 = vshrl.u32 %v2302, 7
    %v2304 = vsub.s32 %v2052, %v2303
    %v2305 = vrot.slane %v2301, %v2304
    %v2306 = vsel %vm2107, %v2305, %v2305
    %v2307 = vsel %vm2109, %v2305, %v2306
    %v2308 = vsel %vm2111, %v2305, %v2307
    %v2310 = vadd.f32 %v2050, %v2308
    %v2311 = vsel %vm2061, %v2310, -inf
    %2312 = vmax.xlane.f32.xlu0 %v2311
    %v2313 = vpop.xlane.xlu0 %2312
    %vm2314 = vcmp.ge.f32.partialorder %v2310, %v2313
    %v2315 = vsel %vm2314, %v2052, 5
    %v2316 = vsel %vm2061, %v2315, 2147483647
    %v2317 = vand.u32 %v2316, 65535
    %v2318 = vshra.s32 %v2316, 16
    %v2319 = vcvt.s32.f32 %v2317
    %v2320 = vcvt.s32.f32 %v2318
    %2321 = vmin.xlane.f32.xlu0 %v2320
    %v2322 = vpop.xlane.xlu0 %2321
    %vm2323 = vcmp.eq.f32.partialorder %v2320, %v2322
    %v2324 = vsel %vm2323, %v2319, inf
    %2325 = vmin.xlane.f32.xlu0 %v2324
    %v2326 = vpop.xlane.xlu0 %2325
    %v2327 = vcvt.f32.s32 %v2326
    %v2328 = vcvt.f32.s32 %v2322
    %v2329 = vshll.u32 %v2328, 16
    %v2330 = vadd.s32 %v2329, %v2327
    %v2331 = vlaneseq
    %v2332 = vshrl.u32 %v2331, 7
    %v2333 = vsub.s32 %v2052, %v2332
    %v2334 = vrot.slane %v2330, %v2333
    %2335 = vst.msk [vmem:[#allocation7 + $0x5] sm:$0x1] %vm2086, %v2334
    %v2336 = vld [vmem:[#allocation6 + $0x5] sm:$0x1]
    %v2338 = vlaneseq
    %v2339 = vshrl.u32 %v2338, 7
    %v2340 = vsub.s32 0, %v2339
    %v2341 = vrot.slane %v2336, %v2340
    %2343 = vbcast.lane.b32.xlu0 %v2341, 256
    %v2344 = vpop.permute.xlu0 %2343
    %v2346 = vadd.f32 %v2313, %v2344
    %2348 = vset.pattern.permute.xlu0 0
    %2349 = vperm.xlu0 %2348, %v2346
    %v2350 = vpop.permute.xlu0 %2349
    %v2351 = vlaneseq
    %v2352 = vshrl.u32 %v2351, 7
    %v2353 = vsub.s32 %v2052, %v2352
    %v2354 = vrot.slane %v2350, %v2353
    %v2355 = vsel %vm2107, %v2354, %v2354
    %v2356 = vsel %vm2109, %v2354, %v2355
    %v2357 = vsel %vm2111, %v2354, %v2356
    %v2359 = vadd.f32 %v2050, %v2357
    %v2360 = vsel %vm2061, %v2359, -inf
    %2361 = vmax.xlane.f32.xlu0 %v2360
    %v2362 = vpop.xlane.xlu0 %2361
    %vm2363 = vcmp.ge.f32.partialorder %v2359, %v2362
    %v2364 = vsel %vm2363, %v2052, 5
    %v2365 = vsel %vm2061, %v2364, 2147483647
    %v2366 = vand.u32 %v2365, 65535
    %v2367 = vshra.s32 %v2365, 16
    %v2368 = vcvt.s32.f32 %v2366
    %v2369 = vcvt.s32.f32 %v2367
    %2370 = vmin.xlane.f32.xlu0 %v2369
    %v2371 = vpop.xlane.xlu0 %2370
    %vm2372 = vcmp.eq.f32.partialorder %v2369, %v2371
    %v2373 = vsel %vm2372, %v2368, inf
    %2374 = vmin.xlane.f32.xlu0 %v2373
    %v2375 = vpop.xlane.xlu0 %2374
    %v2376 = vcvt.f32.s32 %v2375
    %v2377 = vcvt.f32.s32 %v2371
    %v2378 = vshll.u32 %v2377, 16
    %v2379 = vadd.s32 %v2378, %v2376
    %v2380 = vlaneseq
    %v2381 = vshrl.u32 %v2380, 7
    %v2382 = vsub.s32 %v2052, %v2381
    %v2383 = vrot.slane %v2379, %v2382
    %2384 = vst.msk [vmem:[#allocation7 + $0x6] sm:$0x1] %vm2086, %v2383
    %v2385 = vld [vmem:[#allocation6 + $0x6] sm:$0x1]
    %v2387 = vlaneseq
    %v2388 = vshrl.u32 %v2387, 7
    %v2389 = vsub.s32 0, %v2388
    %v2390 = vrot.slane %v2385, %v2389
    %2392 = vbcast.lane.b32.xlu0 %v2390, 256
    %v2393 = vpop.permute.xlu0 %2392
    %v2395 = vadd.f32 %v2362, %v2393
    %2397 = vset.pattern.permute.xlu0 0
    %2398 = vperm.xlu0 %2397, %v2395
    %v2399 = vpop.permute.xlu0 %2398
    %v2400 = vlaneseq
    %v2401 = vshrl.u32 %v2400, 7
    %v2402 = vsub.s32 %v2052, %v2401
    %v2403 = vrot.slane %v2399, %v2402
    %v2404 = vsel %vm2107, %v2403, %v2403
    %v2405 = vsel %vm2109, %v2403, %v2404
    %v2406 = vsel %vm2111, %v2403, %v2405
    %v2408 = vadd.f32 %v2050, %v2406
    %v2409 = vsel %vm2061, %v2408, -inf
    %2410 = vmax.xlane.f32.xlu0 %v2409
    %v2411 = vpop.xlane.xlu0 %2410
    %vm2412 = vcmp.ge.f32.partialorder %v2408, %v2411
    %v2413 = vsel %vm2412, %v2052, 5
    %v2414 = vsel %vm2061, %v2413, 2147483647
    %v2415 = vand.u32 %v2414, 65535
    %v2416 = vshra.s32 %v2414, 16
    %v2417 = vcvt.s32.f32 %v2415
    %v2418 = vcvt.s32.f32 %v2416
    %2419 = vmin.xlane.f32.xlu0 %v2418
    %v2420 = vpop.xlane.xlu0 %2419
    %vm2421 = vcmp.eq.f32.partialorder %v2418, %v2420
    %v2422 = vsel %vm2421, %v2417, inf
    %2423 = vmin.xlane.f32.xlu0 %v2422
    %v2424 = vpop.xlane.xlu0 %2423
    %v2425 = vcvt.f32.s32 %v2424
    %v2426 = vcvt.f32.s32 %v2420
    %v2427 = vshll.u32 %v2426, 16
    %v2428 = vadd.s32 %v2427, %v2425
    %v2429 = vlaneseq
    %v2430 = vshrl.u32 %v2429, 7
    %v2431 = vsub.s32 %v2052, %v2430
    %v2432 = vrot.slane %v2428, %v2431
    %2433 = vst.msk [vmem:[#allocation7 + $0x7] sm:$0x1] %vm2086, %v2432
    %v2434 = vld [vmem:[#allocation6 + $0x7] sm:$0x1]
    %v2436 = vlaneseq
    %v2437 = vshrl.u32 %v2436, 7
    %v2438 = vsub.s32 0, %v2437
    %v2439 = vrot.slane %v2434, %v2438
    %2441 = vbcast.lane.b32.xlu0 %v2439, 256
    %v2442 = vpop.permute.xlu0 %2441
    %v2444 = vadd.f32 %v2411, %v2442
    %v2445 = vld [vmem:[%s14] sm:$0x1]
    %v2447 = vlaneseq
    %v2448 = vshrl.u32 %v2447, 7
    %v2449 = vsub.s32 0, %v2448
    %v2450 = vrot.slane %v2445, %v2449
    %2452 = vbcast.lane.b32.xlu0 %v2450, 256
    %v2453 = vpop.permute.xlu0 %2452
    %v2455 = vadd.f32 %v2444, %v2453
    %vm2456 = vcmask 4096
    %v2457 = vsel %vm2456, %v2455, -inf
    %v2458 = vrot.slane %v2457, 4
    %v2459 = vmax.f32 %v2457, %v2458
    %v2460 = vrot.slane %v2459, 2
    %v2461 = vmax.f32 %v2459, %v2460
    %v2462 = vrot.slane %v2461, 1
    %v2463 = vmax.f32 %v2461, %v2462
    %vm2464 = vcmask 0
    %2465 = vst.msk [vmem:[#allocation8] sm:$0x1] %vm2464, %v2463
    %2467 = vset.pattern.permute.xlu0 0
    %2468 = vperm.xlu0 %2467, %v2463
    %v2469 = vpop.permute.xlu0 %2468
    %vm2471 = vcmp.ge.f32.partialorder %v2455, %v2469
    %2473 = vbcast.lane.b32.xlu0 %v2052, 256
    %v2474 = vpop.permute.xlu0 %2473
    %v2475 = vsel %vm2471, %v2474, 5
    %v2476 = vsel %vm2456, %v2475, 2147483647
    %v2477 = vrot.slane %v2476, 4
    %vm2478 = vcmp.lt.s32.totalorder %v2476, %v2477
    %v2479 = vsel %vm2478, %v2476, %v2477
    %v2480 = vrot.slane %v2479, 2
    %vm2481 = vcmp.lt.s32.totalorder %v2479, %v2480
    %v2482 = vsel %vm2481, %v2479, %v2480
    %v2483 = vrot.slane %v2482, 1
    %vm2484 = vcmp.lt.s32.totalorder %v2482, %v2483
    %v2485 = vsel %vm2484, %v2482, %v2483
    %vm2486 = vcmp.eq.s32.totalorder %v2052, 7
    %2487 = vset.pattern.permute.xlu0 0
    %2488 = vperm.xlu0 %2487, %v2485
    %v2489 = vpop.permute.xlu0 %2488
    %v2490 = vsel %vm2486, %v2489, 0
    %v2491 = vld [vmem:[#allocation7 + $0x7] sm:$0x1]
    %vm2492 = vcmp.eq.s32.totalorder %v2052, %v2489
    %v2493 = vsel %vm2492, %v2491, 0
    %v2494 = vsel %vm2086, %v2493, 0
    %v2495 = vand.u32 %v2494, 65535
    %v2496 = vshrl.u32 %v2494, 16
    %v2497 = vcvt.s32.f32 %v2495
    %v2498 = vcvt.s32.f32 %v2496
    %2499 = vadd.xlane.f32.xlu0 %v2497
    %v2500 = vpop.xlane.xlu0 %2499
    %2501 = vadd.xlane.f32.xlu0 %v2498
    %v2502 = vpop.xlane.xlu0 %2501
    %v2503 = vcvt.f32.s32 %v2500
    %v2504 = vcvt.f32.s32 %v2502
    %v2505 = vshll.u32 %v2504, 16
    %v2506 = vadd.s32 %v2505, %v2503
    %vm2507 = vcmp.eq.s32.totalorder %v2052, 6
    %v2508 = vsel %vm2507, %v2506, %v2490
    %v2509 = vld [vmem:[#allocation7 + $0x6] sm:$0x1]
    %vm2510 = vcmp.eq.s32.totalorder %v2052, %v2506
    %v2511 = vsel %vm2510, %v2509, 0
    %v2512 = vsel %vm2086, %v2511, 0
    %v2513 = vand.u32 %v2512, 65535
    %v2514 = vshrl.u32 %v2512, 16
    %v2515 = vcvt.s32.f32 %v2513
    %v2516 = vcvt.s32.f32 %v2514
    %2517 = vadd.xlane.f32.xlu0 %v2515
    %v2518 = vpop.xlane.xlu0 %2517
    %2519 = vadd.xlane.f32.xlu0 %v2516
    %v2520 = vpop.xlane.xlu0 %2519
    %v2521 = vcvt.f32.s32 %v2518
    %v2522 = vcvt.f32.s32 %v2520
    %v2523 = vshll.u32 %v2522, 16
    %v2524 = vadd.s32 %v2523, %v2521
    %vm2525 = vcmp.eq.s32.totalorder %v2052, 5
    %v2526 = vsel %vm2525, %v2524, %v2508
    %v2527 = vld [vmem:[#allocation7 + $0x5] sm:$0x1]
    %vm2528 = vcmp.eq.s32.totalorder %v2052, %v2524
    %v2529 = vsel %vm2528, %v2527, 0
    %v2530 = vsel %vm2086, %v2529, 0
    %v2531 = vand.u32 %v2530, 65535
    %v2532 = vshrl.u32 %v2530, 16
    %v2533 = vcvt.s32.f32 %v2531
    %v2534 = vcvt.s32.f32 %v2532
    %2535 = vadd.xlane.f32.xlu0 %v2533
    %v2536 = vpop.xlane.xlu0 %2535
    %2537 = vadd.xlane.f32.xlu0 %v2534
    %v2538 = vpop.xlane.xlu0 %2537
    %v2539 = vcvt.f32.s32 %v2536
    %v2540 = vcvt.f32.s32 %v2538
    %v2541 = vshll.u32 %v2540, 16
    %v2542 = vadd.s32 %v2541, %v2539
    %vm2543 = vcmp.eq.s32.totalorder %v2052, 4
    %v2544 = vsel %vm2543, %v2542, %v2526
    %v2545 = vld [vmem:[#allocation7 + $0x4] sm:$0x1]
    %vm2546 = vcmp.eq.s32.totalorder %v2052, %v2542
    %v2547 = vsel %vm2546, %v2545, 0
    %v2548 = vsel %vm2086, %v2547, 0
    %v2549 = vand.u32 %v2548, 65535
    %v2550 = vshrl.u32 %v2548, 16
    %v2551 = vcvt.s32.f32 %v2549
    %v2552 = vcvt.s32.f32 %v2550
    %2553 = vadd.xlane.f32.xlu0 %v2551
    %v2554 = vpop.xlane.xlu0 %2553
    %2555 = vadd.xlane.f32.xlu0 %v2552
    %v2556 = vpop.xlane.xlu0 %2555
    %v2557 = vcvt.f32.s32 %v2554
    %v2558 = vcvt.f32.s32 %v2556
    %v2559 = vshll.u32 %v2558, 16
    %v2560 = vadd.s32 %v2559, %v2557
    %vm2561 = vcmp.eq.s32.totalorder %v2052, 3
    %v2562 = vsel %vm2561, %v2560, %v2544
    %v2563 = vld [vmem:[#allocation7 + $0x3] sm:$0x1]
    %vm2564 = vcmp.eq.s32.totalorder %v2052, %v2560
    %v2565 = vsel %vm2564, %v2563, 0
    %v2566 = vsel %vm2086, %v2565, 0
    %v2567 = vand.u32 %v2566, 65535
    %v2568 = vshrl.u32 %v2566, 16
    %v2569 = vcvt.s32.f32 %v2567
    %v2570 = vcvt.s32.f32 %v2568
    %2571 = vadd.xlane.f32.xlu0 %v2569
    %v2572 = vpop.xlane.xlu0 %2571
    %2573 = vadd.xlane.f32.xlu0 %v2570
    %v2574 = vpop.xlane.xlu0 %2573
    %v2575 = vcvt.f32.s32 %v2572
    %v2576 = vcvt.f32.s32 %v2574
    %v2577 = vshll.u32 %v2576, 16
    %v2578 = vadd.s32 %v2577, %v2575
    %vm2579 = vcmp.eq.s32.totalorder %v2052, 2
    %v2580 = vsel %vm2579, %v2578, %v2562
    %v2581 = vld [vmem:[#allocation7 + $0x2] sm:$0x1]
    %vm2582 = vcmp.eq.s32.totalorder %v2052, %v2578
    %v2583 = vsel %vm2582, %v2581, 0
    %v2584 = vsel %vm2086, %v2583, 0
    %v2585 = vand.u32 %v2584, 65535
    %v2586 = vshrl.u32 %v2584, 16
    %v2587 = vcvt.s32.f32 %v2585
    %v2588 = vcvt.s32.f32 %v2586
    %2589 = vadd.xlane.f32.xlu0 %v2587
    %v2590 = vpop.xlane.xlu0 %2589
    %2591 = vadd.xlane.f32.xlu0 %v2588
    %v2592 = vpop.xlane.xlu0 %2591
    %v2593 = vcvt.f32.s32 %v2590
    %v2594 = vcvt.f32.s32 %v2592
    %v2595 = vshll.u32 %v2594, 16
    %v2596 = vadd.s32 %v2595, %v2593
    %vm2597 = vcmp.eq.s32.totalorder %v2052, 1
    %v2598 = vsel %vm2597, %v2596, %v2580
    %v2599 = vld [vmem:[#allocation7 + $0x1] sm:$0x1]
    %vm2600 = vcmp.eq.s32.totalorder %v2052, %v2596
    %v2601 = vsel %vm2600, %v2599, 0
    %v2602 = vsel %vm2086, %v2601, 0
    %v2603 = vand.u32 %v2602, 65535
    %v2604 = vshrl.u32 %v2602, 16
    %v2605 = vcvt.s32.f32 %v2603
    %v2606 = vcvt.s32.f32 %v2604
    %2607 = vadd.xlane.f32.xlu0 %v2605
    %v2608 = vpop.xlane.xlu0 %2607
    %2609 = vadd.xlane.f32.xlu0 %v2606
    %v2610 = vpop.xlane.xlu0 %2609
    %v2611 = vcvt.f32.s32 %v2608
    %v2612 = vcvt.f32.s32 %v2610
    %v2613 = vshll.u32 %v2612, 16
    %v2614 = vadd.s32 %v2613, %v2611
    %vm2615 = vcmp.eq.s32.totalorder %v2052, 0
    %v2616 = vsel %vm2615, %v2614, %v2598
    %v2617 = vld [vmem:[#allocation7] sm:$0x1]
    %vm2618 = vcmp.eq.s32.totalorder %v2052, %v2614
    %v2619 = vsel %vm2618, %v2617, 0
    %v2620 = vsel %vm2086, %v2619, 0
    %v2621 = vand.u32 %v2620, 65535
    %v2622 = vshrl.u32 %v2620, 16
    %v2623 = vcvt.s32.f32 %v2621
    %v2624 = vcvt.s32.f32 %v2622
    %2625 = vadd.xlane.f32.xlu0 %v2623
    %v2626 = vpop.xlane.xlu0 %2625
    %2627 = vadd.xlane.f32.xlu0 %v2624
    %v2628 = vpop.xlane.xlu0 %2627
    %v2629 = vcvt.f32.s32 %v2626
    %v2630 = vcvt.f32.s32 %v2628
    %v2631 = vshll.u32 %v2630, 16
    %v2632 = vadd.s32 %v2631, %v2629
    %vm2633 = vcmp.eq.s32.totalorder %v2052, 4294967295
    %v2634 = vsel %vm2633, %v2632, %v2616
    %vm2635 = vcmask 57344
    %2636 = vst.msk [vmem:[#allocation10] sm:$0x1] %vm2635, %v2634
    %2637 = vst.msk [vmem:[#allocation12] sm:$0x1] %vm2464, %v2632
    // Predicated region
    $region62: #{bilstm_crf_forward.1} parent=1 // pred_check
      _
    $region63: #{bilstm_crf_forward.1} parent=1 // pred_check_branch
      %2639 = sbr.rel (0) target = $region65
    $region64: #{bilstm_crf_forward.1} parent=1 // pred_region
      %s2641 = ssub.s32 16, 16
      %2642 = vsyncadd [#allocation9], %s2641
      %s2644 = sshll.u32 [#allocation8], 4
      %s2645 = int_to_ptr.vmem [resolvable:$true] %s2644
      %2647 = dma.vmem_to_hbm [thread:$0]  %s2645, 16, %s15, [#allocation9]
    $region65: #{bilstm_crf_forward.1} parent=1 // pred_fallthru
      _
    // Predicated region
    $region66: #{bilstm_crf_forward.1} parent=1 // pred_check
      _
    $region67: #{bilstm_crf_forward.1} parent=1 // pred_check_branch
      %2649 = sbr.rel (0) target = $region69
    $region68: #{bilstm_crf_forward.1} parent=1 // pred_region
      %s2651 = ssub.s32 16, 16
      %2652 = vsyncadd [#allocation11], %s2651
      %s2654 = sshll.u32 [#allocation10], 4
      %s2655 = int_to_ptr.vmem [resolvable:$true] %s2654
      %2657 = dma.vmem_to_hbm [thread:$0]  %s2655, 16, %s16, [#allocation11]
    $region69: #{bilstm_crf_forward.1} parent=1 // pred_fallthru
      _
    // Predicated region
    $region70: #{bilstm_crf_forward.1} parent=1 // pred_check
      _
    $region71: #{bilstm_crf_forward.1} parent=1 // pred_check_branch
      %2659 = sbr.rel (0) target = $region73
    $region72: #{bilstm_crf_forward.1} parent=1 // pred_region
      %s2661 = ssub.s32 16, 16
      %2662 = vsyncadd [#allocation11], %s2661
      %s2664 = sshll.u32 [#allocation12], 4
      %s2665 = int_to_ptr.vmem [resolvable:$true] %s2664
      %2667 = dma.vmem_to_hbm [thread:$0]  %s2665, 16, %s17, [#allocation11]
    $region73: #{bilstm_crf_forward.1} parent=1 // pred_fallthru
      _
    // Predicated region
    $region74: #{bilstm_crf_forward.1} parent=1 // pred_check
      _
    $region75: #{bilstm_crf_forward.1} parent=1 // pred_check_branch
      %2669 = sbr.rel (0) target = $region77
    $region76: #{bilstm_crf_forward.1} parent=1 // pred_region
      %2670 = dma.done [#allocation9], 16
    $region77: #{bilstm_crf_forward.1} parent=1 // pred_fallthru
      _
    // Predicated region
    $region78: #{bilstm_crf_forward.1} parent=1 // pred_check
      _
    $region79: #{bilstm_crf_forward.1} parent=1 // pred_check_branch
      %2672 = sbr.rel (0) target = $region81
    $region80: #{bilstm_crf_forward.1} parent=1 // pred_region
      %2673 = dma.done [#allocation11], 16
    $region81: #{bilstm_crf_forward.1} parent=1 // pred_fallthru
      _
    // Predicated region
    $region82: #{bilstm_crf_forward.1} parent=1 // pred_check
      _
    $region83: #{bilstm_crf_forward.1} parent=1 // pred_check_branch
      %2675 = sbr.rel (0) target = $region85
    $region84: #{bilstm_crf_forward.1} parent=1 // pred_region
      %2676 = dma.done [#allocation11], 16
    $region85: #{bilstm_crf_forward.1} parent=1 // pred_fallthru
      _
    %2677 = vsyncpa [#allocation9], 1
    %2678 = vsyncpa [#allocation11], 1

</llo_original>
